<compile_context>
chip_gen: v7x
topology: tpu7x:2x2x1
jax: 0.10.0
libtpu: 0.0.40
codegen_flags: <defaults>
</compile_context>

<pallas_src>
import functools
import numpy as np

import jax
import jax.numpy as jnp
from jax.experimental import pallas as pl
from jax.experimental.pallas import tpu as pltpu  # noqa: F401  (TPU backend)

# ----------------------------- configuration --------------------------------
N_VOCAB    = 50
D_MODEL    = 32
D_WORD_VEC = 32
N_LAYERS   = 2
N_HEAD     = 4
D_K        = 8
D_V        = 8
D_INNER    = 64
PAD_IDX    = 0
N_POSITION = 200
NEG_INF    = -1e9

B      = 2
T_TRG  = 8
T_SRC  = 8


# ----------------------------- small helpers --------------------------------
def _layernorm(x, gamma, beta, eps=1e-6):
    """LayerNorm over the last dim (matches torch.nn.LayerNorm, eps=1e-6)."""
    mean = jnp.mean(x, axis=-1, keepdims=True)
    var = jnp.mean((x - mean) ** 2, axis=-1, keepdims=True)
    return (x - mean) * jax.lax.rsqrt(var + eps) * gamma + beta


def sinusoid_table(n_position, d_hid):
    pos = np.arange(n_position, dtype=np.float64)[:, None]
    hid = np.arange(d_hid)[None, :]
    angle = pos / np.power(10000.0, 2.0 * (hid // 2) / d_hid)
    table = np.zeros((n_position, d_hid), dtype=np.float32)
    table[:, 0::2] = np.sin(angle[:, 0::2])
    table[:, 1::2] = np.cos(angle[:, 1::2])
    return jnp.asarray(table)


# --------------------------- fused Pallas kernel ------------------------------
def decoder_kernel(ids_ref, emb_ref, pos_ref, g0_ref, b0_ref, enc_ref,
                   slf_bias_ref, enc_bias_ref,
                   s_wqkv_ref, s_wo_ref, s_g_ref, s_b_ref,
                   e_wq_ref, e_wkv_ref, e_wo_ref, e_g_ref, e_b_ref,
                   f_w1_ref, f_b1_ref, f_w2_ref, f_b2_ref, f_g_ref, f_b_ref,
                   o_ref, *,
                   n_layers, n_head, d_k, d_v, n_vocab, bt_q):
    hdk = n_head * d_k
    hdv = n_head * d_v

    # ---- embedding lookup (one-hot matmul keeps the gather on-chip) ----------
    ids = ids_ref[...]                                               # (BT, 1) int32
    vocab_iota = jax.lax.broadcasted_iota(jnp.int32, (bt_q, n_vocab), 1)
    onehot = (vocab_iota == ids).astype(jnp.float32)                 # (BT, V)
    x = jnp.dot(onehot, emb_ref[...], preferred_element_type=jnp.float32)  # (BT, D)
    x = x + pos_ref[...]                                             # + positional enc
    x = _layernorm(x, g0_ref[...], b0_ref[...])                      # dropout = identity

    enc2d = enc_ref[...]                                             # (B*Ts, D)
    slf_bias = slf_bias_ref[...]                                     # (B*Tq, B*Tq) additive
    enc_bias = enc_bias_ref[...]                                     # (B*Tq, B*Ts) additive

    def attention(q2, k2, v2, bias, wo, resid, g, b_):
        """Multi-head attention on already-projected (B*T, H*d) slabs.

        The additive `bias` is block-diagonal over batches (cross-batch keys
        are -1e9), so all batches share one (B*Tq, B*Tk) score tile per head:
        no per-batch loops, no head/batch reshapes or transposes.
        """
        ctx_heads = []
        for h in range(n_head):                                      # static, H=4
            q_h = q2[:, h * d_k:(h + 1) * d_k]                       # (BTq, dk) lane slice
            k_h = k2[:, h * d_k:(h + 1) * d_k]                       # (BTk, dk)
            v_h = v2[:, h * d_v:(h + 1) * d_v]                       # (BTk, dv)
            s = jnp.einsum('qd,kd->qk', q_h, k_h,
                           preferred_element_type=jnp.float32)       # (BTq, BTk)
            s = s + bias                                             # mask (incl. cross-batch)
            m = jnp.max(s, axis=-1, keepdims=True)
            e = jnp.exp(s - m)
            p = e * pl.reciprocal(jnp.sum(e, axis=-1, keepdims=True), approx=True)
            ctx_heads.append(jnp.dot(p, v_h,
                                     preferred_element_type=jnp.float32))  # (BTq, dv)
        ctx = jnp.concatenate(ctx_heads, axis=-1)                    # (BTq, H*dv)
        out = jnp.dot(ctx, wo, preferred_element_type=jnp.float32) + resid
        return _layernorm(out, g, b_)

    for l in range(n_layers):                                        # static layer loop
        # ---- masked self-attention: single fused QKV matmul ------------------
        qkv = jnp.dot(x, s_wqkv_ref[l], preferred_element_type=jnp.float32)   # (BT, 3*H*dk)
        x = attention(qkv[:, :hdk], qkv[:, hdk:2 * hdk], qkv[:, 2 * hdk:2 * hdk + hdv],
                      slf_bias, s_wo_ref[l], x, s_g_ref[l], s_b_ref[l])
        # ---- encoder-decoder attention: fused KV matmul ----------------------
        q2 = jnp.dot(x, e_wq_ref[l], preferred_element_type=jnp.float32)      # (BT, H*dk)
        kv = jnp.dot(enc2d, e_wkv_ref[l], preferred_element_type=jnp.float32) # (BTs, 2*H*dk)
        x = attention(q2, kv[:, :hdk], kv[:, hdk:hdk + hdv],
                      enc_bias, e_wo_ref[l], x, e_g_ref[l], e_b_ref[l])
        # ---- position-wise FFN (+ residual + post-LN) -------------------------
        h1 = jnp.dot(x, f_w1_ref[l], preferred_element_type=jnp.float32) + f_b1_ref[l]
        h1 = jnp.maximum(h1, 0.0)
        y = jnp.dot(h1, f_w2_ref[l], preferred_element_type=jnp.float32) + f_b2_ref[l]
        x = _layernorm(y + x, f_g_ref[l], f_b_ref[l])

    # Single contiguous 2-D store; (B, T, D) reshape happens in the wrapper.
    o_ref[...] = x


# ----------------------------- wrapper ----------------------------------------
def _pack_params(params):
    """Stack per-layer weights with a leading (N_LAYERS,...) dim.

    Q/K/V are packed along the output columns so each attention needs a single
    projection matmul; the 1/sqrt(d_k) score scale is folded into wq here.
    """
    scale = 1.0 / (D_K ** 0.5)

    def stack(fn):
        return jnp.stack([fn(layer) for layer in params['layers']], axis=0)

    return dict(
        s_wqkv=stack(lambda L: jnp.concatenate(
            [L['slf']['wq'] * scale, L['slf']['wk'], L['slf']['wv']], axis=1)),   # (D, 3*H*dk)
        s_wo=stack(lambda L: L['slf']['wo']),                                      # (H*dv, D)
        s_g=stack(lambda L: L['slf']['ln_g']),
        s_b=stack(lambda L: L['slf']['ln_b']),
        e_wq=stack(lambda L: L['enc']['wq'] * scale),                              # (D, H*dk)
        e_wkv=stack(lambda L: jnp.concatenate(
            [L['enc']['wk'], L['enc']['wv']], axis=1)),                            # (D, 2*H*dk)
        e_wo=stack(lambda L: L['enc']['wo']),
        e_g=stack(lambda L: L['enc']['ln_g']),
        e_b=stack(lambda L: L['enc']['ln_b']),
        f_w1=stack(lambda L: L['ffn']['w1']),
        f_b1=stack(lambda L: L['ffn']['b1']),
        f_w2=stack(lambda L: L['ffn']['w2']),
        f_b2=stack(lambda L: L['ffn']['b2']),
        f_g=stack(lambda L: L['ffn']['ln_g']),
        f_b=stack(lambda L: L['ffn']['ln_b']),
    )


def decoder_forward(params, trg_seq, trg_mask, enc_output, src_mask):
    bsz, t_q = trg_seq.shape
    t_k = enc_output.shape[1]
    pk = _pack_params(params)

    ids = trg_seq.reshape(bsz * t_q, 1).astype(jnp.int32)
    pos2d = jnp.tile(params['pos_table'][:t_q], (bsz, 1)).astype(jnp.float32)
    enc2d = enc_output.reshape(bsz * t_k, D_MODEL).astype(jnp.float32)

    # Precompute additive mask biases once, block-diagonal over the batch so
    # the kernel can use full (B*Tq, B*Tk) score tiles with no per-batch loop.
    batch_eq = (jnp.arange(bsz)[:, None, None, None] ==
                jnp.arange(bsz)[None, None, :, None])                       # (B,1,B,1)
    slf_valid = batch_eq & trg_mask[:, :, None, :].astype(bool)             # (B,Tq,B,Tq)
    slf_bias = jnp.where(slf_valid, 0.0, NEG_INF).reshape(
        bsz * t_q, bsz * t_q).astype(jnp.float32)
    src_b = jnp.broadcast_to(src_mask, (bsz, t_q, t_k)).astype(bool)
    enc_valid = batch_eq & src_b[:, :, None, :]                             # (B,Tq,B,Ts)
    enc_bias = jnp.where(enc_valid, 0.0, NEG_INF).reshape(
        bsz * t_q, bsz * t_k).astype(jnp.float32)

    kern = functools.partial(
        decoder_kernel,
        n_layers=N_LAYERS, n_head=N_HEAD, d_k=D_K, d_v=D_V,
        n_vocab=N_VOCAB, bt_q=bsz * t_q)

    # Single fused call, no grid: every operand is a whole-array VMEM block.
    out2d = pl.pallas_call(
        kern,
        out_shape=jax.ShapeDtypeStruct((bsz * t_q, D_MODEL), jnp.float32),
    )(ids, params['emb'], pos2d, params['ln_g'], params['ln_b'], enc2d,
      slf_bias, enc_bias,
      pk['s_wqkv'], pk['s_wo'], pk['s_g'], pk['s_b'],
      pk['e_wq'], pk['e_wkv'], pk['e_wo'], pk['e_g'], pk['e_b'],
      pk['f_w1'], pk['f_b1'], pk['f_w2'], pk['f_b2'], pk['f_g'], pk['f_b'])
    return out2d.reshape(bsz, t_q, D_MODEL)


# --------------------------- pure-JAX reference ------------------------------
def _ln_ref(x, g, b, eps=1e-6):
    mean = x.mean(-1, keepdims=True)
    var = ((x - mean) ** 2).mean(-1, keepdims=True)
    return (x - mean) / jnp.sqrt(var + eps) * g + b


def _mha_ref(q_in, kv_in, mask, p):
    Bz, Tq, D = q_in.shape
    Tk = kv_in.shape[1]
    q = (q_in @ p['wq']).reshape(Bz, Tq, N_HEAD, D_K).transpose(0, 2, 1, 3)
    k = (kv_in @ p['wk']).reshape(Bz, Tk, N_HEAD, D_K).transpose(0, 2, 1, 3)
    v = (kv_in @ p['wv']).reshape(Bz, Tk, N_HEAD, D_V).transpose(0, 2, 1, 3)
    scores = (q / (D_K ** 0.5)) @ k.transpose(0, 1, 3, 2)
    scores = jnp.where(mask[:, None].astype(jnp.float32) > 0, scores, NEG_INF)
    attn = jax.nn.softmax(scores, axis=-1)
    ctx = (attn @ v).transpose(0, 2, 1, 3).reshape(Bz, Tq, N_HEAD * D_V)
    return _ln_ref(ctx @ p['wo'] + q_in, p['ln_g'], p['ln_b'])


def decoder_ref(params, trg_seq, trg_mask, enc_output, src_mask):
    emb = params['emb'][trg_seq]
    x = _ln_ref(emb + params['pos_table'][:trg_seq.shape[1]],
                params['ln_g'], params['ln_b'])
    for layer in params['layers']:
        x = _mha_ref(x, x, trg_mask, layer['slf'])
        x = _mha_ref(x, enc_output, src_mask, layer['enc'])
        p = layer['ffn']
        h = jnp.maximum(x @ p['w1'] + p['b1'], 0.0)
        x = _ln_ref(h @ p['w2'] + p['b2'] + x, p['ln_g'], p['ln_b'])
    return x


# ------------------------------- param init ----------------------------------
def init_params(key):
    ks = jax.random.split(key, 4 + N_LAYERS)
    emb = 0.05 * jax.random.normal(ks[0], (N_VOCAB, D_WORD_VEC), jnp.float32)
    emb = emb.at[PAD_IDX].set(0.0)                       # padding_idx row is zero

    def lin(k, din, dout):
        return 0.05 * jax.random.normal(k, (din, dout), jnp.float32)

    layers = []
    for li in range(N_LAYERS):
        lk = jax.random.split(ks[4 + li], 12)
        attn = lambda i: {
            'wq': lin(lk[i + 0], D_MODEL, N_HEAD * D_K),
            'wk': lin(lk[i + 1], D_MODEL, N_HEAD * D_K),
            'wv': lin(lk[i + 2], D_MODEL, N_HEAD * D_V),
            'wo': lin(lk[i + 3], N_HEAD * D_V, D_MODEL),
            'ln_g': jnp.ones((1, D_MODEL), jnp.float32),
            'ln_b': jnp.zeros((1, D_MODEL), jnp.float32),
        }
        layers.append({
            'slf': attn(0),
            'enc': attn(4),
            'ffn': {
                'w1': lin(lk[8], D_MODEL, D_INNER),
                'b1': 0.05 * jax.random.normal(lk[9], (1, D_INNER), jnp.float32),
                'w2': lin(lk[10], D_INNER, D_MODEL),
                'b2': 0.05 * jax.random.normal(lk[11], (1, D_MODEL), jnp.float32),
                'ln_g': jnp.ones((1, D_MODEL), jnp.float32),
                'ln_b': jnp.zeros((1, D_MODEL), jnp.float32),
            },
        })

    return {
        'emb': emb,
        'pos_table': sinusoid_table(N_POSITION, D_WORD_VEC),
        'ln_g': jnp.ones((1, D_MODEL), jnp.float32),
        'ln_b': jnp.zeros((1, D_MODEL), jnp.float32),
        'layers': layers,
    }


# ---------------------------------- main --------------------------------------
if __name__ == "__main__":
    key = jax.random.PRNGKey(0)
    k_param, k_seq, k_enc = jax.random.split(key, 3)

    params = init_params(k_param)

    # Target token ids with trailing padding on batch row 0.
    trg_seq = jax.random.randint(k_seq, (B, T_TRG), 1, N_VOCAB)
    trg_seq = trg_seq.at[0, 6:].set(PAD_IDX)

    # trg_mask = pad mask & causal mask  -> (B, T, T) bool
    pad_mask = (trg_seq != PAD_IDX)[:, None, :]                        # (B,1,T)
    sub_mask = jnp.tril(jnp.ones((1, T_TRG, T_TRG), dtype=bool))       # (1,T,T)
    trg_mask = pad_mask & sub_mask                                     # (B,T,T)

    # src_mask -> (B, 1, S) bool (second source sequence shorter)
    src_lens = jnp.array([T_SRC, T_SRC - 2])
    src_mask = (jnp.arange(T_SRC)[None, :] < src_lens[:, None])[:, None, :]

    enc_output = jax.random.normal(k_enc, (B, T_SRC, D_MODEL), jnp.float32)

    out = decoder_forward(params, trg_seq, trg_mask, enc_output, src_mask)
    out = jax.block_until_ready(out)

    ref = decoder_ref(params, trg_seq, trg_mask, enc_output, src_mask)
    np.testing.assert_allclose(np.asarray(out), np.asarray(ref),
                               rtol=1e-2, atol=1e-2)
    assert out.shape == (B, T_TRG, D_MODEL)

    print("KERNEL_OK")
</pallas_src>

<mosaic_0001>
module attributes {stable_mosaic.version = 11 : i64} {
  func.func @decoder_kernel(%arg0: memref<16x1xi32, #tpu.memory_space<vmem>>, %arg1: memref<50x32xf32, #tpu.memory_space<vmem>>, %arg2: memref<16x32xf32, #tpu.memory_space<vmem>>, %arg3: memref<1x32xf32, #tpu.memory_space<vmem>>, %arg4: memref<1x32xf32, #tpu.memory_space<vmem>>, %arg5: memref<16x32xf32, #tpu.memory_space<vmem>>, %arg6: memref<16x16xf32, #tpu.memory_space<vmem>>, %arg7: memref<16x16xf32, #tpu.memory_space<vmem>>, %arg8: memref<2x32x96xf32, #tpu.memory_space<vmem>>, %arg9: memref<2x32x32xf32, #tpu.memory_space<vmem>>, %arg10: memref<2x1x32xf32, #tpu.memory_space<vmem>>, %arg11: memref<2x1x32xf32, #tpu.memory_space<vmem>>, %arg12: memref<2x32x32xf32, #tpu.memory_space<vmem>>, %arg13: memref<2x32x64xf32, #tpu.memory_space<vmem>>, %arg14: memref<2x32x32xf32, #tpu.memory_space<vmem>>, %arg15: memref<2x1x32xf32, #tpu.memory_space<vmem>>, %arg16: memref<2x1x32xf32, #tpu.memory_space<vmem>>, %arg17: memref<2x32x64xf32, #tpu.memory_space<vmem>>, %arg18: memref<2x1x64xf32, #tpu.memory_space<vmem>>, %arg19: memref<2x64x32xf32, #tpu.memory_space<vmem>>, %arg20: memref<2x1x32xf32, #tpu.memory_space<vmem>>, %arg21: memref<2x1x32xf32, #tpu.memory_space<vmem>>, %arg22: memref<2x1x32xf32, #tpu.memory_space<vmem>>, %arg23: memref<16x32xf32, #tpu.memory_space<vmem>>) attributes {dimension_semantics = [], scalar_prefetch = 0 : i64, scratch_operands = 0 : i64, tpu.core_type = #tpu.core_type<tc>} {
    %c0 = arith.constant 0 : index
    %c0_0 = arith.constant 0 : index
    %0 = vector.load %arg0[%c0, %c0_0] : memref<16x1xi32, #tpu.memory_space<vmem>>, vector<16x1xi32>
    %1 = tpu.iota {dimensions = array<i32: 1>} : vector<16x50xi32>
    %2 = vector.broadcast %0 : vector<16x1xi32> to vector<16x50xi32>
    %3 = arith.cmpi eq, %1, %2 : vector<16x50xi32>
    %4 = arith.extui %3 : vector<16x50xi1> to vector<16x50xi32>
    %5 = arith.sitofp %4 : vector<16x50xi32> to vector<16x50xf32>
    %c0_1 = arith.constant 0 : index
    %c0_2 = arith.constant 0 : index
    %6 = vector.load %arg1[%c0_1, %c0_2] : memref<50x32xf32, #tpu.memory_space<vmem>>, vector<50x32xf32>
    %cst = arith.constant dense<0.000000e+00> : vector<16x32xf32>
    %7 = tpu.matmul %5, %6, %cst {dimension_numbers = #tpu.dot_dimension_numbers<[1], [0], [0], [1], [0, 0, 1, 1], [], []>} : vector<16x50xf32>, vector<50x32xf32>, vector<16x32xf32> -> vector<16x32xf32>
    %c0_3 = arith.constant 0 : index
    %c0_4 = arith.constant 0 : index
    %8 = vector.load %arg2[%c0_3, %c0_4] : memref<16x32xf32, #tpu.memory_space<vmem>>, vector<16x32xf32>
    %9 = arith.addf %7, %8 : vector<16x32xf32>
    %c0_5 = arith.constant 0 : index
    %c0_6 = arith.constant 0 : index
    %10 = vector.load %arg3[%c0_5, %c0_6] : memref<1x32xf32, #tpu.memory_space<vmem>>, vector<1x32xf32>
    %c0_7 = arith.constant 0 : index
    %c0_8 = arith.constant 0 : index
    %11 = vector.load %arg4[%c0_7, %c0_8] : memref<1x32xf32, #tpu.memory_space<vmem>>, vector<1x32xf32>
    %cst_9 = arith.constant dense<0.000000e+00> : vector<16xf32>
    %12 = vector.multi_reduction <add>, %9, %cst_9 [1] : vector<16x32xf32> to vector<16xf32>
    %13 = vector.shape_cast %12 : vector<16xf32> to vector<16x1xf32>
    %cst_10 = arith.constant 3.200000e+01 : f32
    %14 = vector.broadcast %cst_10 : f32 to vector<16x1xf32>
    %15 = arith.divf %13, %14 : vector<16x1xf32>
    %16 = vector.broadcast %15 : vector<16x1xf32> to vector<16x32xf32>
    %17 = arith.subf %9, %16 : vector<16x32xf32>
    %18 = arith.mulf %17, %17 : vector<16x32xf32>
    %cst_11 = arith.constant dense<0.000000e+00> : vector<16xf32>
    %19 = vector.multi_reduction <add>, %18, %cst_11 [1] : vector<16x32xf32> to vector<16xf32>
    %20 = vector.shape_cast %19 : vector<16xf32> to vector<16x1xf32>
    %cst_12 = arith.constant 3.200000e+01 : f32
    %21 = vector.broadcast %cst_12 : f32 to vector<16x1xf32>
    %22 = arith.divf %20, %21 : vector<16x1xf32>
    %23 = vector.broadcast %15 : vector<16x1xf32> to vector<16x32xf32>
    %24 = arith.subf %9, %23 : vector<16x32xf32>
    %cst_13 = arith.constant 9.99999997E-7 : f32
    %25 = vector.broadcast %cst_13 : f32 to vector<16x1xf32>
    %26 = arith.addf %22, %25 : vector<16x1xf32>
    %27 = math.rsqrt %26 : vector<16x1xf32>
    %28 = vector.broadcast %27 : vector<16x1xf32> to vector<16x32xf32>
    %29 = arith.mulf %24, %28 : vector<16x32xf32>
    %30 = vector.broadcast %10 : vector<1x32xf32> to vector<16x32xf32>
    %31 = arith.mulf %29, %30 : vector<16x32xf32>
    %32 = vector.broadcast %11 : vector<1x32xf32> to vector<16x32xf32>
    %33 = arith.addf %31, %32 : vector<16x32xf32>
    %c0_14 = arith.constant 0 : index
    %c0_15 = arith.constant 0 : index
    %34 = vector.load %arg5[%c0_14, %c0_15] : memref<16x32xf32, #tpu.memory_space<vmem>>, vector<16x32xf32>
    %c0_16 = arith.constant 0 : index
    %c0_17 = arith.constant 0 : index
    %35 = vector.load %arg6[%c0_16, %c0_17] : memref<16x16xf32, #tpu.memory_space<vmem>>, vector<16x16xf32>
    %c0_18 = arith.constant 0 : index
    %c0_19 = arith.constant 0 : index
    %36 = vector.load %arg7[%c0_18, %c0_19] : memref<16x16xf32, #tpu.memory_space<vmem>>, vector<16x16xf32>
    %c0_20 = arith.constant 0 : index
    %c0_21 = arith.constant 0 : index
    %c0_22 = arith.constant 0 : index
    %37 = vector.load %arg8[%c0_20, %c0_21, %c0_22] : memref<2x32x96xf32, #tpu.memory_space<vmem>>, vector<1x32x96xf32>
    %38 = vector.shape_cast %37 : vector<1x32x96xf32> to vector<32x96xf32>
    %cst_23 = arith.constant dense<0.000000e+00> : vector<16x96xf32>
    %39 = tpu.matmul %33, %38, %cst_23 {dimension_numbers = #tpu.dot_dimension_numbers<[1], [0], [0], [1], [0, 0, 1, 1], [], []>} : vector<16x32xf32>, vector<32x96xf32>, vector<16x96xf32> -> vector<16x96xf32>
    %40 = vector.extract_strided_slice %39 {offsets = [0, 0], sizes = [16, 32], strides = [1, 1]} : vector<16x96xf32> to vector<16x32xf32>
    %41 = vector.extract_strided_slice %39 {offsets = [0, 32], sizes = [16, 32], strides = [1, 1]} : vector<16x96xf32> to vector<16x32xf32>
    %42 = vector.extract_strided_slice %39 {offsets = [0, 64], sizes = [16, 32], strides = [1, 1]} : vector<16x96xf32> to vector<16x32xf32>
    %c0_24 = arith.constant 0 : index
    %c0_25 = arith.constant 0 : index
    %c0_26 = arith.constant 0 : index
    %43 = vector.load %arg9[%c0_24, %c0_25, %c0_26] : memref<2x32x32xf32, #tpu.memory_space<vmem>>, vector<1x32x32xf32>
    %44 = vector.shape_cast %43 : vector<1x32x32xf32> to vector<32x32xf32>
    %c0_27 = arith.constant 0 : index
    %c0_28 = arith.constant 0 : index
    %c0_29 = arith.constant 0 : index
    %45 = vector.load %arg10[%c0_27, %c0_28, %c0_29] : memref<2x1x32xf32, #tpu.memory_space<vmem>>, vector<1x1x32xf32>
    %46 = vector.shape_cast %45 : vector<1x1x32xf32> to vector<1x32xf32>
    %c0_30 = arith.constant 0 : index
    %c0_31 = arith.constant 0 : index
    %c0_32 = arith.constant 0 : index
    %47 = vector.load %arg11[%c0_30, %c0_31, %c0_32] : memref<2x1x32xf32, #tpu.memory_space<vmem>>, vector<1x1x32xf32>
    %48 = vector.shape_cast %47 : vector<1x1x32xf32> to vector<1x32xf32>
    %49 = vector.extract_strided_slice %40 {offsets = [0, 0], sizes = [16, 8], strides = [1, 1]} : vector<16x32xf32> to vector<16x8xf32>
    %50 = vector.extract_strided_slice %41 {offsets = [0, 0], sizes = [16, 8], strides = [1, 1]} : vector<16x32xf32> to vector<16x8xf32>
    %51 = vector.extract_strided_slice %42 {offsets = [0, 0], sizes = [16, 8], strides = [1, 1]} : vector<16x32xf32> to vector<16x8xf32>
    "tpu.trace_start"() <{level = 10 : i32, message = "qd,kd->qk"}> : () -> ()
    %cst_33 = arith.constant dense<0.000000e+00> : vector<16x16xf32>
    %52 = tpu.matmul %49, %50, %cst_33 {dimension_numbers = #tpu.dot_dimension_numbers<[1], [1], [0], [0], [0, 0, 1, 0], [], []>} : vector<16x8xf32>, vector<16x8xf32>, vector<16x16xf32> -> vector<16x16xf32>
    "tpu.trace_stop"() : () -> ()
    %53 = arith.addf %52, %35 : vector<16x16xf32>
    %cst_34 = arith.constant dense<0xFF800000> : vector<16xf32>
    %54 = vector.multi_reduction <maximumf>, %53, %cst_34 [1] : vector<16x16xf32> to vector<16xf32>
    %55 = vector.shape_cast %54 : vector<16xf32> to vector<16x1xf32>
    %56 = vector.broadcast %55 : vector<16x1xf32> to vector<16x16xf32>
    %57 = arith.subf %53, %56 : vector<16x16xf32>
    %58 = math.exp %57 : vector<16x16xf32>
    %cst_35 = arith.constant dense<0.000000e+00> : vector<16xf32>
    %59 = vector.multi_reduction <add>, %58, %cst_35 [1] : vector<16x16xf32> to vector<16xf32>
    %60 = vector.shape_cast %59 : vector<16xf32> to vector<16x1xf32>
    %61 = tpu.reciprocal %60 {approx = true} : vector<16x1xf32> -> vector<16x1xf32>
    %62 = vector.broadcast %61 : vector<16x1xf32> to vector<16x16xf32>
    %63 = arith.mulf %58, %62 : vector<16x16xf32>
    %cst_36 = arith.constant dense<0.000000e+00> : vector<16x8xf32>
    %64 = tpu.matmul %63, %51, %cst_36 {dimension_numbers = #tpu.dot_dimension_numbers<[1], [0], [0], [1], [0, 0, 1, 1], [], []>} : vector<16x16xf32>, vector<16x8xf32>, vector<16x8xf32> -> vector<16x8xf32>
    %65 = vector.extract_strided_slice %40 {offsets = [0, 8], sizes = [16, 8], strides = [1, 1]} : vector<16x32xf32> to vector<16x8xf32>
    %66 = vector.extract_strided_slice %41 {offsets = [0, 8], sizes = [16, 8], strides = [1, 1]} : vector<16x32xf32> to vector<16x8xf32>
    %67 = vector.extract_strided_slice %42 {offsets = [0, 8], sizes = [16, 8], strides = [1, 1]} : vector<16x32xf32> to vector<16x8xf32>
    "tpu.trace_start"() <{level = 10 : i32, message = "qd,kd->qk"}> : () -> ()
    %cst_37 = arith.constant dense<0.000000e+00> : vector<16x16xf32>
    %68 = tpu.matmul %65, %66, %cst_37 {dimension_numbers = #tpu.dot_dimension_numbers<[1], [1], [0], [0], [0, 0, 1, 0], [], []>} : vector<16x8xf32>, vector<16x8xf32>, vector<16x16xf32> -> vector<16x16xf32>
    "tpu.trace_stop"() : () -> ()
    %69 = arith.addf %68, %35 : vector<16x16xf32>
    %cst_38 = arith.constant dense<0xFF800000> : vector<16xf32>
    %70 = vector.multi_reduction <maximumf>, %69, %cst_38 [1] : vector<16x16xf32> to vector<16xf32>
    %71 = vector.shape_cast %70 : vector<16xf32> to vector<16x1xf32>
    %72 = vector.broadcast %71 : vector<16x1xf32> to vector<16x16xf32>
    %73 = arith.subf %69, %72 : vector<16x16xf32>
    %74 = math.exp %73 : vector<16x16xf32>
    %cst_39 = arith.constant dense<0.000000e+00> : vector<16xf32>
    %75 = vector.multi_reduction <add>, %74, %cst_39 [1] : vector<16x16xf32> to vector<16xf32>
    %76 = vector.shape_cast %75 : vector<16xf32> to vector<16x1xf32>
    %77 = tpu.reciprocal %76 {approx = true} : vector<16x1xf32> -> vector<16x1xf32>
    %78 = vector.broadcast %77 : vector<16x1xf32> to vector<16x16xf32>
    %79 = arith.mulf %74, %78 : vector<16x16xf32>
    %cst_40 = arith.constant dense<0.000000e+00> : vector<16x8xf32>
    %80 = tpu.matmul %79, %67, %cst_40 {dimension_numbers = #tpu.dot_dimension_numbers<[1], [0], [0], [1], [0, 0, 1, 1], [], []>} : vector<16x16xf32>, vector<16x8xf32>, vector<16x8xf32> -> vector<16x8xf32>
    %81 = vector.extract_strided_slice %40 {offsets = [0, 16], sizes = [16, 8], strides = [1, 1]} : vector<16x32xf32> to vector<16x8xf32>
    %82 = vector.extract_strided_slice %41 {offsets = [0, 16], sizes = [16, 8], strides = [1, 1]} : vector<16x32xf32> to vector<16x8xf32>
    %83 = vector.extract_strided_slice %42 {offsets = [0, 16], sizes = [16, 8], strides = [1, 1]} : vector<16x32xf32> to vector<16x8xf32>
    "tpu.trace_start"() <{level = 10 : i32, message = "qd,kd->qk"}> : () -> ()
    %cst_41 = arith.constant dense<0.000000e+00> : vector<16x16xf32>
    %84 = tpu.matmul %81, %82, %cst_41 {dimension_numbers = #tpu.dot_dimension_numbers<[1], [1], [0], [0], [0, 0, 1, 0], [], []>} : vector<16x8xf32>, vector<16x8xf32>, vector<16x16xf32> -> vector<16x16xf32>
    "tpu.trace_stop"() : () -> ()
    %85 = arith.addf %84, %35 : vector<16x16xf32>
    %cst_42 = arith.constant dense<0xFF800000> : vector<16xf32>
    %86 = vector.multi_reduction <maximumf>, %85, %cst_42 [1] : vector<16x16xf32> to vector<16xf32>
    %87 = vector.shape_cast %86 : vector<16xf32> to vector<16x1xf32>
    %88 = vector.broadcast %87 : vector<16x1xf32> to vector<16x16xf32>
    %89 = arith.subf %85, %88 : vector<16x16xf32>
    %90 = math.exp %89 : vector<16x16xf32>
    %cst_43 = arith.constant dense<0.000000e+00> : vector<16xf32>
    %91 = vector.multi_reduction <add>, %90, %cst_43 [1] : vector<16x16xf32> to vector<16xf32>
    %92 = vector.shape_cast %91 : vector<16xf32> to vector<16x1xf32>
    %93 = tpu.reciprocal %92 {approx = true} : vector<16x1xf32> -> vector<16x1xf32>
    %94 = vector.broadcast %93 : vector<16x1xf32> to vector<16x16xf32>
    %95 = arith.mulf %90, %94 : vector<16x16xf32>
    %cst_44 = arith.constant dense<0.000000e+00> : vector<16x8xf32>
    %96 = tpu.matmul %95, %83, %cst_44 {dimension_numbers = #tpu.dot_dimension_numbers<[1], [0], [0], [1], [0, 0, 1, 1], [], []>} : vector<16x16xf32>, vector<16x8xf32>, vector<16x8xf32> -> vector<16x8xf32>
    %97 = vector.extract_strided_slice %40 {offsets = [0, 24], sizes = [16, 8], strides = [1, 1]} : vector<16x32xf32> to vector<16x8xf32>
    %98 = vector.extract_strided_slice %41 {offsets = [0, 24], sizes = [16, 8], strides = [1, 1]} : vector<16x32xf32> to vector<16x8xf32>
    %99 = vector.extract_strided_slice %42 {offsets = [0, 24], sizes = [16, 8], strides = [1, 1]} : vector<16x32xf32> to vector<16x8xf32>
    "tpu.trace_start"() <{level = 10 : i32, message = "qd,kd->qk"}> : () -> ()
    %cst_45 = arith.constant dense<0.000000e+00> : vector<16x16xf32>
    %100 = tpu.matmul %97, %98, %cst_45 {dimension_numbers = #tpu.dot_dimension_numbers<[1], [1], [0], [0], [0, 0, 1, 0], [], []>} : vector<16x8xf32>, vector<16x8xf32>, vector<16x16xf32> -> vector<16x16xf32>
    "tpu.trace_stop"() : () -> ()
    %101 = arith.addf %100, %35 : vector<16x16xf32>
    %cst_46 = arith.constant dense<0xFF800000> : vector<16xf32>
    %102 = vector.multi_reduction <maximumf>, %101, %cst_46 [1] : vector<16x16xf32> to vector<16xf32>
    %103 = vector.shape_cast %102 : vector<16xf32> to vector<16x1xf32>
    %104 = vector.broadcast %103 : vector<16x1xf32> to vector<16x16xf32>
    %105 = arith.subf %101, %104 : vector<16x16xf32>
    %106 = math.exp %105 : vector<16x16xf32>
    %cst_47 = arith.constant dense<0.000000e+00> : vector<16xf32>
    %107 = vector.multi_reduction <add>, %106, %cst_47 [1] : vector<16x16xf32> to vector<16xf32>
    %108 = vector.shape_cast %107 : vector<16xf32> to vector<16x1xf32>
    %109 = tpu.reciprocal %108 {approx = true} : vector<16x1xf32> -> vector<16x1xf32>
    %110 = vector.broadcast %109 : vector<16x1xf32> to vector<16x16xf32>
    %111 = arith.mulf %106, %110 : vector<16x16xf32>
    %cst_48 = arith.constant dense<0.000000e+00> : vector<16x8xf32>
    %112 = tpu.matmul %111, %99, %cst_48 {dimension_numbers = #tpu.dot_dimension_numbers<[1], [0], [0], [1], [0, 0, 1, 1], [], []>} : vector<16x16xf32>, vector<16x8xf32>, vector<16x8xf32> -> vector<16x8xf32>
    %113 = tpu.concatenate %64, %80, %96, %112 in 1 : vector<16x8xf32>, vector<16x8xf32>, vector<16x8xf32>, vector<16x8xf32> -> vector<16x32xf32>
    %cst_49 = arith.constant dense<0.000000e+00> : vector<16x32xf32>
    %114 = tpu.matmul %113, %44, %cst_49 {dimension_numbers = #tpu.dot_dimension_numbers<[1], [0], [0], [1], [0, 0, 1, 1], [], []>} : vector<16x32xf32>, vector<32x32xf32>, vector<16x32xf32> -> vector<16x32xf32>
    %115 = arith.addf %114, %33 : vector<16x32xf32>
    %cst_50 = arith.constant dense<0.000000e+00> : vector<16xf32>
    %116 = vector.multi_reduction <add>, %115, %cst_50 [1] : vector<16x32xf32> to vector<16xf32>
    %117 = vector.shape_cast %116 : vector<16xf32> to vector<16x1xf32>
    %cst_51 = arith.constant 3.200000e+01 : f32
    %118 = vector.broadcast %cst_51 : f32 to vector<16x1xf32>
    %119 = arith.divf %117, %118 : vector<16x1xf32>
    %120 = vector.broadcast %119 : vector<16x1xf32> to vector<16x32xf32>
    %121 = arith.subf %115, %120 : vector<16x32xf32>
    %122 = arith.mulf %121, %121 : vector<16x32xf32>
    %cst_52 = arith.constant dense<0.000000e+00> : vector<16xf32>
    %123 = vector.multi_reduction <add>, %122, %cst_52 [1] : vector<16x32xf32> to vector<16xf32>
    %124 = vector.shape_cast %123 : vector<16xf32> to vector<16x1xf32>
    %cst_53 = arith.constant 3.200000e+01 : f32
    %125 = vector.broadcast %cst_53 : f32 to vector<16x1xf32>
    %126 = arith.divf %124, %125 : vector<16x1xf32>
    %127 = vector.broadcast %119 : vector<16x1xf32> to vector<16x32xf32>
    %128 = arith.subf %115, %127 : vector<16x32xf32>
    %cst_54 = arith.constant 9.99999997E-7 : f32
    %129 = vector.broadcast %cst_54 : f32 to vector<16x1xf32>
    %130 = arith.addf %126, %129 : vector<16x1xf32>
    %131 = math.rsqrt %130 : vector<16x1xf32>
    %132 = vector.broadcast %131 : vector<16x1xf32> to vector<16x32xf32>
    %133 = arith.mulf %128, %132 : vector<16x32xf32>
    %134 = vector.broadcast %46 : vector<1x32xf32> to vector<16x32xf32>
    %135 = arith.mulf %133, %134 : vector<16x32xf32>
    %136 = vector.broadcast %48 : vector<1x32xf32> to vector<16x32xf32>
    %137 = arith.addf %135, %136 : vector<16x32xf32>
    %c0_55 = arith.constant 0 : index
    %c0_56 = arith.constant 0 : index
    %c0_57 = arith.constant 0 : index
    %138 = vector.load %arg12[%c0_55, %c0_56, %c0_57] : memref<2x32x32xf32, #tpu.memory_space<vmem>>, vector<1x32x32xf32>
    %139 = vector.shape_cast %138 : vector<1x32x32xf32> to vector<32x32xf32>
    %cst_58 = arith.constant dense<0.000000e+00> : vector<16x32xf32>
    %140 = tpu.matmul %137, %139, %cst_58 {dimension_numbers = #tpu.dot_dimension_numbers<[1], [0], [0], [1], [0, 0, 1, 1], [], []>} : vector<16x32xf32>, vector<32x32xf32>, vector<16x32xf32> -> vector<16x32xf32>
    %c0_59 = arith.constant 0 : index
    %c0_60 = arith.constant 0 : index
    %c0_61 = arith.constant 0 : index
    %141 = vector.load %arg13[%c0_59, %c0_60, %c0_61] : memref<2x32x64xf32, #tpu.memory_space<vmem>>, vector<1x32x64xf32>
    %142 = vector.shape_cast %141 : vector<1x32x64xf32> to vector<32x64xf32>
    %cst_62 = arith.constant dense<0.000000e+00> : vector<16x64xf32>
    %143 = tpu.matmul %34, %142, %cst_62 {dimension_numbers = #tpu.dot_dimension_numbers<[1], [0], [0], [1], [0, 0, 1, 1], [], []>} : vector<16x32xf32>, vector<32x64xf32>, vector<16x64xf32> -> vector<16x64xf32>
    %144 = vector.extract_strided_slice %143 {offsets = [0, 0], sizes = [16, 32], strides = [1, 1]} : vector<16x64xf32> to vector<16x32xf32>
    %145 = vector.extract_strided_slice %143 {offsets = [0, 32], sizes = [16, 32], strides = [1, 1]} : vector<16x64xf32> to vector<16x32xf32>
    %c0_63 = arith.constant 0 : index
    %c0_64 = arith.constant 0 : index
    %c0_65 = arith.constant 0 : index
    %146 = vector.load %arg14[%c0_63, %c0_64, %c0_65] : memref<2x32x32xf32, #tpu.memory_space<vmem>>, vector<1x32x32xf32>
    %147 = vector.shape_cast %146 : vector<1x32x32xf32> to vector<32x32xf32>
    %c0_66 = arith.constant 0 : index
    %c0_67 = arith.constant 0 : index
    %c0_68 = arith.constant 0 : index
    %148 = vector.load %arg15[%c0_66, %c0_67, %c0_68] : memref<2x1x32xf32, #tpu.memory_space<vmem>>, vector<1x1x32xf32>
    %149 = vector.shape_cast %148 : vector<1x1x32xf32> to vector<1x32xf32>
    %c0_69 = arith.constant 0 : index
    %c0_70 = arith.constant 0 : index
    %c0_71 = arith.constant 0 : index
    %150 = vector.load %arg16[%c0_69, %c0_70, %c0_71] : memref<2x1x32xf32, #tpu.memory_space<vmem>>, vector<1x1x32xf32>
    %151 = vector.shape_cast %150 : vector<1x1x32xf32> to vector<1x32xf32>
    %152 = vector.extract_strided_slice %140 {offsets = [0, 0], sizes = [16, 8], strides = [1, 1]} : vector<16x32xf32> to vector<16x8xf32>
    %153 = vector.extract_strided_slice %144 {offsets = [0, 0], sizes = [16, 8], strides = [1, 1]} : vector<16x32xf32> to vector<16x8xf32>
    %154 = vector.extract_strided_slice %145 {offsets = [0, 0], sizes = [16, 8], strides = [1, 1]} : vector<16x32xf32> to vector<16x8xf32>
    "tpu.trace_start"() <{level = 10 : i32, message = "qd,kd->qk"}> : () -> ()
    %cst_72 = arith.constant dense<0.000000e+00> : vector<16x16xf32>
    %155 = tpu.matmul %152, %153, %cst_72 {dimension_numbers = #tpu.dot_dimension_numbers<[1], [1], [0], [0], [0, 0, 1, 0], [], []>} : vector<16x8xf32>, vector<16x8xf32>, vector<16x16xf32> -> vector<16x16xf32>
    "tpu.trace_stop"() : () -> ()
    %156 = arith.addf %155, %36 : vector<16x16xf32>
    %cst_73 = arith.constant dense<0xFF800000> : vector<16xf32>
    %157 = vector.multi_reduction <maximumf>, %156, %cst_73 [1] : vector<16x16xf32> to vector<16xf32>
    %158 = vector.shape_cast %157 : vector<16xf32> to vector<16x1xf32>
    %159 = vector.broadcast %158 : vector<16x1xf32> to vector<16x16xf32>
    %160 = arith.subf %156, %159 : vector<16x16xf32>
    %161 = math.exp %160 : vector<16x16xf32>
    %cst_74 = arith.constant dense<0.000000e+00> : vector<16xf32>
    %162 = vector.multi_reduction <add>, %161, %cst_74 [1] : vector<16x16xf32> to vector<16xf32>
    %163 = vector.shape_cast %162 : vector<16xf32> to vector<16x1xf32>
    %164 = tpu.reciprocal %163 {approx = true} : vector<16x1xf32> -> vector<16x1xf32>
    %165 = vector.broadcast %164 : vector<16x1xf32> to vector<16x16xf32>
    %166 = arith.mulf %161, %165 : vector<16x16xf32>
    %cst_75 = arith.constant dense<0.000000e+00> : vector<16x8xf32>
    %167 = tpu.matmul %166, %154, %cst_75 {dimension_numbers = #tpu.dot_dimension_numbers<[1], [0], [0], [1], [0, 0, 1, 1], [], []>} : vector<16x16xf32>, vector<16x8xf32>, vector<16x8xf32> -> vector<16x8xf32>
    %168 = vector.extract_strided_slice %140 {offsets = [0, 8], sizes = [16, 8], strides = [1, 1]} : vector<16x32xf32> to vector<16x8xf32>
    %169 = vector.extract_strided_slice %144 {offsets = [0, 8], sizes = [16, 8], strides = [1, 1]} : vector<16x32xf32> to vector<16x8xf32>
    %170 = vector.extract_strided_slice %145 {offsets = [0, 8], sizes = [16, 8], strides = [1, 1]} : vector<16x32xf32> to vector<16x8xf32>
    "tpu.trace_start"() <{level = 10 : i32, message = "qd,kd->qk"}> : () -> ()
    %cst_76 = arith.constant dense<0.000000e+00> : vector<16x16xf32>
    %171 = tpu.matmul %168, %169, %cst_76 {dimension_numbers = #tpu.dot_dimension_numbers<[1], [1], [0], [0], [0, 0, 1, 0], [], []>} : vector<16x8xf32>, vector<16x8xf32>, vector<16x16xf32> -> vector<16x16xf32>
    "tpu.trace_stop"() : () -> ()
    %172 = arith.addf %171, %36 : vector<16x16xf32>
    %cst_77 = arith.constant dense<0xFF800000> : vector<16xf32>
    %173 = vector.multi_reduction <maximumf>, %172, %cst_77 [1] : vector<16x16xf32> to vector<16xf32>
    %174 = vector.shape_cast %173 : vector<16xf32> to vector<16x1xf32>
    %175 = vector.broadcast %174 : vector<16x1xf32> to vector<16x16xf32>
    %176 = arith.subf %172, %175 : vector<16x16xf32>
    %177 = math.exp %176 : vector<16x16xf32>
    %cst_78 = arith.constant dense<0.000000e+00> : vector<16xf32>
    %178 = vector.multi_reduction <add>, %177, %cst_78 [1] : vector<16x16xf32> to vector<16xf32>
    %179 = vector.shape_cast %178 : vector<16xf32> to vector<16x1xf32>
    %180 = tpu.reciprocal %179 {approx = true} : vector<16x1xf32> -> vector<16x1xf32>
    %181 = vector.broadcast %180 : vector<16x1xf32> to vector<16x16xf32>
    %182 = arith.mulf %177, %181 : vector<16x16xf32>
    %cst_79 = arith.constant dense<0.000000e+00> : vector<16x8xf32>
    %183 = tpu.matmul %182, %170, %cst_79 {dimension_numbers = #tpu.dot_dimension_numbers<[1], [0], [0], [1], [0, 0, 1, 1], [], []>} : vector<16x16xf32>, vector<16x8xf32>, vector<16x8xf32> -> vector<16x8xf32>
    %184 = vector.extract_strided_slice %140 {offsets = [0, 16], sizes = [16, 8], strides = [1, 1]} : vector<16x32xf32> to vector<16x8xf32>
    %185 = vector.extract_strided_slice %144 {offsets = [0, 16], sizes = [16, 8], strides = [1, 1]} : vector<16x32xf32> to vector<16x8xf32>
    %186 = vector.extract_strided_slice %145 {offsets = [0, 16], sizes = [16, 8], strides = [1, 1]} : vector<16x32xf32> to vector<16x8xf32>
    "tpu.trace_start"() <{level = 10 : i32, message = "qd,kd->qk"}> : () -> ()
    %cst_80 = arith.constant dense<0.000000e+00> : vector<16x16xf32>
    %187 = tpu.matmul %184, %185, %cst_80 {dimension_numbers = #tpu.dot_dimension_numbers<[1], [1], [0], [0], [0, 0, 1, 0], [], []>} : vector<16x8xf32>, vector<16x8xf32>, vector<16x16xf32> -> vector<16x16xf32>
    "tpu.trace_stop"() : () -> ()
    %188 = arith.addf %187, %36 : vector<16x16xf32>
    %cst_81 = arith.constant dense<0xFF800000> : vector<16xf32>
    %189 = vector.multi_reduction <maximumf>, %188, %cst_81 [1] : vector<16x16xf32> to vector<16xf32>
    %190 = vector.shape_cast %189 : vector<16xf32> to vector<16x1xf32>
    %191 = vector.broadcast %190 : vector<16x1xf32> to vector<16x16xf32>
    %192 = arith.subf %188, %191 : vector<16x16xf32>
    %193 = math.exp %192 : vector<16x16xf32>
    %cst_82 = arith.constant dense<0.000000e+00> : vector<16xf32>
    %194 = vector.multi_reduction <add>, %193, %cst_82 [1] : vector<16x16xf32> to vector<16xf32>
    %195 = vector.shape_cast %194 : vector<16xf32> to vector<16x1xf32>
    %196 = tpu.reciprocal %195 {approx = true} : vector<16x1xf32> -> vector<16x1xf32>
    %197 = vector.broadcast %196 : vector<16x1xf32> to vector<16x16xf32>
    %198 = arith.mulf %193, %197 : vector<16x16xf32>
    %cst_83 = arith.constant dense<0.000000e+00> : vector<16x8xf32>
    %199 = tpu.matmul %198, %186, %cst_83 {dimension_numbers = #tpu.dot_dimension_numbers<[1], [0], [0], [1], [0, 0, 1, 1], [], []>} : vector<16x16xf32>, vector<16x8xf32>, vector<16x8xf32> -> vector<16x8xf32>
    %200 = vector.extract_strided_slice %140 {offsets = [0, 24], sizes = [16, 8], strides = [1, 1]} : vector<16x32xf32> to vector<16x8xf32>
    %201 = vector.extract_strided_slice %144 {offsets = [0, 24], sizes = [16, 8], strides = [1, 1]} : vector<16x32xf32> to vector<16x8xf32>
    %202 = vector.extract_strided_slice %145 {offsets = [0, 24], sizes = [16, 8], strides = [1, 1]} : vector<16x32xf32> to vector<16x8xf32>
    "tpu.trace_start"() <{level = 10 : i32, message = "qd,kd->qk"}> : () -> ()
    %cst_84 = arith.constant dense<0.000000e+00> : vector<16x16xf32>
    %203 = tpu.matmul %200, %201, %cst_84 {dimension_numbers = #tpu.dot_dimension_numbers<[1], [1], [0], [0], [0, 0, 1, 0], [], []>} : vector<16x8xf32>, vector<16x8xf32>, vector<16x16xf32> -> vector<16x16xf32>
    "tpu.trace_stop"() : () -> ()
    %204 = arith.addf %203, %36 : vector<16x16xf32>
    %cst_85 = arith.constant dense<0xFF800000> : vector<16xf32>
    %205 = vector.multi_reduction <maximumf>, %204, %cst_85 [1] : vector<16x16xf32> to vector<16xf32>
    %206 = vector.shape_cast %205 : vector<16xf32> to vector<16x1xf32>
    %207 = vector.broadcast %206 : vector<16x1xf32> to vector<16x16xf32>
    %208 = arith.subf %204, %207 : vector<16x16xf32>
    %209 = math.exp %208 : vector<16x16xf32>
    %cst_86 = arith.constant dense<0.000000e+00> : vector<16xf32>
    %210 = vector.multi_reduction <add>, %209, %cst_86 [1] : vector<16x16xf32> to vector<16xf32>
    %211 = vector.shape_cast %210 : vector<16xf32> to vector<16x1xf32>
    %212 = tpu.reciprocal %211 {approx = true} : vector<16x1xf32> -> vector<16x1xf32>
    %213 = vector.broadcast %212 : vector<16x1xf32> to vector<16x16xf32>
    %214 = arith.mulf %209, %213 : vector<16x16xf32>
    %cst_87 = arith.constant dense<0.000000e+00> : vector<16x8xf32>
    %215 = tpu.matmul %214, %202, %cst_87 {dimension_numbers = #tpu.dot_dimension_numbers<[1], [0], [0], [1], [0, 0, 1, 1], [], []>} : vector<16x16xf32>, vector<16x8xf32>, vector<16x8xf32> -> vector<16x8xf32>
    %216 = tpu.concatenate %167, %183, %199, %215 in 1 : vector<16x8xf32>, vector<16x8xf32>, vector<16x8xf32>, vector<16x8xf32> -> vector<16x32xf32>
    %cst_88 = arith.constant dense<0.000000e+00> : vector<16x32xf32>
    %217 = tpu.matmul %216, %147, %cst_88 {dimension_numbers = #tpu.dot_dimension_numbers<[1], [0], [0], [1], [0, 0, 1, 1], [], []>} : vector<16x32xf32>, vector<32x32xf32>, vector<16x32xf32> -> vector<16x32xf32>
    %218 = arith.addf %217, %137 : vector<16x32xf32>
    %cst_89 = arith.constant dense<0.000000e+00> : vector<16xf32>
    %219 = vector.multi_reduction <add>, %218, %cst_89 [1] : vector<16x32xf32> to vector<16xf32>
    %220 = vector.shape_cast %219 : vector<16xf32> to vector<16x1xf32>
    %cst_90 = arith.constant 3.200000e+01 : f32
    %221 = vector.broadcast %cst_90 : f32 to vector<16x1xf32>
    %222 = arith.divf %220, %221 : vector<16x1xf32>
    %223 = vector.broadcast %222 : vector<16x1xf32> to vector<16x32xf32>
    %224 = arith.subf %218, %223 : vector<16x32xf32>
    %225 = arith.mulf %224, %224 : vector<16x32xf32>
    %cst_91 = arith.constant dense<0.000000e+00> : vector<16xf32>
    %226 = vector.multi_reduction <add>, %225, %cst_91 [1] : vector<16x32xf32> to vector<16xf32>
    %227 = vector.shape_cast %226 : vector<16xf32> to vector<16x1xf32>
    %cst_92 = arith.constant 3.200000e+01 : f32
    %228 = vector.broadcast %cst_92 : f32 to vector<16x1xf32>
    %229 = arith.divf %227, %228 : vector<16x1xf32>
    %230 = vector.broadcast %222 : vector<16x1xf32> to vector<16x32xf32>
    %231 = arith.subf %218, %230 : vector<16x32xf32>
    %cst_93 = arith.constant 9.99999997E-7 : f32
    %232 = vector.broadcast %cst_93 : f32 to vector<16x1xf32>
    %233 = arith.addf %229, %232 : vector<16x1xf32>
    %234 = math.rsqrt %233 : vector<16x1xf32>
    %235 = vector.broadcast %234 : vector<16x1xf32> to vector<16x32xf32>
    %236 = arith.mulf %231, %235 : vector<16x32xf32>
    %237 = vector.broadcast %149 : vector<1x32xf32> to vector<16x32xf32>
    %238 = arith.mulf %236, %237 : vector<16x32xf32>
    %239 = vector.broadcast %151 : vector<1x32xf32> to vector<16x32xf32>
    %240 = arith.addf %238, %239 : vector<16x32xf32>
    %c0_94 = arith.constant 0 : index
    %c0_95 = arith.constant 0 : index
    %c0_96 = arith.constant 0 : index
    %241 = vector.load %arg17[%c0_94, %c0_95, %c0_96] : memref<2x32x64xf32, #tpu.memory_space<vmem>>, vector<1x32x64xf32>
    %242 = vector.shape_cast %241 : vector<1x32x64xf32> to vector<32x64xf32>
    %cst_97 = arith.constant dense<0.000000e+00> : vector<16x64xf32>
    %243 = tpu.matmul %240, %242, %cst_97 {dimension_numbers = #tpu.dot_dimension_numbers<[1], [0], [0], [1], [0, 0, 1, 1], [], []>} : vector<16x32xf32>, vector<32x64xf32>, vector<16x64xf32> -> vector<16x64xf32>
    %c0_98 = arith.constant 0 : index
    %c0_99 = arith.constant 0 : index
    %c0_100 = arith.constant 0 : index
    %244 = vector.load %arg18[%c0_98, %c0_99, %c0_100] : memref<2x1x64xf32, #tpu.memory_space<vmem>>, vector<1x1x64xf32>
    %245 = vector.shape_cast %244 : vector<1x1x64xf32> to vector<1x64xf32>
    %246 = vector.broadcast %245 : vector<1x64xf32> to vector<16x64xf32>
    %247 = arith.addf %243, %246 : vector<16x64xf32>
    %cst_101 = arith.constant 0.000000e+00 : f32
    %248 = vector.broadcast %cst_101 : f32 to vector<16x64xf32>
    %249 = arith.maximumf %247, %248 : vector<16x64xf32>
    %c0_102 = arith.constant 0 : index
    %c0_103 = arith.constant 0 : index
    %c0_104 = arith.constant 0 : index
    %250 = vector.load %arg19[%c0_102, %c0_103, %c0_104] : memref<2x64x32xf32, #tpu.memory_space<vmem>>, vector<1x64x32xf32>
    %251 = vector.shape_cast %250 : vector<1x64x32xf32> to vector<64x32xf32>
    %cst_105 = arith.constant dense<0.000000e+00> : vector<16x32xf32>
    %252 = tpu.matmul %249, %251, %cst_105 {dimension_numbers = #tpu.dot_dimension_numbers<[1], [0], [0], [1], [0, 0, 1, 1], [], []>} : vector<16x64xf32>, vector<64x32xf32>, vector<16x32xf32> -> vector<16x32xf32>
    %c0_106 = arith.constant 0 : index
    %c0_107 = arith.constant 0 : index
    %c0_108 = arith.constant 0 : index
    %253 = vector.load %arg20[%c0_106, %c0_107, %c0_108] : memref<2x1x32xf32, #tpu.memory_space<vmem>>, vector<1x1x32xf32>
    %254 = vector.shape_cast %253 : vector<1x1x32xf32> to vector<1x32xf32>
    %255 = vector.broadcast %254 : vector<1x32xf32> to vector<16x32xf32>
    %256 = arith.addf %252, %255 : vector<16x32xf32>
    %257 = arith.addf %256, %240 : vector<16x32xf32>
    %c0_109 = arith.constant 0 : index
    %c0_110 = arith.constant 0 : index
    %c0_111 = arith.constant 0 : index
    %258 = vector.load %arg21[%c0_109, %c0_110, %c0_111] : memref<2x1x32xf32, #tpu.memory_space<vmem>>, vector<1x1x32xf32>
    %259 = vector.shape_cast %258 : vector<1x1x32xf32> to vector<1x32xf32>
    %c0_112 = arith.constant 0 : index
    %c0_113 = arith.constant 0 : index
    %c0_114 = arith.constant 0 : index
    %260 = vector.load %arg22[%c0_112, %c0_113, %c0_114] : memref<2x1x32xf32, #tpu.memory_space<vmem>>, vector<1x1x32xf32>
    %261 = vector.shape_cast %260 : vector<1x1x32xf32> to vector<1x32xf32>
    %cst_115 = arith.constant dense<0.000000e+00> : vector<16xf32>
    %262 = vector.multi_reduction <add>, %257, %cst_115 [1] : vector<16x32xf32> to vector<16xf32>
    %263 = vector.shape_cast %262 : vector<16xf32> to vector<16x1xf32>
    %cst_116 = arith.constant 3.200000e+01 : f32
    %264 = vector.broadcast %cst_116 : f32 to vector<16x1xf32>
    %265 = arith.divf %263, %264 : vector<16x1xf32>
    %266 = vector.broadcast %265 : vector<16x1xf32> to vector<16x32xf32>
    %267 = arith.subf %257, %266 : vector<16x32xf32>
    %268 = arith.mulf %267, %267 : vector<16x32xf32>
    %cst_117 = arith.constant dense<0.000000e+00> : vector<16xf32>
    %269 = vector.multi_reduction <add>, %268, %cst_117 [1] : vector<16x32xf32> to vector<16xf32>
    %270 = vector.shape_cast %269 : vector<16xf32> to vector<16x1xf32>
    %cst_118 = arith.constant 3.200000e+01 : f32
    %271 = vector.broadcast %cst_118 : f32 to vector<16x1xf32>
    %272 = arith.divf %270, %271 : vector<16x1xf32>
    %273 = vector.broadcast %265 : vector<16x1xf32> to vector<16x32xf32>
    %274 = arith.subf %257, %273 : vector<16x32xf32>
    %cst_119 = arith.constant 9.99999997E-7 : f32
    %275 = vector.broadcast %cst_119 : f32 to vector<16x1xf32>
    %276 = arith.addf %272, %275 : vector<16x1xf32>
    %277 = math.rsqrt %276 : vector<16x1xf32>
    %278 = vector.broadcast %277 : vector<16x1xf32> to vector<16x32xf32>
    %279 = arith.mulf %274, %278 : vector<16x32xf32>
    %280 = vector.broadcast %259 : vector<1x32xf32> to vector<16x32xf32>
    %281 = arith.mulf %279, %280 : vector<16x32xf32>
    %282 = vector.broadcast %261 : vector<1x32xf32> to vector<16x32xf32>
    %283 = arith.addf %281, %282 : vector<16x32xf32>
    %c1 = arith.constant 1 : index
    %c0_120 = arith.constant 0 : index
    %c0_121 = arith.constant 0 : index
    %284 = vector.load %arg8[%c1, %c0_120, %c0_121] : memref<2x32x96xf32, #tpu.memory_space<vmem>>, vector<1x32x96xf32>
    %285 = vector.shape_cast %284 : vector<1x32x96xf32> to vector<32x96xf32>
    %cst_122 = arith.constant dense<0.000000e+00> : vector<16x96xf32>
    %286 = tpu.matmul %283, %285, %cst_122 {dimension_numbers = #tpu.dot_dimension_numbers<[1], [0], [0], [1], [0, 0, 1, 1], [], []>} : vector<16x32xf32>, vector<32x96xf32>, vector<16x96xf32> -> vector<16x96xf32>
    %287 = vector.extract_strided_slice %286 {offsets = [0, 0], sizes = [16, 32], strides = [1, 1]} : vector<16x96xf32> to vector<16x32xf32>
    %288 = vector.extract_strided_slice %286 {offsets = [0, 32], sizes = [16, 32], strides = [1, 1]} : vector<16x96xf32> to vector<16x32xf32>
    %289 = vector.extract_strided_slice %286 {offsets = [0, 64], sizes = [16, 32], strides = [1, 1]} : vector<16x96xf32> to vector<16x32xf32>
    %c1_123 = arith.constant 1 : index
    %c0_124 = arith.constant 0 : index
    %c0_125 = arith.constant 0 : index
    %290 = vector.load %arg9[%c1_123, %c0_124, %c0_125] : memref<2x32x32xf32, #tpu.memory_space<vmem>>, vector<1x32x32xf32>
    %291 = vector.shape_cast %290 : vector<1x32x32xf32> to vector<32x32xf32>
    %c1_126 = arith.constant 1 : index
    %c0_127 = arith.constant 0 : index
    %c0_128 = arith.constant 0 : index
    %292 = vector.load %arg10[%c1_126, %c0_127, %c0_128] : memref<2x1x32xf32, #tpu.memory_space<vmem>>, vector<1x1x32xf32>
    %293 = vector.shape_cast %292 : vector<1x1x32xf32> to vector<1x32xf32>
    %c1_129 = arith.constant 1 : index
    %c0_130 = arith.constant 0 : index
    %c0_131 = arith.constant 0 : index
    %294 = vector.load %arg11[%c1_129, %c0_130, %c0_131] : memref<2x1x32xf32, #tpu.memory_space<vmem>>, vector<1x1x32xf32>
    %295 = vector.shape_cast %294 : vector<1x1x32xf32> to vector<1x32xf32>
    %296 = vector.extract_strided_slice %287 {offsets = [0, 0], sizes = [16, 8], strides = [1, 1]} : vector<16x32xf32> to vector<16x8xf32>
    %297 = vector.extract_strided_slice %288 {offsets = [0, 0], sizes = [16, 8], strides = [1, 1]} : vector<16x32xf32> to vector<16x8xf32>
    %298 = vector.extract_strided_slice %289 {offsets = [0, 0], sizes = [16, 8], strides = [1, 1]} : vector<16x32xf32> to vector<16x8xf32>
    "tpu.trace_start"() <{level = 10 : i32, message = "qd,kd->qk"}> : () -> ()
    %cst_132 = arith.constant dense<0.000000e+00> : vector<16x16xf32>
    %299 = tpu.matmul %296, %297, %cst_132 {dimension_numbers = #tpu.dot_dimension_numbers<[1], [1], [0], [0], [0, 0, 1, 0], [], []>} : vector<16x8xf32>, vector<16x8xf32>, vector<16x16xf32> -> vector<16x16xf32>
    "tpu.trace_stop"() : () -> ()
    %300 = arith.addf %299, %35 : vector<16x16xf32>
    %cst_133 = arith.constant dense<0xFF800000> : vector<16xf32>
    %301 = vector.multi_reduction <maximumf>, %300, %cst_133 [1] : vector<16x16xf32> to vector<16xf32>
    %302 = vector.shape_cast %301 : vector<16xf32> to vector<16x1xf32>
    %303 = vector.broadcast %302 : vector<16x1xf32> to vector<16x16xf32>
    %304 = arith.subf %300, %303 : vector<16x16xf32>
    %305 = math.exp %304 : vector<16x16xf32>
    %cst_134 = arith.constant dense<0.000000e+00> : vector<16xf32>
    %306 = vector.multi_reduction <add>, %305, %cst_134 [1] : vector<16x16xf32> to vector<16xf32>
    %307 = vector.shape_cast %306 : vector<16xf32> to vector<16x1xf32>
    %308 = tpu.reciprocal %307 {approx = true} : vector<16x1xf32> -> vector<16x1xf32>
    %309 = vector.broadcast %308 : vector<16x1xf32> to vector<16x16xf32>
    %310 = arith.mulf %305, %309 : vector<16x16xf32>
    %cst_135 = arith.constant dense<0.000000e+00> : vector<16x8xf32>
    %311 = tpu.matmul %310, %298, %cst_135 {dimension_numbers = #tpu.dot_dimension_numbers<[1], [0], [0], [1], [0, 0, 1, 1], [], []>} : vector<16x16xf32>, vector<16x8xf32>, vector<16x8xf32> -> vector<16x8xf32>
    %312 = vector.extract_strided_slice %287 {offsets = [0, 8], sizes = [16, 8], strides = [1, 1]} : vector<16x32xf32> to vector<16x8xf32>
    %313 = vector.extract_strided_slice %288 {offsets = [0, 8], sizes = [16, 8], strides = [1, 1]} : vector<16x32xf32> to vector<16x8xf32>
    %314 = vector.extract_strided_slice %289 {offsets = [0, 8], sizes = [16, 8], strides = [1, 1]} : vector<16x32xf32> to vector<16x8xf32>
    "tpu.trace_start"() <{level = 10 : i32, message = "qd,kd->qk"}> : () -> ()
    %cst_136 = arith.constant dense<0.000000e+00> : vector<16x16xf32>
    %315 = tpu.matmul %312, %313, %cst_136 {dimension_numbers = #tpu.dot_dimension_numbers<[1], [1], [0], [0], [0, 0, 1, 0], [], []>} : vector<16x8xf32>, vector<16x8xf32>, vector<16x16xf32> -> vector<16x16xf32>
    "tpu.trace_stop"() : () -> ()
    %316 = arith.addf %315, %35 : vector<16x16xf32>
    %cst_137 = arith.constant dense<0xFF800000> : vector<16xf32>
    %317 = vector.multi_reduction <maximumf>, %316, %cst_137 [1] : vector<16x16xf32> to vector<16xf32>
    %318 = vector.shape_cast %317 : vector<16xf32> to vector<16x1xf32>
    %319 = vector.broadcast %318 : vector<16x1xf32> to vector<16x16xf32>
    %320 = arith.subf %316, %319 : vector<16x16xf32>
    %321 = math.exp %320 : vector<16x16xf32>
    %cst_138 = arith.constant dense<0.000000e+00> : vector<16xf32>
    %322 = vector.multi_reduction <add>, %321, %cst_138 [1] : vector<16x16xf32> to vector<16xf32>
    %323 = vector.shape_cast %322 : vector<16xf32> to vector<16x1xf32>
    %324 = tpu.reciprocal %323 {approx = true} : vector<16x1xf32> -> vector<16x1xf32>
    %325 = vector.broadcast %324 : vector<16x1xf32> to vector<16x16xf32>
    %326 = arith.mulf %321, %325 : vector<16x16xf32>
    %cst_139 = arith.constant dense<0.000000e+00> : vector<16x8xf32>
    %327 = tpu.matmul %326, %314, %cst_139 {dimension_numbers = #tpu.dot_dimension_numbers<[1], [0], [0], [1], [0, 0, 1, 1], [], []>} : vector<16x16xf32>, vector<16x8xf32>, vector<16x8xf32> -> vector<16x8xf32>
    %328 = vector.extract_strided_slice %287 {offsets = [0, 16], sizes = [16, 8], strides = [1, 1]} : vector<16x32xf32> to vector<16x8xf32>
    %329 = vector.extract_strided_slice %288 {offsets = [0, 16], sizes = [16, 8], strides = [1, 1]} : vector<16x32xf32> to vector<16x8xf32>
    %330 = vector.extract_strided_slice %289 {offsets = [0, 16], sizes = [16, 8], strides = [1, 1]} : vector<16x32xf32> to vector<16x8xf32>
    "tpu.trace_start"() <{level = 10 : i32, message = "qd,kd->qk"}> : () -> ()
    %cst_140 = arith.constant dense<0.000000e+00> : vector<16x16xf32>
    %331 = tpu.matmul %328, %329, %cst_140 {dimension_numbers = #tpu.dot_dimension_numbers<[1], [1], [0], [0], [0, 0, 1, 0], [], []>} : vector<16x8xf32>, vector<16x8xf32>, vector<16x16xf32> -> vector<16x16xf32>
    "tpu.trace_stop"() : () -> ()
    %332 = arith.addf %331, %35 : vector<16x16xf32>
    %cst_141 = arith.constant dense<0xFF800000> : vector<16xf32>
    %333 = vector.multi_reduction <maximumf>, %332, %cst_141 [1] : vector<16x16xf32> to vector<16xf32>
    %334 = vector.shape_cast %333 : vector<16xf32> to vector<16x1xf32>
    %335 = vector.broadcast %334 : vector<16x1xf32> to vector<16x16xf32>
    %336 = arith.subf %332, %335 : vector<16x16xf32>
    %337 = math.exp %336 : vector<16x16xf32>
    %cst_142 = arith.constant dense<0.000000e+00> : vector<16xf32>
    %338 = vector.multi_reduction <add>, %337, %cst_142 [1] : vector<16x16xf32> to vector<16xf32>
    %339 = vector.shape_cast %338 : vector<16xf32> to vector<16x1xf32>
    %340 = tpu.reciprocal %339 {approx = true} : vector<16x1xf32> -> vector<16x1xf32>
    %341 = vector.broadcast %340 : vector<16x1xf32> to vector<16x16xf32>
    %342 = arith.mulf %337, %341 : vector<16x16xf32>
    %cst_143 = arith.constant dense<0.000000e+00> : vector<16x8xf32>
    %343 = tpu.matmul %342, %330, %cst_143 {dimension_numbers = #tpu.dot_dimension_numbers<[1], [0], [0], [1], [0, 0, 1, 1], [], []>} : vector<16x16xf32>, vector<16x8xf32>, vector<16x8xf32> -> vector<16x8xf32>
    %344 = vector.extract_strided_slice %287 {offsets = [0, 24], sizes = [16, 8], strides = [1, 1]} : vector<16x32xf32> to vector<16x8xf32>
    %345 = vector.extract_strided_slice %288 {offsets = [0, 24], sizes = [16, 8], strides = [1, 1]} : vector<16x32xf32> to vector<16x8xf32>
    %346 = vector.extract_strided_slice %289 {offsets = [0, 24], sizes = [16, 8], strides = [1, 1]} : vector<16x32xf32> to vector<16x8xf32>
    "tpu.trace_start"() <{level = 10 : i32, message = "qd,kd->qk"}> : () -> ()
    %cst_144 = arith.constant dense<0.000000e+00> : vector<16x16xf32>
    %347 = tpu.matmul %344, %345, %cst_144 {dimension_numbers = #tpu.dot_dimension_numbers<[1], [1], [0], [0], [0, 0, 1, 0], [], []>} : vector<16x8xf32>, vector<16x8xf32>, vector<16x16xf32> -> vector<16x16xf32>
    "tpu.trace_stop"() : () -> ()
    %348 = arith.addf %347, %35 : vector<16x16xf32>
    %cst_145 = arith.constant dense<0xFF800000> : vector<16xf32>
    %349 = vector.multi_reduction <maximumf>, %348, %cst_145 [1] : vector<16x16xf32> to vector<16xf32>
    %350 = vector.shape_cast %349 : vector<16xf32> to vector<16x1xf32>
    %351 = vector.broadcast %350 : vector<16x1xf32> to vector<16x16xf32>
    %352 = arith.subf %348, %351 : vector<16x16xf32>
    %353 = math.exp %352 : vector<16x16xf32>
    %cst_146 = arith.constant dense<0.000000e+00> : vector<16xf32>
    %354 = vector.multi_reduction <add>, %353, %cst_146 [1] : vector<16x16xf32> to vector<16xf32>
    %355 = vector.shape_cast %354 : vector<16xf32> to vector<16x1xf32>
    %356 = tpu.reciprocal %355 {approx = true} : vector<16x1xf32> -> vector<16x1xf32>
    %357 = vector.broadcast %356 : vector<16x1xf32> to vector<16x16xf32>
    %358 = arith.mulf %353, %357 : vector<16x16xf32>
    %cst_147 = arith.constant dense<0.000000e+00> : vector<16x8xf32>
    %359 = tpu.matmul %358, %346, %cst_147 {dimension_numbers = #tpu.dot_dimension_numbers<[1], [0], [0], [1], [0, 0, 1, 1], [], []>} : vector<16x16xf32>, vector<16x8xf32>, vector<16x8xf32> -> vector<16x8xf32>
    %360 = tpu.concatenate %311, %327, %343, %359 in 1 : vector<16x8xf32>, vector<16x8xf32>, vector<16x8xf32>, vector<16x8xf32> -> vector<16x32xf32>
    %cst_148 = arith.constant dense<0.000000e+00> : vector<16x32xf32>
    %361 = tpu.matmul %360, %291, %cst_148 {dimension_numbers = #tpu.dot_dimension_numbers<[1], [0], [0], [1], [0, 0, 1, 1], [], []>} : vector<16x32xf32>, vector<32x32xf32>, vector<16x32xf32> -> vector<16x32xf32>
    %362 = arith.addf %361, %283 : vector<16x32xf32>
    %cst_149 = arith.constant dense<0.000000e+00> : vector<16xf32>
    %363 = vector.multi_reduction <add>, %362, %cst_149 [1] : vector<16x32xf32> to vector<16xf32>
    %364 = vector.shape_cast %363 : vector<16xf32> to vector<16x1xf32>
    %cst_150 = arith.constant 3.200000e+01 : f32
    %365 = vector.broadcast %cst_150 : f32 to vector<16x1xf32>
    %366 = arith.divf %364, %365 : vector<16x1xf32>
    %367 = vector.broadcast %366 : vector<16x1xf32> to vector<16x32xf32>
    %368 = arith.subf %362, %367 : vector<16x32xf32>
    %369 = arith.mulf %368, %368 : vector<16x32xf32>
    %cst_151 = arith.constant dense<0.000000e+00> : vector<16xf32>
    %370 = vector.multi_reduction <add>, %369, %cst_151 [1] : vector<16x32xf32> to vector<16xf32>
    %371 = vector.shape_cast %370 : vector<16xf32> to vector<16x1xf32>
    %cst_152 = arith.constant 3.200000e+01 : f32
    %372 = vector.broadcast %cst_152 : f32 to vector<16x1xf32>
    %373 = arith.divf %371, %372 : vector<16x1xf32>
    %374 = vector.broadcast %366 : vector<16x1xf32> to vector<16x32xf32>
    %375 = arith.subf %362, %374 : vector<16x32xf32>
    %cst_153 = arith.constant 9.99999997E-7 : f32
    %376 = vector.broadcast %cst_153 : f32 to vector<16x1xf32>
    %377 = arith.addf %373, %376 : vector<16x1xf32>
    %378 = math.rsqrt %377 : vector<16x1xf32>
    %379 = vector.broadcast %378 : vector<16x1xf32> to vector<16x32xf32>
    %380 = arith.mulf %375, %379 : vector<16x32xf32>
    %381 = vector.broadcast %293 : vector<1x32xf32> to vector<16x32xf32>
    %382 = arith.mulf %380, %381 : vector<16x32xf32>
    %383 = vector.broadcast %295 : vector<1x32xf32> to vector<16x32xf32>
    %384 = arith.addf %382, %383 : vector<16x32xf32>
    %c1_154 = arith.constant 1 : index
    %c0_155 = arith.constant 0 : index
    %c0_156 = arith.constant 0 : index
    %385 = vector.load %arg12[%c1_154, %c0_155, %c0_156] : memref<2x32x32xf32, #tpu.memory_space<vmem>>, vector<1x32x32xf32>
    %386 = vector.shape_cast %385 : vector<1x32x32xf32> to vector<32x32xf32>
    %cst_157 = arith.constant dense<0.000000e+00> : vector<16x32xf32>
    %387 = tpu.matmul %384, %386, %cst_157 {dimension_numbers = #tpu.dot_dimension_numbers<[1], [0], [0], [1], [0, 0, 1, 1], [], []>} : vector<16x32xf32>, vector<32x32xf32>, vector<16x32xf32> -> vector<16x32xf32>
    %c1_158 = arith.constant 1 : index
    %c0_159 = arith.constant 0 : index
    %c0_160 = arith.constant 0 : index
    %388 = vector.load %arg13[%c1_158, %c0_159, %c0_160] : memref<2x32x64xf32, #tpu.memory_space<vmem>>, vector<1x32x64xf32>
    %389 = vector.shape_cast %388 : vector<1x32x64xf32> to vector<32x64xf32>
    %cst_161 = arith.constant dense<0.000000e+00> : vector<16x64xf32>
    %390 = tpu.matmul %34, %389, %cst_161 {dimension_numbers = #tpu.dot_dimension_numbers<[1], [0], [0], [1], [0, 0, 1, 1], [], []>} : vector<16x32xf32>, vector<32x64xf32>, vector<16x64xf32> -> vector<16x64xf32>
    %391 = vector.extract_strided_slice %390 {offsets = [0, 0], sizes = [16, 32], strides = [1, 1]} : vector<16x64xf32> to vector<16x32xf32>
    %392 = vector.extract_strided_slice %390 {offsets = [0, 32], sizes = [16, 32], strides = [1, 1]} : vector<16x64xf32> to vector<16x32xf32>
    %c1_162 = arith.constant 1 : index
    %c0_163 = arith.constant 0 : index
    %c0_164 = arith.constant 0 : index
    %393 = vector.load %arg14[%c1_162, %c0_163, %c0_164] : memref<2x32x32xf32, #tpu.memory_space<vmem>>, vector<1x32x32xf32>
    %394 = vector.shape_cast %393 : vector<1x32x32xf32> to vector<32x32xf32>
    %c1_165 = arith.constant 1 : index
    %c0_166 = arith.constant 0 : index
    %c0_167 = arith.constant 0 : index
    %395 = vector.load %arg15[%c1_165, %c0_166, %c0_167] : memref<2x1x32xf32, #tpu.memory_space<vmem>>, vector<1x1x32xf32>
    %396 = vector.shape_cast %395 : vector<1x1x32xf32> to vector<1x32xf32>
    %c1_168 = arith.constant 1 : index
    %c0_169 = arith.constant 0 : index
    %c0_170 = arith.constant 0 : index
    %397 = vector.load %arg16[%c1_168, %c0_169, %c0_170] : memref<2x1x32xf32, #tpu.memory_space<vmem>>, vector<1x1x32xf32>
    %398 = vector.shape_cast %397 : vector<1x1x32xf32> to vector<1x32xf32>
    %399 = vector.extract_strided_slice %387 {offsets = [0, 0], sizes = [16, 8], strides = [1, 1]} : vector<16x32xf32> to vector<16x8xf32>
    %400 = vector.extract_strided_slice %391 {offsets = [0, 0], sizes = [16, 8], strides = [1, 1]} : vector<16x32xf32> to vector<16x8xf32>
    %401 = vector.extract_strided_slice %392 {offsets = [0, 0], sizes = [16, 8], strides = [1, 1]} : vector<16x32xf32> to vector<16x8xf32>
    "tpu.trace_start"() <{level = 10 : i32, message = "qd,kd->qk"}> : () -> ()
    %cst_171 = arith.constant dense<0.000000e+00> : vector<16x16xf32>
    %402 = tpu.matmul %399, %400, %cst_171 {dimension_numbers = #tpu.dot_dimension_numbers<[1], [1], [0], [0], [0, 0, 1, 0], [], []>} : vector<16x8xf32>, vector<16x8xf32>, vector<16x16xf32> -> vector<16x16xf32>
    "tpu.trace_stop"() : () -> ()
    %403 = arith.addf %402, %36 : vector<16x16xf32>
    %cst_172 = arith.constant dense<0xFF800000> : vector<16xf32>
    %404 = vector.multi_reduction <maximumf>, %403, %cst_172 [1] : vector<16x16xf32> to vector<16xf32>
    %405 = vector.shape_cast %404 : vector<16xf32> to vector<16x1xf32>
    %406 = vector.broadcast %405 : vector<16x1xf32> to vector<16x16xf32>
    %407 = arith.subf %403, %406 : vector<16x16xf32>
    %408 = math.exp %407 : vector<16x16xf32>
    %cst_173 = arith.constant dense<0.000000e+00> : vector<16xf32>
    %409 = vector.multi_reduction <add>, %408, %cst_173 [1] : vector<16x16xf32> to vector<16xf32>
    %410 = vector.shape_cast %409 : vector<16xf32> to vector<16x1xf32>
    %411 = tpu.reciprocal %410 {approx = true} : vector<16x1xf32> -> vector<16x1xf32>
    %412 = vector.broadcast %411 : vector<16x1xf32> to vector<16x16xf32>
    %413 = arith.mulf %408, %412 : vector<16x16xf32>
    %cst_174 = arith.constant dense<0.000000e+00> : vector<16x8xf32>
    %414 = tpu.matmul %413, %401, %cst_174 {dimension_numbers = #tpu.dot_dimension_numbers<[1], [0], [0], [1], [0, 0, 1, 1], [], []>} : vector<16x16xf32>, vector<16x8xf32>, vector<16x8xf32> -> vector<16x8xf32>
    %415 = vector.extract_strided_slice %387 {offsets = [0, 8], sizes = [16, 8], strides = [1, 1]} : vector<16x32xf32> to vector<16x8xf32>
    %416 = vector.extract_strided_slice %391 {offsets = [0, 8], sizes = [16, 8], strides = [1, 1]} : vector<16x32xf32> to vector<16x8xf32>
    %417 = vector.extract_strided_slice %392 {offsets = [0, 8], sizes = [16, 8], strides = [1, 1]} : vector<16x32xf32> to vector<16x8xf32>
    "tpu.trace_start"() <{level = 10 : i32, message = "qd,kd->qk"}> : () -> ()
    %cst_175 = arith.constant dense<0.000000e+00> : vector<16x16xf32>
    %418 = tpu.matmul %415, %416, %cst_175 {dimension_numbers = #tpu.dot_dimension_numbers<[1], [1], [0], [0], [0, 0, 1, 0], [], []>} : vector<16x8xf32>, vector<16x8xf32>, vector<16x16xf32> -> vector<16x16xf32>
    "tpu.trace_stop"() : () -> ()
    %419 = arith.addf %418, %36 : vector<16x16xf32>
    %cst_176 = arith.constant dense<0xFF800000> : vector<16xf32>
    %420 = vector.multi_reduction <maximumf>, %419, %cst_176 [1] : vector<16x16xf32> to vector<16xf32>
    %421 = vector.shape_cast %420 : vector<16xf32> to vector<16x1xf32>
    %422 = vector.broadcast %421 : vector<16x1xf32> to vector<16x16xf32>
    %423 = arith.subf %419, %422 : vector<16x16xf32>
    %424 = math.exp %423 : vector<16x16xf32>
    %cst_177 = arith.constant dense<0.000000e+00> : vector<16xf32>
    %425 = vector.multi_reduction <add>, %424, %cst_177 [1] : vector<16x16xf32> to vector<16xf32>
    %426 = vector.shape_cast %425 : vector<16xf32> to vector<16x1xf32>
    %427 = tpu.reciprocal %426 {approx = true} : vector<16x1xf32> -> vector<16x1xf32>
    %428 = vector.broadcast %427 : vector<16x1xf32> to vector<16x16xf32>
    %429 = arith.mulf %424, %428 : vector<16x16xf32>
    %cst_178 = arith.constant dense<0.000000e+00> : vector<16x8xf32>
    %430 = tpu.matmul %429, %417, %cst_178 {dimension_numbers = #tpu.dot_dimension_numbers<[1], [0], [0], [1], [0, 0, 1, 1], [], []>} : vector<16x16xf32>, vector<16x8xf32>, vector<16x8xf32> -> vector<16x8xf32>
    %431 = vector.extract_strided_slice %387 {offsets = [0, 16], sizes = [16, 8], strides = [1, 1]} : vector<16x32xf32> to vector<16x8xf32>
    %432 = vector.extract_strided_slice %391 {offsets = [0, 16], sizes = [16, 8], strides = [1, 1]} : vector<16x32xf32> to vector<16x8xf32>
    %433 = vector.extract_strided_slice %392 {offsets = [0, 16], sizes = [16, 8], strides = [1, 1]} : vector<16x32xf32> to vector<16x8xf32>
    "tpu.trace_start"() <{level = 10 : i32, message = "qd,kd->qk"}> : () -> ()
    %cst_179 = arith.constant dense<0.000000e+00> : vector<16x16xf32>
    %434 = tpu.matmul %431, %432, %cst_179 {dimension_numbers = #tpu.dot_dimension_numbers<[1], [1], [0], [0], [0, 0, 1, 0], [], []>} : vector<16x8xf32>, vector<16x8xf32>, vector<16x16xf32> -> vector<16x16xf32>
    "tpu.trace_stop"() : () -> ()
    %435 = arith.addf %434, %36 : vector<16x16xf32>
    %cst_180 = arith.constant dense<0xFF800000> : vector<16xf32>
    %436 = vector.multi_reduction <maximumf>, %435, %cst_180 [1] : vector<16x16xf32> to vector<16xf32>
    %437 = vector.shape_cast %436 : vector<16xf32> to vector<16x1xf32>
    %438 = vector.broadcast %437 : vector<16x1xf32> to vector<16x16xf32>
    %439 = arith.subf %435, %438 : vector<16x16xf32>
    %440 = math.exp %439 : vector<16x16xf32>
    %cst_181 = arith.constant dense<0.000000e+00> : vector<16xf32>
    %441 = vector.multi_reduction <add>, %440, %cst_181 [1] : vector<16x16xf32> to vector<16xf32>
    %442 = vector.shape_cast %441 : vector<16xf32> to vector<16x1xf32>
    %443 = tpu.reciprocal %442 {approx = true} : vector<16x1xf32> -> vector<16x1xf32>
    %444 = vector.broadcast %443 : vector<16x1xf32> to vector<16x16xf32>
    %445 = arith.mulf %440, %444 : vector<16x16xf32>
    %cst_182 = arith.constant dense<0.000000e+00> : vector<16x8xf32>
    %446 = tpu.matmul %445, %433, %cst_182 {dimension_numbers = #tpu.dot_dimension_numbers<[1], [0], [0], [1], [0, 0, 1, 1], [], []>} : vector<16x16xf32>, vector<16x8xf32>, vector<16x8xf32> -> vector<16x8xf32>
    %447 = vector.extract_strided_slice %387 {offsets = [0, 24], sizes = [16, 8], strides = [1, 1]} : vector<16x32xf32> to vector<16x8xf32>
    %448 = vector.extract_strided_slice %391 {offsets = [0, 24], sizes = [16, 8], strides = [1, 1]} : vector<16x32xf32> to vector<16x8xf32>
    %449 = vector.extract_strided_slice %392 {offsets = [0, 24], sizes = [16, 8], strides = [1, 1]} : vector<16x32xf32> to vector<16x8xf32>
    "tpu.trace_start"() <{level = 10 : i32, message = "qd,kd->qk"}> : () -> ()
    %cst_183 = arith.constant dense<0.000000e+00> : vector<16x16xf32>
    %450 = tpu.matmul %447, %448, %cst_183 {dimension_numbers = #tpu.dot_dimension_numbers<[1], [1], [0], [0], [0, 0, 1, 0], [], []>} : vector<16x8xf32>, vector<16x8xf32>, vector<16x16xf32> -> vector<16x16xf32>
    "tpu.trace_stop"() : () -> ()
    %451 = arith.addf %450, %36 : vector<16x16xf32>
    %cst_184 = arith.constant dense<0xFF800000> : vector<16xf32>
    %452 = vector.multi_reduction <maximumf>, %451, %cst_184 [1] : vector<16x16xf32> to vector<16xf32>
    %453 = vector.shape_cast %452 : vector<16xf32> to vector<16x1xf32>
    %454 = vector.broadcast %453 : vector<16x1xf32> to vector<16x16xf32>
    %455 = arith.subf %451, %454 : vector<16x16xf32>
    %456 = math.exp %455 : vector<16x16xf32>
    %cst_185 = arith.constant dense<0.000000e+00> : vector<16xf32>
    %457 = vector.multi_reduction <add>, %456, %cst_185 [1] : vector<16x16xf32> to vector<16xf32>
    %458 = vector.shape_cast %457 : vector<16xf32> to vector<16x1xf32>
    %459 = tpu.reciprocal %458 {approx = true} : vector<16x1xf32> -> vector<16x1xf32>
    %460 = vector.broadcast %459 : vector<16x1xf32> to vector<16x16xf32>
    %461 = arith.mulf %456, %460 : vector<16x16xf32>
    %cst_186 = arith.constant dense<0.000000e+00> : vector<16x8xf32>
    %462 = tpu.matmul %461, %449, %cst_186 {dimension_numbers = #tpu.dot_dimension_numbers<[1], [0], [0], [1], [0, 0, 1, 1], [], []>} : vector<16x16xf32>, vector<16x8xf32>, vector<16x8xf32> -> vector<16x8xf32>
    %463 = tpu.concatenate %414, %430, %446, %462 in 1 : vector<16x8xf32>, vector<16x8xf32>, vector<16x8xf32>, vector<16x8xf32> -> vector<16x32xf32>
    %cst_187 = arith.constant dense<0.000000e+00> : vector<16x32xf32>
    %464 = tpu.matmul %463, %394, %cst_187 {dimension_numbers = #tpu.dot_dimension_numbers<[1], [0], [0], [1], [0, 0, 1, 1], [], []>} : vector<16x32xf32>, vector<32x32xf32>, vector<16x32xf32> -> vector<16x32xf32>
    %465 = arith.addf %464, %384 : vector<16x32xf32>
    %cst_188 = arith.constant dense<0.000000e+00> : vector<16xf32>
    %466 = vector.multi_reduction <add>, %465, %cst_188 [1] : vector<16x32xf32> to vector<16xf32>
    %467 = vector.shape_cast %466 : vector<16xf32> to vector<16x1xf32>
    %cst_189 = arith.constant 3.200000e+01 : f32
    %468 = vector.broadcast %cst_189 : f32 to vector<16x1xf32>
    %469 = arith.divf %467, %468 : vector<16x1xf32>
    %470 = vector.broadcast %469 : vector<16x1xf32> to vector<16x32xf32>
    %471 = arith.subf %465, %470 : vector<16x32xf32>
    %472 = arith.mulf %471, %471 : vector<16x32xf32>
    %cst_190 = arith.constant dense<0.000000e+00> : vector<16xf32>
    %473 = vector.multi_reduction <add>, %472, %cst_190 [1] : vector<16x32xf32> to vector<16xf32>
    %474 = vector.shape_cast %473 : vector<16xf32> to vector<16x1xf32>
    %cst_191 = arith.constant 3.200000e+01 : f32
    %475 = vector.broadcast %cst_191 : f32 to vector<16x1xf32>
    %476 = arith.divf %474, %475 : vector<16x1xf32>
    %477 = vector.broadcast %469 : vector<16x1xf32> to vector<16x32xf32>
    %478 = arith.subf %465, %477 : vector<16x32xf32>
    %cst_192 = arith.constant 9.99999997E-7 : f32
    %479 = vector.broadcast %cst_192 : f32 to vector<16x1xf32>
    %480 = arith.addf %476, %479 : vector<16x1xf32>
    %481 = math.rsqrt %480 : vector<16x1xf32>
    %482 = vector.broadcast %481 : vector<16x1xf32> to vector<16x32xf32>
    %483 = arith.mulf %478, %482 : vector<16x32xf32>
    %484 = vector.broadcast %396 : vector<1x32xf32> to vector<16x32xf32>
    %485 = arith.mulf %483, %484 : vector<16x32xf32>
    %486 = vector.broadcast %398 : vector<1x32xf32> to vector<16x32xf32>
    %487 = arith.addf %485, %486 : vector<16x32xf32>
    %c1_193 = arith.constant 1 : index
    %c0_194 = arith.constant 0 : index
    %c0_195 = arith.constant 0 : index
    %488 = vector.load %arg17[%c1_193, %c0_194, %c0_195] : memref<2x32x64xf32, #tpu.memory_space<vmem>>, vector<1x32x64xf32>
    %489 = vector.shape_cast %488 : vector<1x32x64xf32> to vector<32x64xf32>
    %cst_196 = arith.constant dense<0.000000e+00> : vector<16x64xf32>
    %490 = tpu.matmul %487, %489, %cst_196 {dimension_numbers = #tpu.dot_dimension_numbers<[1], [0], [0], [1], [0, 0, 1, 1], [], []>} : vector<16x32xf32>, vector<32x64xf32>, vector<16x64xf32> -> vector<16x64xf32>
    %c1_197 = arith.constant 1 : index
    %c0_198 = arith.constant 0 : index
    %c0_199 = arith.constant 0 : index
    %491 = vector.load %arg18[%c1_197, %c0_198, %c0_199] : memref<2x1x64xf32, #tpu.memory_space<vmem>>, vector<1x1x64xf32>
    %492 = vector.shape_cast %491 : vector<1x1x64xf32> to vector<1x64xf32>
    %493 = vector.broadcast %492 : vector<1x64xf32> to vector<16x64xf32>
    %494 = arith.addf %490, %493 : vector<16x64xf32>
    %cst_200 = arith.constant 0.000000e+00 : f32
    %495 = vector.broadcast %cst_200 : f32 to vector<16x64xf32>
    %496 = arith.maximumf %494, %495 : vector<16x64xf32>
    %c1_201 = arith.constant 1 : index
    %c0_202 = arith.constant 0 : index
    %c0_203 = arith.constant 0 : index
    %497 = vector.load %arg19[%c1_201, %c0_202, %c0_203] : memref<2x64x32xf32, #tpu.memory_space<vmem>>, vector<1x64x32xf32>
    %498 = vector.shape_cast %497 : vector<1x64x32xf32> to vector<64x32xf32>
    %cst_204 = arith.constant dense<0.000000e+00> : vector<16x32xf32>
    %499 = tpu.matmul %496, %498, %cst_204 {dimension_numbers = #tpu.dot_dimension_numbers<[1], [0], [0], [1], [0, 0, 1, 1], [], []>} : vector<16x64xf32>, vector<64x32xf32>, vector<16x32xf32> -> vector<16x32xf32>
    %c1_205 = arith.constant 1 : index
    %c0_206 = arith.constant 0 : index
    %c0_207 = arith.constant 0 : index
    %500 = vector.load %arg20[%c1_205, %c0_206, %c0_207] : memref<2x1x32xf32, #tpu.memory_space<vmem>>, vector<1x1x32xf32>
    %501 = vector.shape_cast %500 : vector<1x1x32xf32> to vector<1x32xf32>
    %502 = vector.broadcast %501 : vector<1x32xf32> to vector<16x32xf32>
    %503 = arith.addf %499, %502 : vector<16x32xf32>
    %504 = arith.addf %503, %487 : vector<16x32xf32>
    %c1_208 = arith.constant 1 : index
    %c0_209 = arith.constant 0 : index
    %c0_210 = arith.constant 0 : index
    %505 = vector.load %arg21[%c1_208, %c0_209, %c0_210] : memref<2x1x32xf32, #tpu.memory_space<vmem>>, vector<1x1x32xf32>
    %506 = vector.shape_cast %505 : vector<1x1x32xf32> to vector<1x32xf32>
    %c1_211 = arith.constant 1 : index
    %c0_212 = arith.constant 0 : index
    %c0_213 = arith.constant 0 : index
    %507 = vector.load %arg22[%c1_211, %c0_212, %c0_213] : memref<2x1x32xf32, #tpu.memory_space<vmem>>, vector<1x1x32xf32>
    %508 = vector.shape_cast %507 : vector<1x1x32xf32> to vector<1x32xf32>
    %cst_214 = arith.constant dense<0.000000e+00> : vector<16xf32>
    %509 = vector.multi_reduction <add>, %504, %cst_214 [1] : vector<16x32xf32> to vector<16xf32>
    %510 = vector.shape_cast %509 : vector<16xf32> to vector<16x1xf32>
    %cst_215 = arith.constant 3.200000e+01 : f32
    %511 = vector.broadcast %cst_215 : f32 to vector<16x1xf32>
    %512 = arith.divf %510, %511 : vector<16x1xf32>
    %513 = vector.broadcast %512 : vector<16x1xf32> to vector<16x32xf32>
    %514 = arith.subf %504, %513 : vector<16x32xf32>
    %515 = arith.mulf %514, %514 : vector<16x32xf32>
    %cst_216 = arith.constant dense<0.000000e+00> : vector<16xf32>
    %516 = vector.multi_reduction <add>, %515, %cst_216 [1] : vector<16x32xf32> to vector<16xf32>
    %517 = vector.shape_cast %516 : vector<16xf32> to vector<16x1xf32>
    %cst_217 = arith.constant 3.200000e+01 : f32
    %518 = vector.broadcast %cst_217 : f32 to vector<16x1xf32>
    %519 = arith.divf %517, %518 : vector<16x1xf32>
    %520 = vector.broadcast %512 : vector<16x1xf32> to vector<16x32xf32>
    %521 = arith.subf %504, %520 : vector<16x32xf32>
    %cst_218 = arith.constant 9.99999997E-7 : f32
    %522 = vector.broadcast %cst_218 : f32 to vector<16x1xf32>
    %523 = arith.addf %519, %522 : vector<16x1xf32>
    %524 = math.rsqrt %523 : vector<16x1xf32>
    %525 = vector.broadcast %524 : vector<16x1xf32> to vector<16x32xf32>
    %526 = arith.mulf %521, %525 : vector<16x32xf32>
    %527 = vector.broadcast %506 : vector<1x32xf32> to vector<16x32xf32>
    %528 = arith.mulf %526, %527 : vector<16x32xf32>
    %529 = vector.broadcast %508 : vector<1x32xf32> to vector<16x32xf32>
    %530 = arith.addf %528, %529 : vector<16x32xf32>
    %c0_219 = arith.constant 0 : index
    %c0_220 = arith.constant 0 : index
    %531 = vector.load %arg23[%c0_219, %c0_220] : memref<16x32xf32, #tpu.memory_space<vmem>>, vector<16x32xf32>
    tpu.vector_store %arg23[%c0_219, %c0_220], %530 {strides = array<i32>} : memref<16x32xf32, #tpu.memory_space<vmem>>, vector<16x32xf32>,
    return
  }
}

</mosaic_0001>

<llo_original>
// kernel: tpu_custom_call.1
$region0: #{tpu_custom_call.1}
  #allocation0 [shape = 'u32[]', space=smem, size = 0x4, offset = 0x4, fixed_abs, tag = 'smem constant byte address 0x4 - core index']
  #allocation1 [shape = 'u32[144,128]{1,0:T(1,128)}', space=vmem, size = 0x12000, scoped, tag = 'internal scratch']
  %s0 = inlined_call_operand.vmem [shape: s32[16,1], index: 0, kind: input, shape index: {}]
  %s1 = inlined_call_operand.vmem [shape: f32[50,32], index: 1, kind: input, shape index: {}]
  %s2 = inlined_call_operand.hbm [shape: f32[16,32], index: 2, kind: input, shape index: {}]
  %s3 = inlined_call_operand.hbm [shape: f32[1,32], index: 3, kind: input, shape index: {}]
  %s4 = inlined_call_operand.hbm [shape: f32[1,32], index: 4, kind: input, shape index: {}]
  %s5 = inlined_call_operand.hbm [shape: f32[16,32], index: 5, kind: input, shape index: {}]
  %s6 = inlined_call_operand.hbm [shape: f32[16,16], index: 6, kind: input, shape index: {}]
  %s7 = inlined_call_operand.hbm [shape: f32[16,16], index: 7, kind: input, shape index: {}]
  %s8 = inlined_call_operand.vmem [shape: f32[2,32,96], index: 8, kind: input, shape index: {}]
  %s9 = inlined_call_operand.vmem [shape: f32[2,32,32], index: 9, kind: input, shape index: {}]
  %s10 = inlined_call_operand.vmem [shape: f32[2,1,32], index: 10, kind: input, shape index: {}]
  %s11 = inlined_call_operand.vmem [shape: f32[2,1,32], index: 11, kind: input, shape index: {}]
  %s12 = inlined_call_operand.vmem [shape: f32[2,32,32], index: 12, kind: input, shape index: {}]
  %s13 = inlined_call_operand.vmem [shape: f32[2,32,64], index: 13, kind: input, shape index: {}]
  %s14 = inlined_call_operand.hbm [shape: f32[2,32,32], index: 14, kind: input, shape index: {}]
  %s15 = inlined_call_operand.vmem [shape: f32[2,1,32], index: 15, kind: input, shape index: {}]
  %s16 = inlined_call_operand.vmem [shape: f32[2,1,32], index: 16, kind: input, shape index: {}]
  %s17 = inlined_call_operand.hbm [shape: f32[2,32,64], index: 17, kind: input, shape index: {}]
  %s18 = inlined_call_operand.vmem [shape: f32[2,1,64], index: 18, kind: input, shape index: {}]
  %s19 = inlined_call_operand.vmem [shape: f32[2,64,32], index: 19, kind: input, shape index: {}]
  %s20 = inlined_call_operand.vmem [shape: f32[2,1,32], index: 20, kind: input, shape index: {}]
  %s21 = inlined_call_operand.vmem [shape: f32[2,1,32], index: 21, kind: input, shape index: {}]
  %s22 = inlined_call_operand.vmem [shape: f32[2,1,32], index: 22, kind: input, shape index: {}]
  %s23 = inlined_call_operand.hbm [shape: f32[16,32], index: 23, kind: output, shape index: {}]
  %s24 = sld [smem:[#allocation0]]
  $region134: #{tpu_custom_call.1} parent=0
    _
  %s26 = ssub.s32 1, %s24
  %s27 = scalar_select 0, %s26, %s24
  $region1: #{tpu_custom_call.1} parent=0
    #allocation2 [shape = 'u8[8192]{0}', space=vmem, size = 0x2000, scoped, tag = 'input window, operand 2, single buffered']
    #allocation3 [shape = 's32[1]{0}', space=sflag, size = 0x4, scoped, tag = 'scoped memory for tpu_custom_call.1']
    #allocation4 [shape = 's32[1]{0}', space=sflag, size = 0x4, scoped, tag = 'scoped memory for tpu_custom_call.1']
    #allocation5 [shape = 'u8[512]{0}', space=vmem, size = 0x400, scoped, tag = 'input window, operand 3, single buffered']
    #allocation6 [shape = 's32[1]{0}', space=sflag, size = 0x4, scoped, tag = 'scoped memory for tpu_custom_call.1']
    #allocation7 [shape = 'u8[512]{0}', space=vmem, size = 0x400, scoped, tag = 'input window, operand 4, single buffered']
    #allocation8 [shape = 'u8[8192]{0}', space=vmem, size = 0x2000, scoped, tag = 'input window, operand 5, single buffered']
    #allocation9 [shape = 's32[1]{0}', space=sflag, size = 0x4, scoped, tag = 'scoped memory for tpu_custom_call.1']
    #allocation10 [shape = 'u8[8192]{0}', space=vmem, size = 0x2000, scoped, tag = 'input window, operand 6, single buffered']
    #allocation11 [shape = 'u8[8192]{0}', space=vmem, size = 0x2000, scoped, tag = 'input window, operand 7, single buffered']
    #allocation12 [shape = 's32[1]{0}', space=sflag, size = 0x4, scoped, tag = 'scoped memory for tpu_custom_call.1']
    #allocation13 [shape = 'u8[32768]{0}', space=vmem, size = 0x8000, scoped, tag = 'input window, operand 14, single buffered']
    #allocation14 [shape = 'u8[32768]{0}', space=vmem, size = 0x8000, scoped, tag = 'input window, operand 17, single buffered']
    #allocation15 [shape = 's32[1]{0}', space=sflag, size = 0x4, scoped, tag = 'scoped memory for tpu_custom_call.1']
    #allocation16 [shape = 'u8[8192]{0}', space=vmem, size = 0x2000, scoped, tag = 'output window, operand 0, single buffered']
    %28 = vsyncpa [#allocation3], 0
    %29 = vsyncpa [#allocation6], 0
    %30 = vsyncpa [#allocation9], 0
    %31 = vsyncpa [#allocation12], 0
    %32 = vsyncpa [#allocation15], 0
    %33 = vsyncpa [#allocation4], 0
    // Predicated region
    $region2: #{tpu_custom_call.1} parent=1 // pred_check
      _
    $region3: #{tpu_custom_call.1} parent=1 // pred_check_branch
      %35 = sbr.rel (0) target = $region5
    $region4: #{tpu_custom_call.1} parent=1 // pred_region
      _
    $region5: #{tpu_custom_call.1} parent=1 // pred_fallthru
      _
    // Predicated region
    $region6: #{tpu_custom_call.1} parent=1 // pred_check
      _
    $region7: #{tpu_custom_call.1} parent=1 // pred_check_branch
      %37 = sbr.rel (0) target = $region9
    $region8: #{tpu_custom_call.1} parent=1 // pred_region
      _
    $region9: #{tpu_custom_call.1} parent=1 // pred_fallthru
      _
    // Predicated region
    $region10: #{tpu_custom_call.1} parent=1 // pred_check
      _
    $region11: #{tpu_custom_call.1} parent=1 // pred_check_branch
      %39 = sbr.rel (0) target = $region13
    $region12: #{tpu_custom_call.1} parent=1 // pred_region
      %s41 = ssub.s32 256, 256
      %42 = vsyncadd [#allocation3], %s41
      %s43 = sshll.u32 [#allocation2], 4
      %s44 = int_to_ptr.vmem [resolvable:$true] %s43
      %49 = dma.hbm_to_vmem [thread:$0]  %s2, 256, %s44, [#allocation3], 128, 128, 8
    $region13: #{tpu_custom_call.1} parent=1 // pred_fallthru
      _
    // Predicated region
    $region14: #{tpu_custom_call.1} parent=1 // pred_check
      _
    $region15: #{tpu_custom_call.1} parent=1 // pred_check_branch
      %51 = sbr.rel (0) target = $region17
    $region16: #{tpu_custom_call.1} parent=1 // pred_region
      %s53 = ssub.s32 16, 16
      %54 = vsyncadd [#allocation6], %s53
      %s56 = sshll.u32 [#allocation5], 4
      %s57 = int_to_ptr.vmem [resolvable:$true] %s56
      %59 = dma.hbm_to_vmem [thread:$0]  %s3, 16, %s57, [#allocation6]
    $region17: #{tpu_custom_call.1} parent=1 // pred_fallthru
      _
    // Predicated region
    $region18: #{tpu_custom_call.1} parent=1 // pred_check
      _
    $region19: #{tpu_custom_call.1} parent=1 // pred_check_branch
      %61 = sbr.rel (0) target = $region21
    $region20: #{tpu_custom_call.1} parent=1 // pred_region
      %s63 = ssub.s32 16, 16
      %64 = vsyncadd [#allocation6], %s63
      %s66 = sshll.u32 [#allocation7], 4
      %s67 = int_to_ptr.vmem [resolvable:$true] %s66
      %69 = dma.hbm_to_vmem [thread:$0]  %s4, 16, %s67, [#allocation6]
    $region21: #{tpu_custom_call.1} parent=1 // pred_fallthru
      _
    // Predicated region
    $region22: #{tpu_custom_call.1} parent=1 // pred_check
      _
    $region23: #{tpu_custom_call.1} parent=1 // pred_check_branch
      %71 = sbr.rel (0) target = $region25
    $region24: #{tpu_custom_call.1} parent=1 // pred_region
      %s73 = ssub.s32 256, 256
      %74 = vsyncadd [#allocation9], %s73
      %s75 = sshll.u32 [#allocation8], 4
      %s76 = int_to_ptr.vmem [resolvable:$true] %s75
      %81 = dma.hbm_to_vmem [thread:$0]  %s5, 256, %s76, [#allocation9], 128, 128, 8
    $region25: #{tpu_custom_call.1} parent=1 // pred_fallthru
      _
    // Predicated region
    $region26: #{tpu_custom_call.1} parent=1 // pred_check
      _
    $region27: #{tpu_custom_call.1} parent=1 // pred_check_branch
      %83 = sbr.rel (0) target = $region29
    $region28: #{tpu_custom_call.1} parent=1 // pred_region
      %s85 = ssub.s32 256, 256
      %86 = vsyncadd [#allocation9], %s85
      %s87 = sshll.u32 [#allocation10], 4
      %s88 = int_to_ptr.vmem [resolvable:$true] %s87
      %93 = dma.hbm_to_vmem [thread:$0]  %s6, 256, %s88, [#allocation9], 128, 128, 8
    $region29: #{tpu_custom_call.1} parent=1 // pred_fallthru
      _
    // Predicated region
    $region30: #{tpu_custom_call.1} parent=1 // pred_check
      _
    $region31: #{tpu_custom_call.1} parent=1 // pred_check_branch
      %95 = sbr.rel (0) target = $region33
    $region32: #{tpu_custom_call.1} parent=1 // pred_region
      %s97 = ssub.s32 256, 256
      %98 = vsyncadd [#allocation12], %s97
      %s99 = sshll.u32 [#allocation11], 4
      %s100 = int_to_ptr.vmem [resolvable:$true] %s99
      %105 = dma.hbm_to_vmem [thread:$0]  %s7, 256, %s100, [#allocation12], 128, 128, 8
    $region33: #{tpu_custom_call.1} parent=1 // pred_fallthru
      _
    // Predicated region
    $region34: #{tpu_custom_call.1} parent=1 // pred_check
      _
    $region35: #{tpu_custom_call.1} parent=1 // pred_check_branch
      %107 = sbr.rel (0) target = $region37
    $region36: #{tpu_custom_call.1} parent=1 // pred_region
      _
    $region37: #{tpu_custom_call.1} parent=1 // pred_fallthru
      _
    // Predicated region
    $region38: #{tpu_custom_call.1} parent=1 // pred_check
      _
    $region39: #{tpu_custom_call.1} parent=1 // pred_check_branch
      %109 = sbr.rel (0) target = $region41
    $region40: #{tpu_custom_call.1} parent=1 // pred_region
      _
    $region41: #{tpu_custom_call.1} parent=1 // pred_fallthru
      _
    // Predicated region
    $region42: #{tpu_custom_call.1} parent=1 // pred_check
      _
    $region43: #{tpu_custom_call.1} parent=1 // pred_check_branch
      %111 = sbr.rel (0) target = $region45
    $region44: #{tpu_custom_call.1} parent=1 // pred_region
      _
    $region45: #{tpu_custom_call.1} parent=1 // pred_fallthru
      _
    // Predicated region
    $region46: #{tpu_custom_call.1} parent=1 // pred_check
      _
    $region47: #{tpu_custom_call.1} parent=1 // pred_check_branch
      %113 = sbr.rel (0) target = $region49
    $region48: #{tpu_custom_call.1} parent=1 // pred_region
      _
    $region49: #{tpu_custom_call.1} parent=1 // pred_fallthru
      _
    // Predicated region
    $region50: #{tpu_custom_call.1} parent=1 // pred_check
      _
    $region51: #{tpu_custom_call.1} parent=1 // pred_check_branch
      %115 = sbr.rel (0) target = $region53
    $region52: #{tpu_custom_call.1} parent=1 // pred_region
      _
    $region53: #{tpu_custom_call.1} parent=1 // pred_fallthru
      _
    // Predicated region
    $region54: #{tpu_custom_call.1} parent=1 // pred_check
      _
    $region55: #{tpu_custom_call.1} parent=1 // pred_check_branch
      %117 = sbr.rel (0) target = $region57
    $region56: #{tpu_custom_call.1} parent=1 // pred_region
      _
    $region57: #{tpu_custom_call.1} parent=1 // pred_fallthru
      _
    // Predicated region
    $region58: #{tpu_custom_call.1} parent=1 // pred_check
      _
    $region59: #{tpu_custom_call.1} parent=1 // pred_check_branch
      %119 = sbr.rel (0) target = $region61
    $region60: #{tpu_custom_call.1} parent=1 // pred_region
      %s121 = ssub.s32 1024, 1024
      %122 = vsyncadd [#allocation12], %s121
      %s123 = sshll.u32 [#allocation13], 4
      %s124 = int_to_ptr.vmem [resolvable:$true] %s123
      %129 = dma.hbm_to_vmem [thread:$0]  %s14, 1024, %s124, [#allocation12], 128, 128, 8
    $region61: #{tpu_custom_call.1} parent=1 // pred_fallthru
      _
    // Predicated region
    $region62: #{tpu_custom_call.1} parent=1 // pred_check
      _
    $region63: #{tpu_custom_call.1} parent=1 // pred_check_branch
      %131 = sbr.rel (0) target = $region65
    $region64: #{tpu_custom_call.1} parent=1 // pred_region
      _
    $region65: #{tpu_custom_call.1} parent=1 // pred_fallthru
      _
    // Predicated region
    $region66: #{tpu_custom_call.1} parent=1 // pred_check
      _
    $region67: #{tpu_custom_call.1} parent=1 // pred_check_branch
      %133 = sbr.rel (0) target = $region69
    $region68: #{tpu_custom_call.1} parent=1 // pred_region
      _
    $region69: #{tpu_custom_call.1} parent=1 // pred_fallthru
      _
    // Predicated region
    $region70: #{tpu_custom_call.1} parent=1 // pred_check
      _
    $region71: #{tpu_custom_call.1} parent=1 // pred_check_branch
      %135 = sbr.rel (0) target = $region73
    $region72: #{tpu_custom_call.1} parent=1 // pred_region
      %s137 = ssub.s32 1024, 1024
      %138 = vsyncadd [#allocation15], %s137
      %s139 = sshll.u32 [#allocation14], 4
      %s140 = int_to_ptr.vmem [resolvable:$true] %s139
      %145 = dma.hbm_to_vmem [thread:$0]  %s17, 1024, %s140, [#allocation15], 128, 128, 8
    $region73: #{tpu_custom_call.1} parent=1 // pred_fallthru
      _
    // Predicated region
    $region74: #{tpu_custom_call.1} parent=1 // pred_check
      _
    $region75: #{tpu_custom_call.1} parent=1 // pred_check_branch
      %147 = sbr.rel (0) target = $region77
    $region76: #{tpu_custom_call.1} parent=1 // pred_region
      _
    $region77: #{tpu_custom_call.1} parent=1 // pred_fallthru
      _
    // Predicated region
    $region78: #{tpu_custom_call.1} parent=1 // pred_check
      _
    $region79: #{tpu_custom_call.1} parent=1 // pred_check_branch
      %149 = sbr.rel (0) target = $region81
    $region80: #{tpu_custom_call.1} parent=1 // pred_region
      _
    $region81: #{tpu_custom_call.1} parent=1 // pred_fallthru
      _
    // Predicated region
    $region82: #{tpu_custom_call.1} parent=1 // pred_check
      _
    $region83: #{tpu_custom_call.1} parent=1 // pred_check_branch
      %151 = sbr.rel (0) target = $region85
    $region84: #{tpu_custom_call.1} parent=1 // pred_region
      _
    $region85: #{tpu_custom_call.1} parent=1 // pred_fallthru
      _
    // Predicated region
    $region86: #{tpu_custom_call.1} parent=1 // pred_check
      _
    $region87: #{tpu_custom_call.1} parent=1 // pred_check_branch
      %153 = sbr.rel (0) target = $region89
    $region88: #{tpu_custom_call.1} parent=1 // pred_region
      _
    $region89: #{tpu_custom_call.1} parent=1 // pred_fallthru
      _
    // Predicated region
    $region90: #{tpu_custom_call.1} parent=1 // pred_check
      _
    $region91: #{tpu_custom_call.1} parent=1 // pred_check_branch
      %155 = sbr.rel (0) target = $region93
    $region92: #{tpu_custom_call.1} parent=1 // pred_region
      _
    $region93: #{tpu_custom_call.1} parent=1 // pred_fallthru
      _
    // Predicated region
    $region94: #{tpu_custom_call.1} parent=1 // pred_check
      _
    $region95: #{tpu_custom_call.1} parent=1 // pred_check_branch
      %157 = sbr.rel (0) target = $region97
    $region96: #{tpu_custom_call.1} parent=1 // pred_region
      %158 = dma.done [#allocation3], 256
    $region97: #{tpu_custom_call.1} parent=1 // pred_fallthru
      _
    // Predicated region
    $region98: #{tpu_custom_call.1} parent=1 // pred_check
      _
    $region99: #{tpu_custom_call.1} parent=1 // pred_check_branch
      %160 = sbr.rel (0) target = $region101
    $region100: #{tpu_custom_call.1} parent=1 // pred_region
      %161 = dma.done [#allocation6], 16
    $region101: #{tpu_custom_call.1} parent=1 // pred_fallthru
      _
    // Predicated region
    $region102: #{tpu_custom_call.1} parent=1 // pred_check
      _
    $region103: #{tpu_custom_call.1} parent=1 // pred_check_branch
      %163 = sbr.rel (0) target = $region105
    $region104: #{tpu_custom_call.1} parent=1 // pred_region
      %164 = dma.done [#allocation6], 16
    $region105: #{tpu_custom_call.1} parent=1 // pred_fallthru
      _
    // Predicated region
    $region106: #{tpu_custom_call.1} parent=1 // pred_check
      _
    $region107: #{tpu_custom_call.1} parent=1 // pred_check_branch
      %166 = sbr.rel (0) target = $region109
    $region108: #{tpu_custom_call.1} parent=1 // pred_region
      %167 = dma.done [#allocation9], 256
    $region109: #{tpu_custom_call.1} parent=1 // pred_fallthru
      _
    // Predicated region
    $region110: #{tpu_custom_call.1} parent=1 // pred_check
      _
    $region111: #{tpu_custom_call.1} parent=1 // pred_check_branch
      %169 = sbr.rel (0) target = $region113
    $region112: #{tpu_custom_call.1} parent=1 // pred_region
      %170 = dma.done [#allocation9], 256
    $region113: #{tpu_custom_call.1} parent=1 // pred_fallthru
      _
    // Predicated region
    $region114: #{tpu_custom_call.1} parent=1 // pred_check
      _
    $region115: #{tpu_custom_call.1} parent=1 // pred_check_branch
      %172 = sbr.rel (0) target = $region117
    $region116: #{tpu_custom_call.1} parent=1 // pred_region
      %173 = dma.done [#allocation12], 256
    $region117: #{tpu_custom_call.1} parent=1 // pred_fallthru
      _
    // Predicated region
    $region118: #{tpu_custom_call.1} parent=1 // pred_check
      _
    $region119: #{tpu_custom_call.1} parent=1 // pred_check_branch
      %175 = sbr.rel (0) target = $region121
    $region120: #{tpu_custom_call.1} parent=1 // pred_region
      %176 = dma.done [#allocation12], 1024
    $region121: #{tpu_custom_call.1} parent=1 // pred_fallthru
      _
    // Predicated region
    $region122: #{tpu_custom_call.1} parent=1 // pred_check
      _
    $region123: #{tpu_custom_call.1} parent=1 // pred_check_branch
      %178 = sbr.rel (0) target = $region125
    $region124: #{tpu_custom_call.1} parent=1 // pred_region
      %179 = dma.done [#allocation15], 1024
    $region125: #{tpu_custom_call.1} parent=1 // pred_fallthru
      _
    %v180 = vld [vmem:[%s0] sm:$0xff]
    %v181 = vld [vmem:[%s0 + $0x8] sm:$0xff]
    %v182 = vlaneseq
    %v183 = vand.u32 %v182, 127
    %184 = vset.pattern.permute.xlu0 0
    %185 = vperm.xlu0 %184, %v180
    %v186 = vpop.permute.xlu0 %185
    %187 = vset.pattern.permute.xlu0 0
    %188 = vperm.xlu0 %187, %v181
    %v189 = vpop.permute.xlu0 %188
    %vm190 = vcmp.eq.s32.totalorder %v183, %v186
    %vm191 = vcmp.eq.s32.totalorder %v183, %v189
    %v192 = vsel %vm190, 1, 0
    %v193 = vsel %vm191, 1, 0
    %v194 = vcvt.s32.f32 %v192
    %v195 = vcvt.s32.f32 %v193
    %v196 = vld [vmem:[%s1] sm:$0xff]
    %v197 = vld [vmem:[%s1 + $0x8] sm:$0xff]
    %v198 = vld [vmem:[%s1 + $0x10] sm:$0xff]
    %v199 = vld [vmem:[%s1 + $0x18] sm:$0xff]
    %v200 = vld [vmem:[%s1 + $0x20] sm:$0xff]
    %v201 = vld [vmem:[%s1 + $0x28] sm:$0xff]
    %v202 = vld [vmem:[%s1 + $0x30] sm:$0x3]
    %v203 = vld [vmem:[#allocation2] sm:$0xff]
    %v204 = vld [vmem:[#allocation2 + $0x8] sm:$0xff]
    %vm205 = vcmask 408576
    %v207 = vsel %vm205, %v194, 0
    %v210 = vsel %vm205, %v195, 0
    %vm212 = vcmask 1041408
    %v214 = vsel %vm212, %v202, 0
    %216 = vmatprep.subr.mxu0 0.0
    %217 = vmatpush1.msra.mxu0 %v196
    %218 = vmatprep.subr.mxu0 0.0
    %219 = vmatpush1.msra.mxu0 %v197
    %220 = vmatprep.subr.mxu0 0.0
    %221 = vmatpush1.msra.mxu0 %v198
    %222 = vmatprep.subr.mxu0 0.0
    %223 = vmatpush1.msra.mxu0 %v199
    %224 = vmatprep.subr.mxu0 0.0
    %225 = vmatpush1.msra.mxu0 %v200
    %226 = vmatprep.subr.mxu0 0.0
    %227 = vmatpush1.msra.mxu0 %v201
    %228 = vmatprep.subr.mxu0 0.0
    %229 = vmatpush1.msra.mxu0 %v214
    %230 = vmatprep.subr.mxu0 0.0
    %231 = vmatpush1.msra.mxu0 0.0
    %232 = vmatprep.subr.mxu0 0.0
    %233 = vmatpush1.msra.mxu0 0.0
    %234 = vmatprep.subr.mxu0 0.0
    %235 = vmatpush1.msra.mxu0 0.0
    %236 = vmatprep.subr.mxu0 0.0
    %237 = vmatpush1.msra.mxu0 0.0
    %238 = vmatprep.subr.mxu0 0.0
    %239 = vmatpush1.msra.mxu0 0.0
    %240 = vmatprep.subr.mxu0 0.0
    %241 = vmatpush1.msra.mxu0 0.0
    %242 = vmatprep.subr.mxu0 0.0
    %243 = vmatpush1.msra.mxu0 0.0
    %244 = vmatprep.subr.mxu0 0.0
    %245 = vmatpush1.msra.mxu0 0.0
    %246 = vmatprep.subr.mxu0 0.0
    %247 = vmatpush1.msra.mxu0 0.0
    %248 = vmatprep.subr.mxu0 0.0
    %249 = vmatpush1.msra.mxu0 0.0
    %250 = vmatprep.subr.mxu0 0.0
    %251 = vmatpush1.msra.mxu0 0.0
    %252 = vmatprep.subr.mxu0 0.0
    %253 = vmatpush1.msra.mxu0 0.0
    %254 = vmatprep.subr.mxu0 0.0
    %255 = vmatpush1.msra.mxu0 0.0
    %256 = vmatprep.subr.mxu0 0.0
    %257 = vmatpush1.msra.mxu0 0.0
    %258 = vmatprep.subr.mxu0 0.0
    %259 = vmatpush1.msra.mxu0 0.0
    %260 = vmatprep.subr.mxu0 0.0
    %261 = vmatpush1.msra.mxu0 0.0
    %262 = vmatprep.subr.mxu0 0.0
    %263 = vmatpush1.msra.mxu0 0.0
    %264 = vmatprep.subr.mxu0 0.0
    %265 = vmatpush1.msra.mxu0 0.0
    %266 = vmatprep.subr.mxu0 0.0
    %267 = vmatpush1.msra.mxu0 0.0
    %268 = vmatprep.subr.mxu0 0.0
    %269 = vmatpush1.msra.mxu0 0.0
    %270 = vmatprep.subr.mxu0 0.0
    %271 = vmatpush1.msra.mxu0 0.0
    %272 = vmatprep.subr.mxu0 0.0
    %273 = vmatpush1.msra.mxu0 0.0
    %274 = vmatprep.subr.mxu0 0.0
    %275 = vmatpush1.msra.mxu0 0.0
    %276 = vmatprep.subr.mxu0 0.0
    %277 = vmatpush1.msra.mxu0 0.0
    %278 = vmatprep.subr.mxu0 0.0
    %279 = vmatpush1.msra.mxu0 0.0
    %280 = vmatprep.mubr.f32.mxu0 0.0
    %281 = vmatmul.mubr.f32.gmra.mrb[0].mxu0 %v207
    %v282 = vpop.f32.mrb[0].mxu0
    %v283 = vadd.f32 %v203, %v282
    %v284 = vpop.f32.mrb[0].mxu0
    %285 = vmatprep.mubr.f32.mxu0 0.0
    %286 = vmatmul.mubr.f32.gmra.mrb[0].mxu0 %v210
    %v287 = vpop.f32.mrb[0].mxu0
    %v288 = vadd.f32 %v204, %v287
    %v289 = vpop.f32.mrb[0].mxu0
    %290 = vdwg.mxu0
    %v291 = vld [vmem:[#allocation5] sm:$0x1]
    %v292 = vld [vmem:[#allocation7] sm:$0x1]
    %vm293 = vcmask 261120
    %v294 = vsel %vm293, %v283, 0.0
    %295 = vadd.xlane.f32.xlu0 %v294
    %v296 = vpop.xlane.xlu0 %295
    %v297 = vsel %vm293, %v288, 0.0
    %298 = vadd.xlane.f32.xlu0 %v297
    %v299 = vpop.xlane.xlu0 %298
    %v300 = vrcp.pop 32.0
    %v301 = vmul.f32 %v296, %v300
    %v302 = vmul.f32 %v299, %v300
    %v303 = vsub.f32 %v283, %v301
    %v304 = vsub.f32 %v288, %v302
    %v305 = vmul.f32 %v303, %v303
    %v306 = vmul.f32 %v304, %v304
    %v307 = vsel %vm293, %v305, 0.0
    %308 = vadd.xlane.f32.xlu0 %v307
    %v309 = vpop.xlane.xlu0 %308
    %v310 = vsel %vm293, %v306, 0.0
    %311 = vadd.xlane.f32.xlu0 %v310
    %v312 = vpop.xlane.xlu0 %311
    %v313 = vmul.f32 %v309, %v300
    %v314 = vmul.f32 %v312, %v300
    %v315 = vadd.f32 %v313, 1e-06
    %v316 = vadd.f32 %v314, 1e-06
    %v317 = vrsqrt.pop %v315
    %v318 = vrsqrt.pop %v316
    %v319 = vmul.f32 %v303, %v317
    %v320 = vmul.f32 %v304, %v318
    %v322 = vlaneseq
    %v323 = vshrl.u32 %v322, 7
    %v324 = vsub.s32 0, %v323
    %v325 = vrot.slane %v291, %v324
    %v327 = vmul.f32 %v319, %v325
    %v328 = vmul.f32 %v320, %v325
    %v330 = vlaneseq
    %v331 = vshrl.u32 %v330, 7
    %v332 = vsub.s32 0, %v331
    %v333 = vrot.slane %v292, %v332
    %v335 = vadd.f32 %v327, %v333
    %v336 = vadd.f32 %v328, %v333
    %v337 = vld [vmem:[#allocation8] sm:$0xff]
    %v338 = vld [vmem:[#allocation8 + $0x8] sm:$0xff]
    %v339 = vld [vmem:[#allocation10] sm:$0xff]
    %v340 = vld [vmem:[#allocation10 + $0x8] sm:$0xff]
    %v341 = vld [vmem:[#allocation11] sm:$0xff]
    %v342 = vld [vmem:[#allocation11 + $0x8] sm:$0xff]
    %v343 = vld [vmem:[%s8] sm:$0xff]
    %v344 = vld [vmem:[%s8 + $0x8] sm:$0xff]
    %v345 = vld [vmem:[%s8 + $0x10] sm:$0xff]
    %v346 = vld [vmem:[%s8 + $0x18] sm:$0xff]
    %v348 = vsel %vm293, %v335, 0
    %v351 = vsel %vm293, %v336, 0
    %353 = vmatprep.subr.mxu0 0.0
    %354 = vmatpush1.msra.mxu0 %v343
    %355 = vmatprep.subr.mxu0 0.0
    %356 = vmatpush1.msra.mxu0 %v344
    %357 = vmatprep.subr.mxu0 0.0
    %358 = vmatpush1.msra.mxu0 %v345
    %359 = vmatprep.subr.mxu0 0.0
    %360 = vmatpush1.msra.mxu0 %v346
    %361 = vmatprep.subr.mxu0 0.0
    %362 = vmatpush1.msra.mxu0 0.0
    %363 = vmatprep.subr.mxu0 0.0
    %364 = vmatpush1.msra.mxu0 0.0
    %365 = vmatprep.subr.mxu0 0.0
    %366 = vmatpush1.msra.mxu0 0.0
    %367 = vmatprep.subr.mxu0 0.0
    %368 = vmatpush1.msra.mxu0 0.0
    %369 = vmatprep.subr.mxu0 0.0
    %370 = vmatpush1.msra.mxu0 0.0
    %371 = vmatprep.subr.mxu0 0.0
    %372 = vmatpush1.msra.mxu0 0.0
    %373 = vmatprep.subr.mxu0 0.0
    %374 = vmatpush1.msra.mxu0 0.0
    %375 = vmatprep.subr.mxu0 0.0
    %376 = vmatpush1.msra.mxu0 0.0
    %377 = vmatprep.subr.mxu0 0.0
    %378 = vmatpush1.msra.mxu0 0.0
    %379 = vmatprep.subr.mxu0 0.0
    %380 = vmatpush1.msra.mxu0 0.0
    %381 = vmatprep.subr.mxu0 0.0
    %382 = vmatpush1.msra.mxu0 0.0
    %383 = vmatprep.subr.mxu0 0.0
    %384 = vmatpush1.msra.mxu0 0.0
    %385 = vmatprep.subr.mxu0 0.0
    %386 = vmatpush1.msra.mxu0 0.0
    %387 = vmatprep.subr.mxu0 0.0
    %388 = vmatpush1.msra.mxu0 0.0
    %389 = vmatprep.subr.mxu0 0.0
    %390 = vmatpush1.msra.mxu0 0.0
    %391 = vmatprep.subr.mxu0 0.0
    %392 = vmatpush1.msra.mxu0 0.0
    %393 = vmatprep.subr.mxu0 0.0
    %394 = vmatpush1.msra.mxu0 0.0
    %395 = vmatprep.subr.mxu0 0.0
    %396 = vmatpush1.msra.mxu0 0.0
    %397 = vmatprep.subr.mxu0 0.0
    %398 = vmatpush1.msra.mxu0 0.0
    %399 = vmatprep.subr.mxu0 0.0
    %400 = vmatpush1.msra.mxu0 0.0
    %401 = vmatprep.subr.mxu0 0.0
    %402 = vmatpush1.msra.mxu0 0.0
    %403 = vmatprep.subr.mxu0 0.0
    %404 = vmatpush1.msra.mxu0 0.0
    %405 = vmatprep.subr.mxu0 0.0
    %406 = vmatpush1.msra.mxu0 0.0
    %407 = vmatprep.subr.mxu0 0.0
    %408 = vmatpush1.msra.mxu0 0.0
    %409 = vmatprep.subr.mxu0 0.0
    %410 = vmatpush1.msra.mxu0 0.0
    %411 = vmatprep.subr.mxu0 0.0
    %412 = vmatpush1.msra.mxu0 0.0
    %413 = vmatprep.subr.mxu0 0.0
    %414 = vmatpush1.msra.mxu0 0.0
    %415 = vmatprep.subr.mxu0 0.0
    %416 = vmatpush1.msra.mxu0 0.0
    %417 = vmatprep.mubr.f32.mxu0 0.0
    %418 = vmatmul.mubr.f32.gmra.mrb[0].mxu0 %v348
    %v419 = vpop.f32.mrb[0].mxu0
    %v420 = vadd.f32 0.0, %v419
    %v421 = vpop.f32.mrb[0].mxu0
    %422 = vmatprep.mubr.f32.mxu0 0.0
    %423 = vmatmul.mubr.f32.gmra.mrb[0].mxu0 %v351
    %v424 = vpop.f32.mrb[0].mxu0
    %v425 = vadd.f32 0.0, %v424
    %v426 = vpop.f32.mrb[0].mxu0
    %427 = vdwg.mxu0
    %v428 = vld [vmem:[%s9] sm:$0xff]
    %v429 = vld [vmem:[%s9 + $0x8] sm:$0xff]
    %v430 = vld [vmem:[%s9 + $0x10] sm:$0xff]
    %v431 = vld [vmem:[%s9 + $0x18] sm:$0xff]
    %v432 = vld [vmem:[%s10] sm:$0x1]
    %v433 = vld [vmem:[%s11] sm:$0x1]
    %436 = vrot.lane.b32.xlu0 %v420, 96
    %v437 = vpop.permute.xlu0 %436
    %438 = vrot.lane.b32.xlu0 %v425, 96
    %v439 = vpop.permute.xlu0 %438
    %vm440 = vcmask 64512
    %v441 = vsel %vm440, %v420, 0
    %v443 = vsel %vm440, %v425, 0
    %v445 = vsel %vm440, %v437, 0
    %v447 = vsel %vm440, %v439, 0
    %449 = vmatprep.subr.mxu0 0.0
    %450 = vmatpush1.xpose.msra.mxu0 %v445
    %451 = vmatprep.subr.mxu0 0.0
    %452 = vmatpush1.xpose.msra.mxu0 %v447
    %453 = vmatprep.subr.mxu0 0.0
    %454 = vmatpush1.xpose.msra.mxu0 0.0
    %455 = vmatprep.subr.mxu0 0.0
    %456 = vmatpush1.xpose.msra.mxu0 0.0
    %457 = vmatprep.subr.mxu0 0.0
    %458 = vmatpush1.xpose.msra.mxu0 0.0
    %459 = vmatprep.subr.mxu0 0.0
    %460 = vmatpush1.xpose.msra.mxu0 0.0
    %461 = vmatprep.subr.mxu0 0.0
    %462 = vmatpush1.xpose.msra.mxu0 0.0
    %463 = vmatprep.subr.mxu0 0.0
    %464 = vmatpush1.xpose.msra.mxu0 0.0
    %465 = vmatprep.subr.mxu0 0.0
    %466 = vmatpush1.xpose.msra.mxu0 0.0
    %467 = vmatprep.subr.mxu0 0.0
    %468 = vmatpush1.xpose.msra.mxu0 0.0
    %469 = vmatprep.subr.mxu0 0.0
    %470 = vmatpush1.xpose.msra.mxu0 0.0
    %471 = vmatprep.subr.mxu0 0.0
    %472 = vmatpush1.xpose.msra.mxu0 0.0
    %473 = vmatprep.subr.mxu0 0.0
    %474 = vmatpush1.xpose.msra.mxu0 0.0
    %475 = vmatprep.subr.mxu0 0.0
    %476 = vmatpush1.xpose.msra.mxu0 0.0
    %477 = vmatprep.subr.mxu0 0.0
    %478 = vmatpush1.xpose.msra.mxu0 0.0
    %479 = vmatprep.subr.mxu0 0.0
    %480 = vmatpush1.xpose.msra.mxu0 0.0
    %481 = vmatprep.subr.mxu0 0.0
    %482 = vmatpush1.xpose.msra.mxu0 0.0
    %483 = vmatprep.subr.mxu0 0.0
    %484 = vmatpush1.xpose.msra.mxu0 0.0
    %485 = vmatprep.subr.mxu0 0.0
    %486 = vmatpush1.xpose.msra.mxu0 0.0
    %487 = vmatprep.subr.mxu0 0.0
    %488 = vmatpush1.xpose.msra.mxu0 0.0
    %489 = vmatprep.subr.mxu0 0.0
    %490 = vmatpush1.xpose.msra.mxu0 0.0
    %491 = vmatprep.subr.mxu0 0.0
    %492 = vmatpush1.xpose.msra.mxu0 0.0
    %493 = vmatprep.subr.mxu0 0.0
    %494 = vmatpush1.xpose.msra.mxu0 0.0
    %495 = vmatprep.subr.mxu0 0.0
    %496 = vmatpush1.xpose.msra.mxu0 0.0
    %497 = vmatprep.subr.mxu0 0.0
    %498 = vmatpush1.xpose.msra.mxu0 0.0
    %499 = vmatprep.subr.mxu0 0.0
    %500 = vmatpush1.xpose.msra.mxu0 0.0
    %501 = vmatprep.subr.mxu0 0.0
    %502 = vmatpush1.xpose.msra.mxu0 0.0
    %503 = vmatprep.subr.mxu0 0.0
    %504 = vmatpush1.xpose.msra.mxu0 0.0
    %505 = vmatprep.subr.mxu0 0.0
    %506 = vmatpush1.xpose.msra.mxu0 0.0
    %507 = vmatprep.subr.mxu0 0.0
    %508 = vmatpush1.xpose.msra.mxu0 0.0
    %509 = vmatprep.subr.mxu0 0.0
    %510 = vmatpush1.xpose.msra.mxu0 0.0
    %511 = vmatprep.subr.mxu0 0.0
    %512 = vmatpush1.xpose.msra.mxu0 0.0
    %513 = vmatprep.mubr.f32.mxu0 0.0
    %514 = vmatmul.mubr.f32.gmra.mrb[0].mxu0 %v441
    %v515 = vpop.f32.mrb[0].mxu0
    %v516 = vadd.f32 %v339, %v515
    %v517 = vpop.f32.mrb[0].mxu0
    %518 = vmatprep.mubr.f32.mxu0 0.0
    %519 = vmatmul.mubr.f32.gmra.mrb[0].mxu0 %v443
    %v520 = vpop.f32.mrb[0].mxu0
    %v521 = vadd.f32 %v340, %v520
    %v522 = vpop.f32.mrb[0].mxu0
    %523 = vdwg.mxu0
    %vm524 = vcmask 130048
    %v525 = vsel %vm524, %v516, -inf
    %526 = vmax.xlane.f32.xlu0 %v525
    %v527 = vpop.xlane.xlu0 %526
    %v528 = vsel %vm524, %v521, -inf
    %529 = vmax.xlane.f32.xlu0 %v528
    %v530 = vpop.xlane.xlu0 %529
    %v531 = vsub.f32 %v516, %v527
    %v532 = vsub.f32 %v521, %v530
    %v533 = vmul.f32 %v531, 1.442695
    %v534 = vpow.pop %v533
    %v535 = vmul.f32 %v532, 1.442695
    %v536 = vpow.pop %v535
    %v537 = vsel %vm524, %v534, 0.0
    %538 = vadd.xlane.f32.xlu0 %v537
    %v539 = vpop.xlane.xlu0 %538
    %v540 = vsel %vm524, %v536, 0.0
    %541 = vadd.xlane.f32.xlu0 %v540
    %v542 = vpop.xlane.xlu0 %541
    %v543 = vrcp.pop %v539
    %v544 = vrcp.pop %v542
    %v545 = vmul.f32 %v534, %v543
    %v546 = vmul.f32 %v536, %v544
    %547 = vrot.lane.b32.xlu0 %v420, 64
    %v548 = vpop.permute.xlu0 %547
    %549 = vrot.lane.b32.xlu0 %v425, 64
    %v550 = vpop.permute.xlu0 %549
    %v554 = vsel %vm524, %v545, 0
    %v557 = vsel %vm524, %v546, 0
    %559 = vmatprep.subr.mxu0 0.0
    %560 = vmatpush1.msra.mxu0 %v548
    %561 = vmatprep.subr.mxu0 0.0
    %562 = vmatpush1.msra.mxu0 %v550
    %563 = vmatprep.subr.mxu0 0.0
    %564 = vmatpush1.msra.mxu0 0.0
    %565 = vmatprep.subr.mxu0 0.0
    %566 = vmatpush1.msra.mxu0 0.0
    %567 = vmatprep.subr.mxu0 0.0
    %568 = vmatpush1.msra.mxu0 0.0
    %569 = vmatprep.subr.mxu0 0.0
    %570 = vmatpush1.msra.mxu0 0.0
    %571 = vmatprep.subr.mxu0 0.0
    %572 = vmatpush1.msra.mxu0 0.0
    %573 = vmatprep.subr.mxu0 0.0
    %574 = vmatpush1.msra.mxu0 0.0
    %575 = vmatprep.subr.mxu0 0.0
    %576 = vmatpush1.msra.mxu0 0.0
    %577 = vmatprep.subr.mxu0 0.0
    %578 = vmatpush1.msra.mxu0 0.0
    %579 = vmatprep.subr.mxu0 0.0
    %580 = vmatpush1.msra.mxu0 0.0
    %581 = vmatprep.subr.mxu0 0.0
    %582 = vmatpush1.msra.mxu0 0.0
    %583 = vmatprep.subr.mxu0 0.0
    %584 = vmatpush1.msra.mxu0 0.0
    %585 = vmatprep.subr.mxu0 0.0
    %586 = vmatpush1.msra.mxu0 0.0
    %587 = vmatprep.subr.mxu0 0.0
    %588 = vmatpush1.msra.mxu0 0.0
    %589 = vmatprep.subr.mxu0 0.0
    %590 = vmatpush1.msra.mxu0 0.0
    %591 = vmatprep.subr.mxu0 0.0
    %592 = vmatpush1.msra.mxu0 0.0
    %593 = vmatprep.subr.mxu0 0.0
    %594 = vmatpush1.msra.mxu0 0.0
    %595 = vmatprep.subr.mxu0 0.0
    %596 = vmatpush1.msra.mxu0 0.0
    %597 = vmatprep.subr.mxu0 0.0
    %598 = vmatpush1.msra.mxu0 0.0
    %599 = vmatprep.subr.mxu0 0.0
    %600 = vmatpush1.msra.mxu0 0.0
    %601 = vmatprep.subr.mxu0 0.0
    %602 = vmatpush1.msra.mxu0 0.0
    %603 = vmatprep.subr.mxu0 0.0
    %604 = vmatpush1.msra.mxu0 0.0
    %605 = vmatprep.subr.mxu0 0.0
    %606 = vmatpush1.msra.mxu0 0.0
    %607 = vmatprep.subr.mxu0 0.0
    %608 = vmatpush1.msra.mxu0 0.0
    %609 = vmatprep.subr.mxu0 0.0
    %610 = vmatpush1.msra.mxu0 0.0
    %611 = vmatprep.subr.mxu0 0.0
    %612 = vmatpush1.msra.mxu0 0.0
    %613 = vmatprep.subr.mxu0 0.0
    %614 = vmatpush1.msra.mxu0 0.0
    %615 = vmatprep.subr.mxu0 0.0
    %616 = vmatpush1.msra.mxu0 0.0
    %617 = vmatprep.subr.mxu0 0.0
    %618 = vmatpush1.msra.mxu0 0.0
    %619 = vmatprep.subr.mxu0 0.0
    %620 = vmatpush1.msra.mxu0 0.0
    %621 = vmatprep.subr.mxu0 0.0
    %622 = vmatpush1.msra.mxu0 0.0
    %623 = vmatprep.mubr.f32.mxu0 0.0
    %624 = vmatmul.mubr.f32.gmra.mrb[0].mxu0 %v554
    %v625 = vpop.f32.mrb[0].mxu0
    %v626 = vadd.f32 0.0, %v625
    %v627 = vpop.f32.mrb[0].mxu0
    %628 = vmatprep.mubr.f32.mxu0 0.0
    %629 = vmatmul.mubr.f32.gmra.mrb[0].mxu0 %v557
    %v630 = vpop.f32.mrb[0].mxu0
    %v631 = vadd.f32 0.0, %v630
    %v632 = vpop.f32.mrb[0].mxu0
    %633 = vdwg.mxu0
    %634 = vrot.lane.b32.xlu0 %v420, 120
    %v635 = vpop.permute.xlu0 %634
    %636 = vrot.lane.b32.xlu0 %v425, 120
    %v637 = vpop.permute.xlu0 %636
    %638 = vrot.lane.b32.xlu0 %v420, 88
    %v639 = vpop.permute.xlu0 %638
    %640 = vrot.lane.b32.xlu0 %v425, 88
    %v641 = vpop.permute.xlu0 %640
    %v642 = vsel %vm440, %v635, 0
    %v644 = vsel %vm440, %v637, 0
    %v646 = vsel %vm440, %v639, 0
    %v648 = vsel %vm440, %v641, 0
    %650 = vmatprep.subr.mxu0 0.0
    %651 = vmatpush1.xpose.msra.mxu0 %v646
    %652 = vmatprep.subr.mxu0 0.0
    %653 = vmatpush1.xpose.msra.mxu0 %v648
    %654 = vmatprep.subr.mxu0 0.0
    %655 = vmatpush1.xpose.msra.mxu0 0.0
    %656 = vmatprep.subr.mxu0 0.0
    %657 = vmatpush1.xpose.msra.mxu0 0.0
    %658 = vmatprep.subr.mxu0 0.0
    %659 = vmatpush1.xpose.msra.mxu0 0.0
    %660 = vmatprep.subr.mxu0 0.0
    %661 = vmatpush1.xpose.msra.mxu0 0.0
    %662 = vmatprep.subr.mxu0 0.0
    %663 = vmatpush1.xpose.msra.mxu0 0.0
    %664 = vmatprep.subr.mxu0 0.0
    %665 = vmatpush1.xpose.msra.mxu0 0.0
    %666 = vmatprep.subr.mxu0 0.0
    %667 = vmatpush1.xpose.msra.mxu0 0.0
    %668 = vmatprep.subr.mxu0 0.0
    %669 = vmatpush1.xpose.msra.mxu0 0.0
    %670 = vmatprep.subr.mxu0 0.0
    %671 = vmatpush1.xpose.msra.mxu0 0.0
    %672 = vmatprep.subr.mxu0 0.0
    %673 = vmatpush1.xpose.msra.mxu0 0.0
    %674 = vmatprep.subr.mxu0 0.0
    %675 = vmatpush1.xpose.msra.mxu0 0.0
    %676 = vmatprep.subr.mxu0 0.0
    %677 = vmatpush1.xpose.msra.mxu0 0.0
    %678 = vmatprep.subr.mxu0 0.0
    %679 = vmatpush1.xpose.msra.mxu0 0.0
    %680 = vmatprep.subr.mxu0 0.0
    %681 = vmatpush1.xpose.msra.mxu0 0.0
    %682 = vmatprep.subr.mxu0 0.0
    %683 = vmatpush1.xpose.msra.mxu0 0.0
    %684 = vmatprep.subr.mxu0 0.0
    %685 = vmatpush1.xpose.msra.mxu0 0.0
    %686 = vmatprep.subr.mxu0 0.0
    %687 = vmatpush1.xpose.msra.mxu0 0.0
    %688 = vmatprep.subr.mxu0 0.0
    %689 = vmatpush1.xpose.msra.mxu0 0.0
    %690 = vmatprep.subr.mxu0 0.0
    %691 = vmatpush1.xpose.msra.mxu0 0.0
    %692 = vmatprep.subr.mxu0 0.0
    %693 = vmatpush1.xpose.msra.mxu0 0.0
    %694 = vmatprep.subr.mxu0 0.0
    %695 = vmatpush1.xpose.msra.mxu0 0.0
    %696 = vmatprep.subr.mxu0 0.0
    %697 = vmatpush1.xpose.msra.mxu0 0.0
    %698 = vmatprep.subr.mxu0 0.0
    %699 = vmatpush1.xpose.msra.mxu0 0.0
    %700 = vmatprep.subr.mxu0 0.0
    %701 = vmatpush1.xpose.msra.mxu0 0.0
    %702 = vmatprep.subr.mxu0 0.0
    %703 = vmatpush1.xpose.msra.mxu0 0.0
    %704 = vmatprep.subr.mxu0 0.0
    %705 = vmatpush1.xpose.msra.mxu0 0.0
    %706 = vmatprep.subr.mxu0 0.0
    %707 = vmatpush1.xpose.msra.mxu0 0.0
    %708 = vmatprep.subr.mxu0 0.0
    %709 = vmatpush1.xpose.msra.mxu0 0.0
    %710 = vmatprep.subr.mxu0 0.0
    %711 = vmatpush1.xpose.msra.mxu0 0.0
    %712 = vmatprep.subr.mxu0 0.0
    %713 = vmatpush1.xpose.msra.mxu0 0.0
    %714 = vmatprep.mubr.f32.mxu0 0.0
    %715 = vmatmul.mubr.f32.gmra.mrb[0].mxu0 %v642
    %v716 = vpop.f32.mrb[0].mxu0
    %v717 = vadd.f32 %v339, %v716
    %v718 = vpop.f32.mrb[0].mxu0
    %719 = vmatprep.mubr.f32.mxu0 0.0
    %720 = vmatmul.mubr.f32.gmra.mrb[0].mxu0 %v644
    %v721 = vpop.f32.mrb[0].mxu0
    %v722 = vadd.f32 %v340, %v721
    %v723 = vpop.f32.mrb[0].mxu0
    %724 = vdwg.mxu0
    %v725 = vsel %vm524, %v717, -inf
    %726 = vmax.xlane.f32.xlu0 %v725
    %v727 = vpop.xlane.xlu0 %726
    %v728 = vsel %vm524, %v722, -inf
    %729 = vmax.xlane.f32.xlu0 %v728
    %v730 = vpop.xlane.xlu0 %729
    %v731 = vsub.f32 %v717, %v727
    %v732 = vsub.f32 %v722, %v730
    %v733 = vmul.f32 %v731, 1.442695
    %v734 = vpow.pop %v733
    %v735 = vmul.f32 %v732, 1.442695
    %v736 = vpow.pop %v735
    %v737 = vsel %vm524, %v734, 0.0
    %738 = vadd.xlane.f32.xlu0 %v737
    %v739 = vpop.xlane.xlu0 %738
    %v740 = vsel %vm524, %v736, 0.0
    %741 = vadd.xlane.f32.xlu0 %v740
    %v742 = vpop.xlane.xlu0 %741
    %v743 = vrcp.pop %v739
    %v744 = vrcp.pop %v742
    %v745 = vmul.f32 %v734, %v743
    %v746 = vmul.f32 %v736, %v744
    %747 = vrot.lane.b32.xlu0 %v420, 56
    %v748 = vpop.permute.xlu0 %747
    %749 = vrot.lane.b32.xlu0 %v425, 56
    %v750 = vpop.permute.xlu0 %749
    %v754 = vsel %vm524, %v745, 0
    %v757 = vsel %vm524, %v746, 0
    %759 = vmatprep.subr.mxu0 0.0
    %760 = vmatpush1.msra.mxu0 %v748
    %761 = vmatprep.subr.mxu0 0.0
    %762 = vmatpush1.msra.mxu0 %v750
    %763 = vmatprep.subr.mxu0 0.0
    %764 = vmatpush1.msra.mxu0 0.0
    %765 = vmatprep.subr.mxu0 0.0
    %766 = vmatpush1.msra.mxu0 0.0
    %767 = vmatprep.subr.mxu0 0.0
    %768 = vmatpush1.msra.mxu0 0.0
    %769 = vmatprep.subr.mxu0 0.0
    %770 = vmatpush1.msra.mxu0 0.0
    %771 = vmatprep.subr.mxu0 0.0
    %772 = vmatpush1.msra.mxu0 0.0
    %773 = vmatprep.subr.mxu0 0.0
    %774 = vmatpush1.msra.mxu0 0.0
    %775 = vmatprep.subr.mxu0 0.0
    %776 = vmatpush1.msra.mxu0 0.0
    %777 = vmatprep.subr.mxu0 0.0
    %778 = vmatpush1.msra.mxu0 0.0
    %779 = vmatprep.subr.mxu0 0.0
    %780 = vmatpush1.msra.mxu0 0.0
    %781 = vmatprep.subr.mxu0 0.0
    %782 = vmatpush1.msra.mxu0 0.0
    %783 = vmatprep.subr.mxu0 0.0
    %784 = vmatpush1.msra.mxu0 0.0
    %785 = vmatprep.subr.mxu0 0.0
    %786 = vmatpush1.msra.mxu0 0.0
    %787 = vmatprep.subr.mxu0 0.0
    %788 = vmatpush1.msra.mxu0 0.0
    %789 = vmatprep.subr.mxu0 0.0
    %790 = vmatpush1.msra.mxu0 0.0
    %791 = vmatprep.subr.mxu0 0.0
    %792 = vmatpush1.msra.mxu0 0.0
    %793 = vmatprep.subr.mxu0 0.0
    %794 = vmatpush1.msra.mxu0 0.0
    %795 = vmatprep.subr.mxu0 0.0
    %796 = vmatpush1.msra.mxu0 0.0
    %797 = vmatprep.subr.mxu0 0.0
    %798 = vmatpush1.msra.mxu0 0.0
    %799 = vmatprep.subr.mxu0 0.0
    %800 = vmatpush1.msra.mxu0 0.0
    %801 = vmatprep.subr.mxu0 0.0
    %802 = vmatpush1.msra.mxu0 0.0
    %803 = vmatprep.subr.mxu0 0.0
    %804 = vmatpush1.msra.mxu0 0.0
    %805 = vmatprep.subr.mxu0 0.0
    %806 = vmatpush1.msra.mxu0 0.0
    %807 = vmatprep.subr.mxu0 0.0
    %808 = vmatpush1.msra.mxu0 0.0
    %809 = vmatprep.subr.mxu0 0.0
    %810 = vmatpush1.msra.mxu0 0.0
    %811 = vmatprep.subr.mxu0 0.0
    %812 = vmatpush1.msra.mxu0 0.0
    %813 = vmatprep.subr.mxu0 0.0
    %814 = vmatpush1.msra.mxu0 0.0
    %815 = vmatprep.subr.mxu0 0.0
    %816 = vmatpush1.msra.mxu0 0.0
    %817 = vmatprep.subr.mxu0 0.0
    %818 = vmatpush1.msra.mxu0 0.0
    %819 = vmatprep.subr.mxu0 0.0
    %820 = vmatpush1.msra.mxu0 0.0
    %821 = vmatprep.subr.mxu0 0.0
    %822 = vmatpush1.msra.mxu0 0.0
    %823 = vmatprep.mubr.f32.mxu0 0.0
    %824 = vmatmul.mubr.f32.gmra.mrb[0].mxu0 %v754
    %v825 = vpop.f32.mrb[0].mxu0
    %v826 = vadd.f32 0.0, %v825
    %v827 = vpop.f32.mrb[0].mxu0
    %828 = vmatprep.mubr.f32.mxu0 0.0
    %829 = vmatmul.mubr.f32.gmra.mrb[0].mxu0 %v757
    %v830 = vpop.f32.mrb[0].mxu0
    %v831 = vadd.f32 0.0, %v830
    %v832 = vpop.f32.mrb[0].mxu0
    %833 = vdwg.mxu0
    %834 = vrot.lane.b32.xlu0 %v420, 112
    %v835 = vpop.permute.xlu0 %834
    %836 = vrot.lane.b32.xlu0 %v425, 112
    %v837 = vpop.permute.xlu0 %836
    %838 = vrot.lane.b32.xlu0 %v420, 80
    %v839 = vpop.permute.xlu0 %838
    %840 = vrot.lane.b32.xlu0 %v425, 80
    %v841 = vpop.permute.xlu0 %840
    %v842 = vsel %vm440, %v835, 0
    %v844 = vsel %vm440, %v837, 0
    %v846 = vsel %vm440, %v839, 0
    %v848 = vsel %vm440, %v841, 0
    %850 = vmatprep.subr.mxu0 0.0
    %851 = vmatpush1.xpose.msra.mxu0 %v846
    %852 = vmatprep.subr.mxu0 0.0
    %853 = vmatpush1.xpose.msra.mxu0 %v848
    %854 = vmatprep.subr.mxu0 0.0
    %855 = vmatpush1.xpose.msra.mxu0 0.0
    %856 = vmatprep.subr.mxu0 0.0
    %857 = vmatpush1.xpose.msra.mxu0 0.0
    %858 = vmatprep.subr.mxu0 0.0
    %859 = vmatpush1.xpose.msra.mxu0 0.0
    %860 = vmatprep.subr.mxu0 0.0
    %861 = vmatpush1.xpose.msra.mxu0 0.0
    %862 = vmatprep.subr.mxu0 0.0
    %863 = vmatpush1.xpose.msra.mxu0 0.0
    %864 = vmatprep.subr.mxu0 0.0
    %865 = vmatpush1.xpose.msra.mxu0 0.0
    %866 = vmatprep.subr.mxu0 0.0
    %867 = vmatpush1.xpose.msra.mxu0 0.0
    %868 = vmatprep.subr.mxu0 0.0
    %869 = vmatpush1.xpose.msra.mxu0 0.0
    %870 = vmatprep.subr.mxu0 0.0
    %871 = vmatpush1.xpose.msra.mxu0 0.0
    %872 = vmatprep.subr.mxu0 0.0
    %873 = vmatpush1.xpose.msra.mxu0 0.0
    %874 = vmatprep.subr.mxu0 0.0
    %875 = vmatpush1.xpose.msra.mxu0 0.0
    %876 = vmatprep.subr.mxu0 0.0
    %877 = vmatpush1.xpose.msra.mxu0 0.0
    %878 = vmatprep.subr.mxu0 0.0
    %879 = vmatpush1.xpose.msra.mxu0 0.0
    %880 = vmatprep.subr.mxu0 0.0
    %881 = vmatpush1.xpose.msra.mxu0 0.0
    %882 = vmatprep.subr.mxu0 0.0
    %883 = vmatpush1.xpose.msra.mxu0 0.0
    %884 = vmatprep.subr.mxu0 0.0
    %885 = vmatpush1.xpose.msra.mxu0 0.0
    %886 = vmatprep.subr.mxu0 0.0
    %887 = vmatpush1.xpose.msra.mxu0 0.0
    %888 = vmatprep.subr.mxu0 0.0
    %889 = vmatpush1.xpose.msra.mxu0 0.0
    %890 = vmatprep.subr.mxu0 0.0
    %891 = vmatpush1.xpose.msra.mxu0 0.0
    %892 = vmatprep.subr.mxu0 0.0
    %893 = vmatpush1.xpose.msra.mxu0 0.0
    %894 = vmatprep.subr.mxu0 0.0
    %895 = vmatpush1.xpose.msra.mxu0 0.0
    %896 = vmatprep.subr.mxu0 0.0
    %897 = vmatpush1.xpose.msra.mxu0 0.0
    %898 = vmatprep.subr.mxu0 0.0
    %899 = vmatpush1.xpose.msra.mxu0 0.0
    %900 = vmatprep.subr.mxu0 0.0
    %901 = vmatpush1.xpose.msra.mxu0 0.0
    %902 = vmatprep.subr.mxu0 0.0
    %903 = vmatpush1.xpose.msra.mxu0 0.0
    %904 = vmatprep.subr.mxu0 0.0
    %905 = vmatpush1.xpose.msra.mxu0 0.0
    %906 = vmatprep.subr.mxu0 0.0
    %907 = vmatpush1.xpose.msra.mxu0 0.0
    %908 = vmatprep.subr.mxu0 0.0
    %909 = vmatpush1.xpose.msra.mxu0 0.0
    %910 = vmatprep.subr.mxu0 0.0
    %911 = vmatpush1.xpose.msra.mxu0 0.0
    %912 = vmatprep.subr.mxu0 0.0
    %913 = vmatpush1.xpose.msra.mxu0 0.0
    %914 = vmatprep.mubr.f32.mxu0 0.0
    %915 = vmatmul.mubr.f32.gmra.mrb[0].mxu0 %v842
    %v916 = vpop.f32.mrb[0].mxu0
    %v917 = vadd.f32 %v339, %v916
    %v918 = vpop.f32.mrb[0].mxu0
    %919 = vmatprep.mubr.f32.mxu0 0.0
    %920 = vmatmul.mubr.f32.gmra.mrb[0].mxu0 %v844
    %v921 = vpop.f32.mrb[0].mxu0
    %v922 = vadd.f32 %v340, %v921
    %v923 = vpop.f32.mrb[0].mxu0
    %924 = vdwg.mxu0
    %v925 = vsel %vm524, %v917, -inf
    %926 = vmax.xlane.f32.xlu0 %v925
    %v927 = vpop.xlane.xlu0 %926
    %v928 = vsel %vm524, %v922, -inf
    %929 = vmax.xlane.f32.xlu0 %v928
    %v930 = vpop.xlane.xlu0 %929
    %v931 = vsub.f32 %v917, %v927
    %v932 = vsub.f32 %v922, %v930
    %v933 = vmul.f32 %v931, 1.442695
    %v934 = vpow.pop %v933
    %v935 = vmul.f32 %v932, 1.442695
    %v936 = vpow.pop %v935
    %v937 = vsel %vm524, %v934, 0.0
    %938 = vadd.xlane.f32.xlu0 %v937
    %v939 = vpop.xlane.xlu0 %938
    %v940 = vsel %vm524, %v936, 0.0
    %941 = vadd.xlane.f32.xlu0 %v940
    %v942 = vpop.xlane.xlu0 %941
    %v943 = vrcp.pop %v939
    %v944 = vrcp.pop %v942
    %v945 = vmul.f32 %v934, %v943
    %v946 = vmul.f32 %v936, %v944
    %947 = vrot.lane.b32.xlu0 %v420, 48
    %v948 = vpop.permute.xlu0 %947
    %949 = vrot.lane.b32.xlu0 %v425, 48
    %v950 = vpop.permute.xlu0 %949
    %v954 = vsel %vm524, %v945, 0
    %v957 = vsel %vm524, %v946, 0
    %959 = vmatprep.subr.mxu0 0.0
    %960 = vmatpush1.msra.mxu0 %v948
    %961 = vmatprep.subr.mxu0 0.0
    %962 = vmatpush1.msra.mxu0 %v950
    %963 = vmatprep.subr.mxu0 0.0
    %964 = vmatpush1.msra.mxu0 0.0
    %965 = vmatprep.subr.mxu0 0.0
    %966 = vmatpush1.msra.mxu0 0.0
    %967 = vmatprep.subr.mxu0 0.0
    %968 = vmatpush1.msra.mxu0 0.0
    %969 = vmatprep.subr.mxu0 0.0
    %970 = vmatpush1.msra.mxu0 0.0
    %971 = vmatprep.subr.mxu0 0.0
    %972 = vmatpush1.msra.mxu0 0.0
    %973 = vmatprep.subr.mxu0 0.0
    %974 = vmatpush1.msra.mxu0 0.0
    %975 = vmatprep.subr.mxu0 0.0
    %976 = vmatpush1.msra.mxu0 0.0
    %977 = vmatprep.subr.mxu0 0.0
    %978 = vmatpush1.msra.mxu0 0.0
    %979 = vmatprep.subr.mxu0 0.0
    %980 = vmatpush1.msra.mxu0 0.0
    %981 = vmatprep.subr.mxu0 0.0
    %982 = vmatpush1.msra.mxu0 0.0
    %983 = vmatprep.subr.mxu0 0.0
    %984 = vmatpush1.msra.mxu0 0.0
    %985 = vmatprep.subr.mxu0 0.0
    %986 = vmatpush1.msra.mxu0 0.0
    %987 = vmatprep.subr.mxu0 0.0
    %988 = vmatpush1.msra.mxu0 0.0
    %989 = vmatprep.subr.mxu0 0.0
    %990 = vmatpush1.msra.mxu0 0.0
    %991 = vmatprep.subr.mxu0 0.0
    %992 = vmatpush1.msra.mxu0 0.0
    %993 = vmatprep.subr.mxu0 0.0
    %994 = vmatpush1.msra.mxu0 0.0
    %995 = vmatprep.subr.mxu0 0.0
    %996 = vmatpush1.msra.mxu0 0.0
    %997 = vmatprep.subr.mxu0 0.0
    %998 = vmatpush1.msra.mxu0 0.0
    %999 = vmatprep.subr.mxu0 0.0
    %1000 = vmatpush1.msra.mxu0 0.0
    %1001 = vmatprep.subr.mxu0 0.0
    %1002 = vmatpush1.msra.mxu0 0.0
    %1003 = vmatprep.subr.mxu0 0.0
    %1004 = vmatpush1.msra.mxu0 0.0
    %1005 = vmatprep.subr.mxu0 0.0
    %1006 = vmatpush1.msra.mxu0 0.0
    %1007 = vmatprep.subr.mxu0 0.0
    %1008 = vmatpush1.msra.mxu0 0.0
    %1009 = vmatprep.subr.mxu0 0.0
    %1010 = vmatpush1.msra.mxu0 0.0
    %1011 = vmatprep.subr.mxu0 0.0
    %1012 = vmatpush1.msra.mxu0 0.0
    %1013 = vmatprep.subr.mxu0 0.0
    %1014 = vmatpush1.msra.mxu0 0.0
    %1015 = vmatprep.subr.mxu0 0.0
    %1016 = vmatpush1.msra.mxu0 0.0
    %1017 = vmatprep.subr.mxu0 0.0
    %1018 = vmatpush1.msra.mxu0 0.0
    %1019 = vmatprep.subr.mxu0 0.0
    %1020 = vmatpush1.msra.mxu0 0.0
    %1021 = vmatprep.subr.mxu0 0.0
    %1022 = vmatpush1.msra.mxu0 0.0
    %1023 = vmatprep.mubr.f32.mxu0 0.0
    %1024 = vmatmul.mubr.f32.gmra.mrb[0].mxu0 %v954
    %v1025 = vpop.f32.mrb[0].mxu0
    %v1026 = vadd.f32 0.0, %v1025
    %v1027 = vpop.f32.mrb[0].mxu0
    %1028 = vmatprep.mubr.f32.mxu0 0.0
    %1029 = vmatmul.mubr.f32.gmra.mrb[0].mxu0 %v957
    %v1030 = vpop.f32.mrb[0].mxu0
    %v1031 = vadd.f32 0.0, %v1030
    %v1032 = vpop.f32.mrb[0].mxu0
    %1033 = vdwg.mxu0
    %1034 = vrot.lane.b32.xlu0 %v420, 104
    %v1035 = vpop.permute.xlu0 %1034
    %1036 = vrot.lane.b32.xlu0 %v425, 104
    %v1037 = vpop.permute.xlu0 %1036
    %1038 = vrot.lane.b32.xlu0 %v420, 72
    %v1039 = vpop.permute.xlu0 %1038
    %1040 = vrot.lane.b32.xlu0 %v425, 72
    %v1041 = vpop.permute.xlu0 %1040
    %v1042 = vsel %vm440, %v1035, 0
    %v1044 = vsel %vm440, %v1037, 0
    %v1046 = vsel %vm440, %v1039, 0
    %v1048 = vsel %vm440, %v1041, 0
    %1050 = vmatprep.subr.mxu0 0.0
    %1051 = vmatpush1.xpose.msra.mxu0 %v1046
    %1052 = vmatprep.subr.mxu0 0.0
    %1053 = vmatpush1.xpose.msra.mxu0 %v1048
    %1054 = vmatprep.subr.mxu0 0.0
    %1055 = vmatpush1.xpose.msra.mxu0 0.0
    %1056 = vmatprep.subr.mxu0 0.0
    %1057 = vmatpush1.xpose.msra.mxu0 0.0
    %1058 = vmatprep.subr.mxu0 0.0
    %1059 = vmatpush1.xpose.msra.mxu0 0.0
    %1060 = vmatprep.subr.mxu0 0.0
    %1061 = vmatpush1.xpose.msra.mxu0 0.0
    %1062 = vmatprep.subr.mxu0 0.0
    %1063 = vmatpush1.xpose.msra.mxu0 0.0
    %1064 = vmatprep.subr.mxu0 0.0
    %1065 = vmatpush1.xpose.msra.mxu0 0.0
    %1066 = vmatprep.subr.mxu0 0.0
    %1067 = vmatpush1.xpose.msra.mxu0 0.0
    %1068 = vmatprep.subr.mxu0 0.0
    %1069 = vmatpush1.xpose.msra.mxu0 0.0
    %1070 = vmatprep.subr.mxu0 0.0
    %1071 = vmatpush1.xpose.msra.mxu0 0.0
    %1072 = vmatprep.subr.mxu0 0.0
    %1073 = vmatpush1.xpose.msra.mxu0 0.0
    %1074 = vmatprep.subr.mxu0 0.0
    %1075 = vmatpush1.xpose.msra.mxu0 0.0
    %1076 = vmatprep.subr.mxu0 0.0
    %1077 = vmatpush1.xpose.msra.mxu0 0.0
    %1078 = vmatprep.subr.mxu0 0.0
    %1079 = vmatpush1.xpose.msra.mxu0 0.0
    %1080 = vmatprep.subr.mxu0 0.0
    %1081 = vmatpush1.xpose.msra.mxu0 0.0
    %1082 = vmatprep.subr.mxu0 0.0
    %1083 = vmatpush1.xpose.msra.mxu0 0.0
    %1084 = vmatprep.subr.mxu0 0.0
    %1085 = vmatpush1.xpose.msra.mxu0 0.0
    %1086 = vmatprep.subr.mxu0 0.0
    %1087 = vmatpush1.xpose.msra.mxu0 0.0
    %1088 = vmatprep.subr.mxu0 0.0
    %1089 = vmatpush1.xpose.msra.mxu0 0.0
    %1090 = vmatprep.subr.mxu0 0.0
    %1091 = vmatpush1.xpose.msra.mxu0 0.0
    %1092 = vmatprep.subr.mxu0 0.0
    %1093 = vmatpush1.xpose.msra.mxu0 0.0
    %1094 = vmatprep.subr.mxu0 0.0
    %1095 = vmatpush1.xpose.msra.mxu0 0.0
    %1096 = vmatprep.subr.mxu0 0.0
    %1097 = vmatpush1.xpose.msra.mxu0 0.0
    %1098 = vmatprep.subr.mxu0 0.0
    %1099 = vmatpush1.xpose.msra.mxu0 0.0
    %1100 = vmatprep.subr.mxu0 0.0
    %1101 = vmatpush1.xpose.msra.mxu0 0.0
    %1102 = vmatprep.subr.mxu0 0.0
    %1103 = vmatpush1.xpose.msra.mxu0 0.0
    %1104 = vmatprep.subr.mxu0 0.0
    %1105 = vmatpush1.xpose.msra.mxu0 0.0
    %1106 = vmatprep.subr.mxu0 0.0
    %1107 = vmatpush1.xpose.msra.mxu0 0.0
    %1108 = vmatprep.subr.mxu0 0.0
    %1109 = vmatpush1.xpose.msra.mxu0 0.0
    %1110 = vmatprep.subr.mxu0 0.0
    %1111 = vmatpush1.xpose.msra.mxu0 0.0
    %1112 = vmatprep.subr.mxu0 0.0
    %1113 = vmatpush1.xpose.msra.mxu0 0.0
    %1114 = vmatprep.mubr.f32.mxu0 0.0
    %1115 = vmatmul.mubr.f32.gmra.mrb[0].mxu0 %v1042
    %v1116 = vpop.f32.mrb[0].mxu0
    %v1117 = vadd.f32 %v339, %v1116
    %v1118 = vpop.f32.mrb[0].mxu0
    %1119 = vmatprep.mubr.f32.mxu0 0.0
    %1120 = vmatmul.mubr.f32.gmra.mrb[0].mxu0 %v1044
    %v1121 = vpop.f32.mrb[0].mxu0
    %v1122 = vadd.f32 %v340, %v1121
    %v1123 = vpop.f32.mrb[0].mxu0
    %1124 = vdwg.mxu0
    %v1125 = vsel %vm524, %v1117, -inf
    %1126 = vmax.xlane.f32.xlu0 %v1125
    %v1127 = vpop.xlane.xlu0 %1126
    %v1128 = vsel %vm524, %v1122, -inf
    %1129 = vmax.xlane.f32.xlu0 %v1128
    %v1130 = vpop.xlane.xlu0 %1129
    %v1131 = vsub.f32 %v1117, %v1127
    %v1132 = vsub.f32 %v1122, %v1130
    %v1133 = vmul.f32 %v1131, 1.442695
    %v1134 = vpow.pop %v1133
    %v1135 = vmul.f32 %v1132, 1.442695
    %v1136 = vpow.pop %v1135
    %v1137 = vsel %vm524, %v1134, 0.0
    %1138 = vadd.xlane.f32.xlu0 %v1137
    %v1139 = vpop.xlane.xlu0 %1138
    %v1140 = vsel %vm524, %v1136, 0.0
    %1141 = vadd.xlane.f32.xlu0 %v1140
    %v1142 = vpop.xlane.xlu0 %1141
    %v1143 = vrcp.pop %v1139
    %v1144 = vrcp.pop %v1142
    %v1145 = vmul.f32 %v1134, %v1143
    %v1146 = vmul.f32 %v1136, %v1144
    %1147 = vrot.lane.b32.xlu0 %v420, 40
    %v1148 = vpop.permute.xlu0 %1147
    %1149 = vrot.lane.b32.xlu0 %v425, 40
    %v1150 = vpop.permute.xlu0 %1149
    %v1154 = vsel %vm524, %v1145, 0
    %v1157 = vsel %vm524, %v1146, 0
    %1159 = vmatprep.subr.mxu0 0.0
    %1160 = vmatpush1.msra.mxu0 %v1148
    %1161 = vmatprep.subr.mxu0 0.0
    %1162 = vmatpush1.msra.mxu0 %v1150
    %1163 = vmatprep.subr.mxu0 0.0
    %1164 = vmatpush1.msra.mxu0 0.0
    %1165 = vmatprep.subr.mxu0 0.0
    %1166 = vmatpush1.msra.mxu0 0.0
    %1167 = vmatprep.subr.mxu0 0.0
    %1168 = vmatpush1.msra.mxu0 0.0
    %1169 = vmatprep.subr.mxu0 0.0
    %1170 = vmatpush1.msra.mxu0 0.0
    %1171 = vmatprep.subr.mxu0 0.0
    %1172 = vmatpush1.msra.mxu0 0.0
    %1173 = vmatprep.subr.mxu0 0.0
    %1174 = vmatpush1.msra.mxu0 0.0
    %1175 = vmatprep.subr.mxu0 0.0
    %1176 = vmatpush1.msra.mxu0 0.0
    %1177 = vmatprep.subr.mxu0 0.0
    %1178 = vmatpush1.msra.mxu0 0.0
    %1179 = vmatprep.subr.mxu0 0.0
    %1180 = vmatpush1.msra.mxu0 0.0
    %1181 = vmatprep.subr.mxu0 0.0
    %1182 = vmatpush1.msra.mxu0 0.0
    %1183 = vmatprep.subr.mxu0 0.0
    %1184 = vmatpush1.msra.mxu0 0.0
    %1185 = vmatprep.subr.mxu0 0.0
    %1186 = vmatpush1.msra.mxu0 0.0
    %1187 = vmatprep.subr.mxu0 0.0
    %1188 = vmatpush1.msra.mxu0 0.0
    %1189 = vmatprep.subr.mxu0 0.0
    %1190 = vmatpush1.msra.mxu0 0.0
    %1191 = vmatprep.subr.mxu0 0.0
    %1192 = vmatpush1.msra.mxu0 0.0
    %1193 = vmatprep.subr.mxu0 0.0
    %1194 = vmatpush1.msra.mxu0 0.0
    %1195 = vmatprep.subr.mxu0 0.0
    %1196 = vmatpush1.msra.mxu0 0.0
    %1197 = vmatprep.subr.mxu0 0.0
    %1198 = vmatpush1.msra.mxu0 0.0
    %1199 = vmatprep.subr.mxu0 0.0
    %1200 = vmatpush1.msra.mxu0 0.0
    %1201 = vmatprep.subr.mxu0 0.0
    %1202 = vmatpush1.msra.mxu0 0.0
    %1203 = vmatprep.subr.mxu0 0.0
    %1204 = vmatpush1.msra.mxu0 0.0
    %1205 = vmatprep.subr.mxu0 0.0
    %1206 = vmatpush1.msra.mxu0 0.0
    %1207 = vmatprep.subr.mxu0 0.0
    %1208 = vmatpush1.msra.mxu0 0.0
    %1209 = vmatprep.subr.mxu0 0.0
    %1210 = vmatpush1.msra.mxu0 0.0
    %1211 = vmatprep.subr.mxu0 0.0
    %1212 = vmatpush1.msra.mxu0 0.0
    %1213 = vmatprep.subr.mxu0 0.0
    %1214 = vmatpush1.msra.mxu0 0.0
    %1215 = vmatprep.subr.mxu0 0.0
    %1216 = vmatpush1.msra.mxu0 0.0
    %1217 = vmatprep.subr.mxu0 0.0
    %1218 = vmatpush1.msra.mxu0 0.0
    %1219 = vmatprep.subr.mxu0 0.0
    %1220 = vmatpush1.msra.mxu0 0.0
    %1221 = vmatprep.subr.mxu0 0.0
    %1222 = vmatpush1.msra.mxu0 0.0
    %1223 = vmatprep.mubr.f32.mxu0 0.0
    %1224 = vmatmul.mubr.f32.gmra.mrb[0].mxu0 %v1154
    %v1225 = vpop.f32.mrb[0].mxu0
    %v1226 = vadd.f32 0.0, %v1225
    %v1227 = vpop.f32.mrb[0].mxu0
    %1228 = vmatprep.mubr.f32.mxu0 0.0
    %1229 = vmatmul.mubr.f32.gmra.mrb[0].mxu0 %v1157
    %v1230 = vpop.f32.mrb[0].mxu0
    %v1231 = vadd.f32 0.0, %v1230
    %v1232 = vpop.f32.mrb[0].mxu0
    %1233 = vdwg.mxu0
    %1236 = vrot.lane.b32.xlu0 %v826, 8
    %v1237 = vpop.permute.xlu0 %1236
    %1238 = vrot.lane.b32.xlu0 %v831, 8
    %v1239 = vpop.permute.xlu0 %1238
    %1244 = vrot.lane.b32.xlu0 %v1026, 16
    %v1245 = vpop.permute.xlu0 %1244
    %1246 = vrot.lane.b32.xlu0 %v1031, 16
    %v1247 = vpop.permute.xlu0 %1246
    %1252 = vrot.lane.b32.xlu0 %v1226, 24
    %v1253 = vpop.permute.xlu0 %1252
    %1254 = vrot.lane.b32.xlu0 %v1231, 24
    %v1255 = vpop.permute.xlu0 %1254
    %v1258 = vsel %vm440, %v626, %v1237
    %v1259 = vsel %vm440, %v631, %v1239
    %v1260 = vsel %vm524, %v1258, %v1245
    %v1261 = vsel %vm524, %v1259, %v1247
    %vm1262 = vcmask 195584
    %v1263 = vsel %vm1262, %v1260, %v1253
    %v1264 = vsel %vm1262, %v1261, %v1255
    %v1266 = vsel %vm293, %v1263, 0
    %v1269 = vsel %vm293, %v1264, 0
    %1271 = vmatprep.subr.mxu0 0.0
    %1272 = vmatpush1.msra.mxu0 %v428
    %1273 = vmatprep.subr.mxu0 0.0
    %1274 = vmatpush1.msra.mxu0 %v429
    %1275 = vmatprep.subr.mxu0 0.0
    %1276 = vmatpush1.msra.mxu0 %v430
    %1277 = vmatprep.subr.mxu0 0.0
    %1278 = vmatpush1.msra.mxu0 %v431
    %1279 = vmatprep.subr.mxu0 0.0
    %1280 = vmatpush1.msra.mxu0 0.0
    %1281 = vmatprep.subr.mxu0 0.0
    %1282 = vmatpush1.msra.mxu0 0.0
    %1283 = vmatprep.subr.mxu0 0.0
    %1284 = vmatpush1.msra.mxu0 0.0
    %1285 = vmatprep.subr.mxu0 0.0
    %1286 = vmatpush1.msra.mxu0 0.0
    %1287 = vmatprep.subr.mxu0 0.0
    %1288 = vmatpush1.msra.mxu0 0.0
    %1289 = vmatprep.subr.mxu0 0.0
    %1290 = vmatpush1.msra.mxu0 0.0
    %1291 = vmatprep.subr.mxu0 0.0
    %1292 = vmatpush1.msra.mxu0 0.0
    %1293 = vmatprep.subr.mxu0 0.0
    %1294 = vmatpush1.msra.mxu0 0.0
    %1295 = vmatprep.subr.mxu0 0.0
    %1296 = vmatpush1.msra.mxu0 0.0
    %1297 = vmatprep.subr.mxu0 0.0
    %1298 = vmatpush1.msra.mxu0 0.0
    %1299 = vmatprep.subr.mxu0 0.0
    %1300 = vmatpush1.msra.mxu0 0.0
    %1301 = vmatprep.subr.mxu0 0.0
    %1302 = vmatpush1.msra.mxu0 0.0
    %1303 = vmatprep.subr.mxu0 0.0
    %1304 = vmatpush1.msra.mxu0 0.0
    %1305 = vmatprep.subr.mxu0 0.0
    %1306 = vmatpush1.msra.mxu0 0.0
    %1307 = vmatprep.subr.mxu0 0.0
    %1308 = vmatpush1.msra.mxu0 0.0
    %1309 = vmatprep.subr.mxu0 0.0
    %1310 = vmatpush1.msra.mxu0 0.0
    %1311 = vmatprep.subr.mxu0 0.0
    %1312 = vmatpush1.msra.mxu0 0.0
    %1313 = vmatprep.subr.mxu0 0.0
    %1314 = vmatpush1.msra.mxu0 0.0
    %1315 = vmatprep.subr.mxu0 0.0
    %1316 = vmatpush1.msra.mxu0 0.0
    %1317 = vmatprep.subr.mxu0 0.0
    %1318 = vmatpush1.msra.mxu0 0.0
    %1319 = vmatprep.subr.mxu0 0.0
    %1320 = vmatpush1.msra.mxu0 0.0
    %1321 = vmatprep.subr.mxu0 0.0
    %1322 = vmatpush1.msra.mxu0 0.0
    %1323 = vmatprep.subr.mxu0 0.0
    %1324 = vmatpush1.msra.mxu0 0.0
    %1325 = vmatprep.subr.mxu0 0.0
    %1326 = vmatpush1.msra.mxu0 0.0
    %1327 = vmatprep.subr.mxu0 0.0
    %1328 = vmatpush1.msra.mxu0 0.0
    %1329 = vmatprep.subr.mxu0 0.0
    %1330 = vmatpush1.msra.mxu0 0.0
    %1331 = vmatprep.subr.mxu0 0.0
    %1332 = vmatpush1.msra.mxu0 0.0
    %1333 = vmatprep.subr.mxu0 0.0
    %1334 = vmatpush1.msra.mxu0 0.0
    %1335 = vmatprep.mubr.f32.mxu0 0.0
    %1336 = vmatmul.mubr.f32.gmra.mrb[0].mxu0 %v1266
    %v1337 = vpop.f32.mrb[0].mxu0
    %v1338 = vadd.f32 %v335, %v1337
    %v1339 = vpop.f32.mrb[0].mxu0
    %1340 = vmatprep.mubr.f32.mxu0 0.0
    %1341 = vmatmul.mubr.f32.gmra.mrb[0].mxu0 %v1269
    %v1342 = vpop.f32.mrb[0].mxu0
    %v1343 = vadd.f32 %v336, %v1342
    %v1344 = vpop.f32.mrb[0].mxu0
    %1345 = vdwg.mxu0
    %v1346 = vsel %vm293, %v1338, 0.0
    %1347 = vadd.xlane.f32.xlu0 %v1346
    %v1348 = vpop.xlane.xlu0 %1347
    %v1349 = vsel %vm293, %v1343, 0.0
    %1350 = vadd.xlane.f32.xlu0 %v1349
    %v1351 = vpop.xlane.xlu0 %1350
    %v1352 = vmul.f32 %v1348, %v300
    %v1353 = vmul.f32 %v1351, %v300
    %v1354 = vsub.f32 %v1338, %v1352
    %v1355 = vsub.f32 %v1343, %v1353
    %v1356 = vmul.f32 %v1354, %v1354
    %v1357 = vmul.f32 %v1355, %v1355
    %v1358 = vsel %vm293, %v1356, 0.0
    %1359 = vadd.xlane.f32.xlu0 %v1358
    %v1360 = vpop.xlane.xlu0 %1359
    %v1361 = vsel %vm293, %v1357, 0.0
    %1362 = vadd.xlane.f32.xlu0 %v1361
    %v1363 = vpop.xlane.xlu0 %1362
    %v1364 = vmul.f32 %v1360, %v300
    %v1365 = vmul.f32 %v1363, %v300
    %v1366 = vadd.f32 %v1364, 1e-06
    %v1367 = vadd.f32 %v1365, 1e-06
    %v1368 = vrsqrt.pop %v1366
    %v1369 = vrsqrt.pop %v1367
    %v1370 = vmul.f32 %v1354, %v1368
    %v1371 = vmul.f32 %v1355, %v1369
    %v1373 = vlaneseq
    %v1374 = vshrl.u32 %v1373, 7
    %v1375 = vsub.s32 0, %v1374
    %v1376 = vrot.slane %v432, %v1375
    %v1378 = vmul.f32 %v1370, %v1376
    %v1379 = vmul.f32 %v1371, %v1376
    %v1381 = vlaneseq
    %v1382 = vshrl.u32 %v1381, 7
    %v1383 = vsub.s32 0, %v1382
    %v1384 = vrot.slane %v433, %v1383
    %v1386 = vadd.f32 %v1378, %v1384
    %v1387 = vadd.f32 %v1379, %v1384
    %v1388 = vld [vmem:[%s12] sm:$0xff]
    %v1389 = vld [vmem:[%s12 + $0x8] sm:$0xff]
    %v1390 = vld [vmem:[%s12 + $0x10] sm:$0xff]
    %v1391 = vld [vmem:[%s12 + $0x18] sm:$0xff]
    %v1393 = vsel %vm293, %v1386, 0
    %v1396 = vsel %vm293, %v1387, 0
    %1398 = vmatprep.subr.mxu0 0.0
    %1399 = vmatpush1.msra.mxu0 %v1388
    %1400 = vmatprep.subr.mxu0 0.0
    %1401 = vmatpush1.msra.mxu0 %v1389
    %1402 = vmatprep.subr.mxu0 0.0
    %1403 = vmatpush1.msra.mxu0 %v1390
    %1404 = vmatprep.subr.mxu0 0.0
    %1405 = vmatpush1.msra.mxu0 %v1391
    %1406 = vmatprep.subr.mxu0 0.0
    %1407 = vmatpush1.msra.mxu0 0.0
    %1408 = vmatprep.subr.mxu0 0.0
    %1409 = vmatpush1.msra.mxu0 0.0
    %1410 = vmatprep.subr.mxu0 0.0
    %1411 = vmatpush1.msra.mxu0 0.0
    %1412 = vmatprep.subr.mxu0 0.0
    %1413 = vmatpush1.msra.mxu0 0.0
    %1414 = vmatprep.subr.mxu0 0.0
    %1415 = vmatpush1.msra.mxu0 0.0
    %1416 = vmatprep.subr.mxu0 0.0
    %1417 = vmatpush1.msra.mxu0 0.0
    %1418 = vmatprep.subr.mxu0 0.0
    %1419 = vmatpush1.msra.mxu0 0.0
    %1420 = vmatprep.subr.mxu0 0.0
    %1421 = vmatpush1.msra.mxu0 0.0
    %1422 = vmatprep.subr.mxu0 0.0
    %1423 = vmatpush1.msra.mxu0 0.0
    %1424 = vmatprep.subr.mxu0 0.0
    %1425 = vmatpush1.msra.mxu0 0.0
    %1426 = vmatprep.subr.mxu0 0.0
    %1427 = vmatpush1.msra.mxu0 0.0
    %1428 = vmatprep.subr.mxu0 0.0
    %1429 = vmatpush1.msra.mxu0 0.0
    %1430 = vmatprep.subr.mxu0 0.0
    %1431 = vmatpush1.msra.mxu0 0.0
    %1432 = vmatprep.subr.mxu0 0.0
    %1433 = vmatpush1.msra.mxu0 0.0
    %1434 = vmatprep.subr.mxu0 0.0
    %1435 = vmatpush1.msra.mxu0 0.0
    %1436 = vmatprep.subr.mxu0 0.0
    %1437 = vmatpush1.msra.mxu0 0.0
    %1438 = vmatprep.subr.mxu0 0.0
    %1439 = vmatpush1.msra.mxu0 0.0
    %1440 = vmatprep.subr.mxu0 0.0
    %1441 = vmatpush1.msra.mxu0 0.0
    %1442 = vmatprep.subr.mxu0 0.0
    %1443 = vmatpush1.msra.mxu0 0.0
    %1444 = vmatprep.subr.mxu0 0.0
    %1445 = vmatpush1.msra.mxu0 0.0
    %1446 = vmatprep.subr.mxu0 0.0
    %1447 = vmatpush1.msra.mxu0 0.0
    %1448 = vmatprep.subr.mxu0 0.0
    %1449 = vmatpush1.msra.mxu0 0.0
    %1450 = vmatprep.subr.mxu0 0.0
    %1451 = vmatpush1.msra.mxu0 0.0
    %1452 = vmatprep.subr.mxu0 0.0
    %1453 = vmatpush1.msra.mxu0 0.0
    %1454 = vmatprep.subr.mxu0 0.0
    %1455 = vmatpush1.msra.mxu0 0.0
    %1456 = vmatprep.subr.mxu0 0.0
    %1457 = vmatpush1.msra.mxu0 0.0
    %1458 = vmatprep.subr.mxu0 0.0
    %1459 = vmatpush1.msra.mxu0 0.0
    %1460 = vmatprep.subr.mxu0 0.0
    %1461 = vmatpush1.msra.mxu0 0.0
    %1462 = vmatprep.mubr.f32.mxu0 0.0
    %1463 = vmatmul.mubr.f32.gmra.mrb[0].mxu0 %v1393
    %v1464 = vpop.f32.mrb[0].mxu0
    %v1465 = vadd.f32 0.0, %v1464
    %v1466 = vpop.f32.mrb[0].mxu0
    %1467 = vmatprep.mubr.f32.mxu0 0.0
    %1468 = vmatmul.mubr.f32.gmra.mrb[0].mxu0 %v1396
    %v1469 = vpop.f32.mrb[0].mxu0
    %v1470 = vadd.f32 0.0, %v1469
    %v1471 = vpop.f32.mrb[0].mxu0
    %1472 = vdwg.mxu0
    %v1473 = vld [vmem:[%s13] sm:$0xff]
    %v1474 = vld [vmem:[%s13 + $0x8] sm:$0xff]
    %v1475 = vld [vmem:[%s13 + $0x10] sm:$0xff]
    %v1476 = vld [vmem:[%s13 + $0x18] sm:$0xff]
    %v1478 = vsel %vm293, %v337, 0
    %v1481 = vsel %vm293, %v338, 0
    %1483 = vmatprep.subr.mxu0 0.0
    %1484 = vmatpush1.msra.mxu0 %v1473
    %1485 = vmatprep.subr.mxu0 0.0
    %1486 = vmatpush1.msra.mxu0 %v1474
    %1487 = vmatprep.subr.mxu0 0.0
    %1488 = vmatpush1.msra.mxu0 %v1475
    %1489 = vmatprep.subr.mxu0 0.0
    %1490 = vmatpush1.msra.mxu0 %v1476
    %1491 = vmatprep.subr.mxu0 0.0
    %1492 = vmatpush1.msra.mxu0 0.0
    %1493 = vmatprep.subr.mxu0 0.0
    %1494 = vmatpush1.msra.mxu0 0.0
    %1495 = vmatprep.subr.mxu0 0.0
    %1496 = vmatpush1.msra.mxu0 0.0
    %1497 = vmatprep.subr.mxu0 0.0
    %1498 = vmatpush1.msra.mxu0 0.0
    %1499 = vmatprep.subr.mxu0 0.0
    %1500 = vmatpush1.msra.mxu0 0.0
    %1501 = vmatprep.subr.mxu0 0.0
    %1502 = vmatpush1.msra.mxu0 0.0
    %1503 = vmatprep.subr.mxu0 0.0
    %1504 = vmatpush1.msra.mxu0 0.0
    %1505 = vmatprep.subr.mxu0 0.0
    %1506 = vmatpush1.msra.mxu0 0.0
    %1507 = vmatprep.subr.mxu0 0.0
    %1508 = vmatpush1.msra.mxu0 0.0
    %1509 = vmatprep.subr.mxu0 0.0
    %1510 = vmatpush1.msra.mxu0 0.0
    %1511 = vmatprep.subr.mxu0 0.0
    %1512 = vmatpush1.msra.mxu0 0.0
    %1513 = vmatprep.subr.mxu0 0.0
    %1514 = vmatpush1.msra.mxu0 0.0
    %1515 = vmatprep.subr.mxu0 0.0
    %1516 = vmatpush1.msra.mxu0 0.0
    %1517 = vmatprep.subr.mxu0 0.0
    %1518 = vmatpush1.msra.mxu0 0.0
    %1519 = vmatprep.subr.mxu0 0.0
    %1520 = vmatpush1.msra.mxu0 0.0
    %1521 = vmatprep.subr.mxu0 0.0
    %1522 = vmatpush1.msra.mxu0 0.0
    %1523 = vmatprep.subr.mxu0 0.0
    %1524 = vmatpush1.msra.mxu0 0.0
    %1525 = vmatprep.subr.mxu0 0.0
    %1526 = vmatpush1.msra.mxu0 0.0
    %1527 = vmatprep.subr.mxu0 0.0
    %1528 = vmatpush1.msra.mxu0 0.0
    %1529 = vmatprep.subr.mxu0 0.0
    %1530 = vmatpush1.msra.mxu0 0.0
    %1531 = vmatprep.subr.mxu0 0.0
    %1532 = vmatpush1.msra.mxu0 0.0
    %1533 = vmatprep.subr.mxu0 0.0
    %1534 = vmatpush1.msra.mxu0 0.0
    %1535 = vmatprep.subr.mxu0 0.0
    %1536 = vmatpush1.msra.mxu0 0.0
    %1537 = vmatprep.subr.mxu0 0.0
    %1538 = vmatpush1.msra.mxu0 0.0
    %1539 = vmatprep.subr.mxu0 0.0
    %1540 = vmatpush1.msra.mxu0 0.0
    %1541 = vmatprep.subr.mxu0 0.0
    %1542 = vmatpush1.msra.mxu0 0.0
    %1543 = vmatprep.subr.mxu0 0.0
    %1544 = vmatpush1.msra.mxu0 0.0
    %1545 = vmatprep.subr.mxu0 0.0
    %1546 = vmatpush1.msra.mxu0 0.0
    %1547 = vmatprep.mubr.f32.mxu0 0.0
    %1548 = vmatmul.mubr.f32.gmra.mrb[0].mxu0 %v1478
    %v1549 = vpop.f32.mrb[0].mxu0
    %v1550 = vadd.f32 0.0, %v1549
    %v1551 = vpop.f32.mrb[0].mxu0
    %1552 = vmatprep.mubr.f32.mxu0 0.0
    %1553 = vmatmul.mubr.f32.gmra.mrb[0].mxu0 %v1481
    %v1554 = vpop.f32.mrb[0].mxu0
    %v1555 = vadd.f32 0.0, %v1554
    %v1556 = vpop.f32.mrb[0].mxu0
    %1557 = vdwg.mxu0
    %v1558 = vld [vmem:[#allocation13] sm:$0xff]
    %v1559 = vld [vmem:[#allocation13 + $0x8] sm:$0xff]
    %v1560 = vld [vmem:[#allocation13 + $0x10] sm:$0xff]
    %v1561 = vld [vmem:[#allocation13 + $0x18] sm:$0xff]
    %v1562 = vld [vmem:[%s15] sm:$0x1]
    %v1563 = vld [vmem:[%s16] sm:$0x1]
    %v1565 = vsel %vm440, %v1465, 0
    %v1568 = vsel %vm440, %v1470, 0
    %v1571 = vsel %vm440, %v1550, 0
    %v1574 = vsel %vm440, %v1555, 0
    %1576 = vmatprep.subr.mxu0 0.0
    %1577 = vmatpush1.xpose.msra.mxu0 %v1571
    %1578 = vmatprep.subr.mxu0 0.0
    %1579 = vmatpush1.xpose.msra.mxu0 %v1574
    %1580 = vmatprep.subr.mxu0 0.0
    %1581 = vmatpush1.xpose.msra.mxu0 0.0
    %1582 = vmatprep.subr.mxu0 0.0
    %1583 = vmatpush1.xpose.msra.mxu0 0.0
    %1584 = vmatprep.subr.mxu0 0.0
    %1585 = vmatpush1.xpose.msra.mxu0 0.0
    %1586 = vmatprep.subr.mxu0 0.0
    %1587 = vmatpush1.xpose.msra.mxu0 0.0
    %1588 = vmatprep.subr.mxu0 0.0
    %1589 = vmatpush1.xpose.msra.mxu0 0.0
    %1590 = vmatprep.subr.mxu0 0.0
    %1591 = vmatpush1.xpose.msra.mxu0 0.0
    %1592 = vmatprep.subr.mxu0 0.0
    %1593 = vmatpush1.xpose.msra.mxu0 0.0
    %1594 = vmatprep.subr.mxu0 0.0
    %1595 = vmatpush1.xpose.msra.mxu0 0.0
    %1596 = vmatprep.subr.mxu0 0.0
    %1597 = vmatpush1.xpose.msra.mxu0 0.0
    %1598 = vmatprep.subr.mxu0 0.0
    %1599 = vmatpush1.xpose.msra.mxu0 0.0
    %1600 = vmatprep.subr.mxu0 0.0
    %1601 = vmatpush1.xpose.msra.mxu0 0.0
    %1602 = vmatprep.subr.mxu0 0.0
    %1603 = vmatpush1.xpose.msra.mxu0 0.0
    %1604 = vmatprep.subr.mxu0 0.0
    %1605 = vmatpush1.xpose.msra.mxu0 0.0
    %1606 = vmatprep.subr.mxu0 0.0
    %1607 = vmatpush1.xpose.msra.mxu0 0.0
    %1608 = vmatprep.subr.mxu0 0.0
    %1609 = vmatpush1.xpose.msra.mxu0 0.0
    %1610 = vmatprep.subr.mxu0 0.0
    %1611 = vmatpush1.xpose.msra.mxu0 0.0
    %1612 = vmatprep.subr.mxu0 0.0
    %1613 = vmatpush1.xpose.msra.mxu0 0.0
    %1614 = vmatprep.subr.mxu0 0.0
    %1615 = vmatpush1.xpose.msra.mxu0 0.0
    %1616 = vmatprep.subr.mxu0 0.0
    %1617 = vmatpush1.xpose.msra.mxu0 0.0
    %1618 = vmatprep.subr.mxu0 0.0
    %1619 = vmatpush1.xpose.msra.mxu0 0.0
    %1620 = vmatprep.subr.mxu0 0.0
    %1621 = vmatpush1.xpose.msra.mxu0 0.0
    %1622 = vmatprep.subr.mxu0 0.0
    %1623 = vmatpush1.xpose.msra.mxu0 0.0
    %1624 = vmatprep.subr.mxu0 0.0
    %1625 = vmatpush1.xpose.msra.mxu0 0.0
    %1626 = vmatprep.subr.mxu0 0.0
    %1627 = vmatpush1.xpose.msra.mxu0 0.0
    %1628 = vmatprep.subr.mxu0 0.0
    %1629 = vmatpush1.xpose.msra.mxu0 0.0
    %1630 = vmatprep.subr.mxu0 0.0
    %1631 = vmatpush1.xpose.msra.mxu0 0.0
    %1632 = vmatprep.subr.mxu0 0.0
    %1633 = vmatpush1.xpose.msra.mxu0 0.0
    %1634 = vmatprep.subr.mxu0 0.0
    %1635 = vmatpush1.xpose.msra.mxu0 0.0
    %1636 = vmatprep.subr.mxu0 0.0
    %1637 = vmatpush1.xpose.msra.mxu0 0.0
    %1638 = vmatprep.subr.mxu0 0.0
    %1639 = vmatpush1.xpose.msra.mxu0 0.0
    %1640 = vmatprep.mubr.f32.mxu0 0.0
    %1641 = vmatmul.mubr.f32.gmra.mrb[0].mxu0 %v1565
    %v1642 = vpop.f32.mrb[0].mxu0
    %v1643 = vadd.f32 %v341, %v1642
    %v1644 = vpop.f32.mrb[0].mxu0
    %1645 = vmatprep.mubr.f32.mxu0 0.0
    %1646 = vmatmul.mubr.f32.gmra.mrb[0].mxu0 %v1568
    %v1647 = vpop.f32.mrb[0].mxu0
    %v1648 = vadd.f32 %v342, %v1647
    %v1649 = vpop.f32.mrb[0].mxu0
    %1650 = vdwg.mxu0
    %v1651 = vsel %vm524, %v1643, -inf
    %1652 = vmax.xlane.f32.xlu0 %v1651
    %v1653 = vpop.xlane.xlu0 %1652
    %v1654 = vsel %vm524, %v1648, -inf
    %1655 = vmax.xlane.f32.xlu0 %v1654
    %v1656 = vpop.xlane.xlu0 %1655
    %v1657 = vsub.f32 %v1643, %v1653
    %v1658 = vsub.f32 %v1648, %v1656
    %v1659 = vmul.f32 %v1657, 1.442695
    %v1660 = vpow.pop %v1659
    %v1661 = vmul.f32 %v1658, 1.442695
    %v1662 = vpow.pop %v1661
    %v1663 = vsel %vm524, %v1660, 0.0
    %1664 = vadd.xlane.f32.xlu0 %v1663
    %v1665 = vpop.xlane.xlu0 %1664
    %v1666 = vsel %vm524, %v1662, 0.0
    %1667 = vadd.xlane.f32.xlu0 %v1666
    %v1668 = vpop.xlane.xlu0 %1667
    %v1669 = vrcp.pop %v1665
    %v1670 = vrcp.pop %v1668
    %v1671 = vmul.f32 %v1660, %v1669
    %v1672 = vmul.f32 %v1662, %v1670
    %1673 = vrot.lane.b32.xlu0 %v1550, 96
    %v1674 = vpop.permute.xlu0 %1673
    %1675 = vrot.lane.b32.xlu0 %v1555, 96
    %v1676 = vpop.permute.xlu0 %1675
    %v1680 = vsel %vm524, %v1671, 0
    %v1683 = vsel %vm524, %v1672, 0
    %1685 = vmatprep.subr.mxu0 0.0
    %1686 = vmatpush1.msra.mxu0 %v1674
    %1687 = vmatprep.subr.mxu0 0.0
    %1688 = vmatpush1.msra.mxu0 %v1676
    %1689 = vmatprep.subr.mxu0 0.0
    %1690 = vmatpush1.msra.mxu0 0.0
    %1691 = vmatprep.subr.mxu0 0.0
    %1692 = vmatpush1.msra.mxu0 0.0
    %1693 = vmatprep.subr.mxu0 0.0
    %1694 = vmatpush1.msra.mxu0 0.0
    %1695 = vmatprep.subr.mxu0 0.0
    %1696 = vmatpush1.msra.mxu0 0.0
    %1697 = vmatprep.subr.mxu0 0.0
    %1698 = vmatpush1.msra.mxu0 0.0
    %1699 = vmatprep.subr.mxu0 0.0
    %1700 = vmatpush1.msra.mxu0 0.0
    %1701 = vmatprep.subr.mxu0 0.0
    %1702 = vmatpush1.msra.mxu0 0.0
    %1703 = vmatprep.subr.mxu0 0.0
    %1704 = vmatpush1.msra.mxu0 0.0
    %1705 = vmatprep.subr.mxu0 0.0
    %1706 = vmatpush1.msra.mxu0 0.0
    %1707 = vmatprep.subr.mxu0 0.0
    %1708 = vmatpush1.msra.mxu0 0.0
    %1709 = vmatprep.subr.mxu0 0.0
    %1710 = vmatpush1.msra.mxu0 0.0
    %1711 = vmatprep.subr.mxu0 0.0
    %1712 = vmatpush1.msra.mxu0 0.0
    %1713 = vmatprep.subr.mxu0 0.0
    %1714 = vmatpush1.msra.mxu0 0.0
    %1715 = vmatprep.subr.mxu0 0.0
    %1716 = vmatpush1.msra.mxu0 0.0
    %1717 = vmatprep.subr.mxu0 0.0
    %1718 = vmatpush1.msra.mxu0 0.0
    %1719 = vmatprep.subr.mxu0 0.0
    %1720 = vmatpush1.msra.mxu0 0.0
    %1721 = vmatprep.subr.mxu0 0.0
    %1722 = vmatpush1.msra.mxu0 0.0
    %1723 = vmatprep.subr.mxu0 0.0
    %1724 = vmatpush1.msra.mxu0 0.0
    %1725 = vmatprep.subr.mxu0 0.0
    %1726 = vmatpush1.msra.mxu0 0.0
    %1727 = vmatprep.subr.mxu0 0.0
    %1728 = vmatpush1.msra.mxu0 0.0
    %1729 = vmatprep.subr.mxu0 0.0
    %1730 = vmatpush1.msra.mxu0 0.0
    %1731 = vmatprep.subr.mxu0 0.0
    %1732 = vmatpush1.msra.mxu0 0.0
    %1733 = vmatprep.subr.mxu0 0.0
    %1734 = vmatpush1.msra.mxu0 0.0
    %1735 = vmatprep.subr.mxu0 0.0
    %1736 = vmatpush1.msra.mxu0 0.0
    %1737 = vmatprep.subr.mxu0 0.0
    %1738 = vmatpush1.msra.mxu0 0.0
    %1739 = vmatprep.subr.mxu0 0.0
    %1740 = vmatpush1.msra.mxu0 0.0
    %1741 = vmatprep.subr.mxu0 0.0
    %1742 = vmatpush1.msra.mxu0 0.0
    %1743 = vmatprep.subr.mxu0 0.0
    %1744 = vmatpush1.msra.mxu0 0.0
    %1745 = vmatprep.subr.mxu0 0.0
    %1746 = vmatpush1.msra.mxu0 0.0
    %1747 = vmatprep.subr.mxu0 0.0
    %1748 = vmatpush1.msra.mxu0 0.0
    %1749 = vmatprep.mubr.f32.mxu0 0.0
    %1750 = vmatmul.mubr.f32.gmra.mrb[0].mxu0 %v1680
    %v1751 = vpop.f32.mrb[0].mxu0
    %v1752 = vadd.f32 0.0, %v1751
    %v1753 = vpop.f32.mrb[0].mxu0
    %1754 = vmatprep.mubr.f32.mxu0 0.0
    %1755 = vmatmul.mubr.f32.gmra.mrb[0].mxu0 %v1683
    %v1756 = vpop.f32.mrb[0].mxu0
    %v1757 = vadd.f32 0.0, %v1756
    %v1758 = vpop.f32.mrb[0].mxu0
    %1759 = vdwg.mxu0
    %1760 = vrot.lane.b32.xlu0 %v1465, 120
    %v1761 = vpop.permute.xlu0 %1760
    %1762 = vrot.lane.b32.xlu0 %v1470, 120
    %v1763 = vpop.permute.xlu0 %1762
    %1764 = vrot.lane.b32.xlu0 %v1550, 120
    %v1765 = vpop.permute.xlu0 %1764
    %1766 = vrot.lane.b32.xlu0 %v1555, 120
    %v1767 = vpop.permute.xlu0 %1766
    %v1768 = vsel %vm440, %v1761, 0
    %v1770 = vsel %vm440, %v1763, 0
    %v1772 = vsel %vm440, %v1765, 0
    %v1774 = vsel %vm440, %v1767, 0
    %1776 = vmatprep.subr.mxu0 0.0
    %1777 = vmatpush1.xpose.msra.mxu0 %v1772
    %1778 = vmatprep.subr.mxu0 0.0
    %1779 = vmatpush1.xpose.msra.mxu0 %v1774
    %1780 = vmatprep.subr.mxu0 0.0
    %1781 = vmatpush1.xpose.msra.mxu0 0.0
    %1782 = vmatprep.subr.mxu0 0.0
    %1783 = vmatpush1.xpose.msra.mxu0 0.0
    %1784 = vmatprep.subr.mxu0 0.0
    %1785 = vmatpush1.xpose.msra.mxu0 0.0
    %1786 = vmatprep.subr.mxu0 0.0
    %1787 = vmatpush1.xpose.msra.mxu0 0.0
    %1788 = vmatprep.subr.mxu0 0.0
    %1789 = vmatpush1.xpose.msra.mxu0 0.0
    %1790 = vmatprep.subr.mxu0 0.0
    %1791 = vmatpush1.xpose.msra.mxu0 0.0
    %1792 = vmatprep.subr.mxu0 0.0
    %1793 = vmatpush1.xpose.msra.mxu0 0.0
    %1794 = vmatprep.subr.mxu0 0.0
    %1795 = vmatpush1.xpose.msra.mxu0 0.0
    %1796 = vmatprep.subr.mxu0 0.0
    %1797 = vmatpush1.xpose.msra.mxu0 0.0
    %1798 = vmatprep.subr.mxu0 0.0
    %1799 = vmatpush1.xpose.msra.mxu0 0.0
    %1800 = vmatprep.subr.mxu0 0.0
    %1801 = vmatpush1.xpose.msra.mxu0 0.0
    %1802 = vmatprep.subr.mxu0 0.0
    %1803 = vmatpush1.xpose.msra.mxu0 0.0
    %1804 = vmatprep.subr.mxu0 0.0
    %1805 = vmatpush1.xpose.msra.mxu0 0.0
    %1806 = vmatprep.subr.mxu0 0.0
    %1807 = vmatpush1.xpose.msra.mxu0 0.0
    %1808 = vmatprep.subr.mxu0 0.0
    %1809 = vmatpush1.xpose.msra.mxu0 0.0
    %1810 = vmatprep.subr.mxu0 0.0
    %1811 = vmatpush1.xpose.msra.mxu0 0.0
    %1812 = vmatprep.subr.mxu0 0.0
    %1813 = vmatpush1.xpose.msra.mxu0 0.0
    %1814 = vmatprep.subr.mxu0 0.0
    %1815 = vmatpush1.xpose.msra.mxu0 0.0
    %1816 = vmatprep.subr.mxu0 0.0
    %1817 = vmatpush1.xpose.msra.mxu0 0.0
    %1818 = vmatprep.subr.mxu0 0.0
    %1819 = vmatpush1.xpose.msra.mxu0 0.0
    %1820 = vmatprep.subr.mxu0 0.0
    %1821 = vmatpush1.xpose.msra.mxu0 0.0
    %1822 = vmatprep.subr.mxu0 0.0
    %1823 = vmatpush1.xpose.msra.mxu0 0.0
    %1824 = vmatprep.subr.mxu0 0.0
    %1825 = vmatpush1.xpose.msra.mxu0 0.0
    %1826 = vmatprep.subr.mxu0 0.0
    %1827 = vmatpush1.xpose.msra.mxu0 0.0
    %1828 = vmatprep.subr.mxu0 0.0
    %1829 = vmatpush1.xpose.msra.mxu0 0.0
    %1830 = vmatprep.subr.mxu0 0.0
    %1831 = vmatpush1.xpose.msra.mxu0 0.0
    %1832 = vmatprep.subr.mxu0 0.0
    %1833 = vmatpush1.xpose.msra.mxu0 0.0
    %1834 = vmatprep.subr.mxu0 0.0
    %1835 = vmatpush1.xpose.msra.mxu0 0.0
    %1836 = vmatprep.subr.mxu0 0.0
    %1837 = vmatpush1.xpose.msra.mxu0 0.0
    %1838 = vmatprep.subr.mxu0 0.0
    %1839 = vmatpush1.xpose.msra.mxu0 0.0
    %1840 = vmatprep.mubr.f32.mxu0 0.0
    %1841 = vmatmul.mubr.f32.gmra.mrb[0].mxu0 %v1768
    %v1842 = vpop.f32.mrb[0].mxu0
    %v1843 = vadd.f32 %v341, %v1842
    %v1844 = vpop.f32.mrb[0].mxu0
    %1845 = vmatprep.mubr.f32.mxu0 0.0
    %1846 = vmatmul.mubr.f32.gmra.mrb[0].mxu0 %v1770
    %v1847 = vpop.f32.mrb[0].mxu0
    %v1848 = vadd.f32 %v342, %v1847
    %v1849 = vpop.f32.mrb[0].mxu0
    %1850 = vdwg.mxu0
    %v1851 = vsel %vm524, %v1843, -inf
    %1852 = vmax.xlane.f32.xlu0 %v1851
    %v1853 = vpop.xlane.xlu0 %1852
    %v1854 = vsel %vm524, %v1848, -inf
    %1855 = vmax.xlane.f32.xlu0 %v1854
    %v1856 = vpop.xlane.xlu0 %1855
    %v1857 = vsub.f32 %v1843, %v1853
    %v1858 = vsub.f32 %v1848, %v1856
    %v1859 = vmul.f32 %v1857, 1.442695
    %v1860 = vpow.pop %v1859
    %v1861 = vmul.f32 %v1858, 1.442695
    %v1862 = vpow.pop %v1861
    %v1863 = vsel %vm524, %v1860, 0.0
    %1864 = vadd.xlane.f32.xlu0 %v1863
    %v1865 = vpop.xlane.xlu0 %1864
    %v1866 = vsel %vm524, %v1862, 0.0
    %1867 = vadd.xlane.f32.xlu0 %v1866
    %v1868 = vpop.xlane.xlu0 %1867
    %v1869 = vrcp.pop %v1865
    %v1870 = vrcp.pop %v1868
    %v1871 = vmul.f32 %v1860, %v1869
    %v1872 = vmul.f32 %v1862, %v1870
    %1873 = vrot.lane.b32.xlu0 %v1550, 88
    %v1874 = vpop.permute.xlu0 %1873
    %1875 = vrot.lane.b32.xlu0 %v1555, 88
    %v1876 = vpop.permute.xlu0 %1875
    %v1880 = vsel %vm524, %v1871, 0
    %v1883 = vsel %vm524, %v1872, 0
    %1885 = vmatprep.subr.mxu0 0.0
    %1886 = vmatpush1.msra.mxu0 %v1874
    %1887 = vmatprep.subr.mxu0 0.0
    %1888 = vmatpush1.msra.mxu0 %v1876
    %1889 = vmatprep.subr.mxu0 0.0
    %1890 = vmatpush1.msra.mxu0 0.0
    %1891 = vmatprep.subr.mxu0 0.0
    %1892 = vmatpush1.msra.mxu0 0.0
    %1893 = vmatprep.subr.mxu0 0.0
    %1894 = vmatpush1.msra.mxu0 0.0
    %1895 = vmatprep.subr.mxu0 0.0
    %1896 = vmatpush1.msra.mxu0 0.0
    %1897 = vmatprep.subr.mxu0 0.0
    %1898 = vmatpush1.msra.mxu0 0.0
    %1899 = vmatprep.subr.mxu0 0.0
    %1900 = vmatpush1.msra.mxu0 0.0
    %1901 = vmatprep.subr.mxu0 0.0
    %1902 = vmatpush1.msra.mxu0 0.0
    %1903 = vmatprep.subr.mxu0 0.0
    %1904 = vmatpush1.msra.mxu0 0.0
    %1905 = vmatprep.subr.mxu0 0.0
    %1906 = vmatpush1.msra.mxu0 0.0
    %1907 = vmatprep.subr.mxu0 0.0
    %1908 = vmatpush1.msra.mxu0 0.0
    %1909 = vmatprep.subr.mxu0 0.0
    %1910 = vmatpush1.msra.mxu0 0.0
    %1911 = vmatprep.subr.mxu0 0.0
    %1912 = vmatpush1.msra.mxu0 0.0
    %1913 = vmatprep.subr.mxu0 0.0
    %1914 = vmatpush1.msra.mxu0 0.0
    %1915 = vmatprep.subr.mxu0 0.0
    %1916 = vmatpush1.msra.mxu0 0.0
    %1917 = vmatprep.subr.mxu0 0.0
    %1918 = vmatpush1.msra.mxu0 0.0
    %1919 = vmatprep.subr.mxu0 0.0
    %1920 = vmatpush1.msra.mxu0 0.0
    %1921 = vmatprep.subr.mxu0 0.0
    %1922 = vmatpush1.msra.mxu0 0.0
    %1923 = vmatprep.subr.mxu0 0.0
    %1924 = vmatpush1.msra.mxu0 0.0
    %1925 = vmatprep.subr.mxu0 0.0
    %1926 = vmatpush1.msra.mxu0 0.0
    %1927 = vmatprep.subr.mxu0 0.0
    %1928 = vmatpush1.msra.mxu0 0.0
    %1929 = vmatprep.subr.mxu0 0.0
    %1930 = vmatpush1.msra.mxu0 0.0
    %1931 = vmatprep.subr.mxu0 0.0
    %1932 = vmatpush1.msra.mxu0 0.0
    %1933 = vmatprep.subr.mxu0 0.0
    %1934 = vmatpush1.msra.mxu0 0.0
    %1935 = vmatprep.subr.mxu0 0.0
    %1936 = vmatpush1.msra.mxu0 0.0
    %1937 = vmatprep.subr.mxu0 0.0
    %1938 = vmatpush1.msra.mxu0 0.0
    %1939 = vmatprep.subr.mxu0 0.0
    %1940 = vmatpush1.msra.mxu0 0.0
    %1941 = vmatprep.subr.mxu0 0.0
    %1942 = vmatpush1.msra.mxu0 0.0
    %1943 = vmatprep.subr.mxu0 0.0
    %1944 = vmatpush1.msra.mxu0 0.0
    %1945 = vmatprep.subr.mxu0 0.0
    %1946 = vmatpush1.msra.mxu0 0.0
    %1947 = vmatprep.subr.mxu0 0.0
    %1948 = vmatpush1.msra.mxu0 0.0
    %1949 = vmatprep.mubr.f32.mxu0 0.0
    %1950 = vmatmul.mubr.f32.gmra.mrb[0].mxu0 %v1880
    %v1951 = vpop.f32.mrb[0].mxu0
    %v1952 = vadd.f32 0.0, %v1951
    %v1953 = vpop.f32.mrb[0].mxu0
    %1954 = vmatprep.mubr.f32.mxu0 0.0
    %1955 = vmatmul.mubr.f32.gmra.mrb[0].mxu0 %v1883
    %v1956 = vpop.f32.mrb[0].mxu0
    %v1957 = vadd.f32 0.0, %v1956
    %v1958 = vpop.f32.mrb[0].mxu0
    %1959 = vdwg.mxu0
    %1960 = vrot.lane.b32.xlu0 %v1465, 112
    %v1961 = vpop.permute.xlu0 %1960
    %1962 = vrot.lane.b32.xlu0 %v1470, 112
    %v1963 = vpop.permute.xlu0 %1962
    %1964 = vrot.lane.b32.xlu0 %v1550, 112
    %v1965 = vpop.permute.xlu0 %1964
    %1966 = vrot.lane.b32.xlu0 %v1555, 112
    %v1967 = vpop.permute.xlu0 %1966
    %v1968 = vsel %vm440, %v1961, 0
    %v1970 = vsel %vm440, %v1963, 0
    %v1972 = vsel %vm440, %v1965, 0
    %v1974 = vsel %vm440, %v1967, 0
    %1976 = vmatprep.subr.mxu0 0.0
    %1977 = vmatpush1.xpose.msra.mxu0 %v1972
    %1978 = vmatprep.subr.mxu0 0.0
    %1979 = vmatpush1.xpose.msra.mxu0 %v1974
    %1980 = vmatprep.subr.mxu0 0.0
    %1981 = vmatpush1.xpose.msra.mxu0 0.0
    %1982 = vmatprep.subr.mxu0 0.0
    %1983 = vmatpush1.xpose.msra.mxu0 0.0
    %1984 = vmatprep.subr.mxu0 0.0
    %1985 = vmatpush1.xpose.msra.mxu0 0.0
    %1986 = vmatprep.subr.mxu0 0.0
    %1987 = vmatpush1.xpose.msra.mxu0 0.0
    %1988 = vmatprep.subr.mxu0 0.0
    %1989 = vmatpush1.xpose.msra.mxu0 0.0
    %1990 = vmatprep.subr.mxu0 0.0
    %1991 = vmatpush1.xpose.msra.mxu0 0.0
    %1992 = vmatprep.subr.mxu0 0.0
    %1993 = vmatpush1.xpose.msra.mxu0 0.0
    %1994 = vmatprep.subr.mxu0 0.0
    %1995 = vmatpush1.xpose.msra.mxu0 0.0
    %1996 = vmatprep.subr.mxu0 0.0
    %1997 = vmatpush1.xpose.msra.mxu0 0.0
    %1998 = vmatprep.subr.mxu0 0.0
    %1999 = vmatpush1.xpose.msra.mxu0 0.0
    %2000 = vmatprep.subr.mxu0 0.0
    %2001 = vmatpush1.xpose.msra.mxu0 0.0
    %2002 = vmatprep.subr.mxu0 0.0
    %2003 = vmatpush1.xpose.msra.mxu0 0.0
    %2004 = vmatprep.subr.mxu0 0.0
    %2005 = vmatpush1.xpose.msra.mxu0 0.0
    %2006 = vmatprep.subr.mxu0 0.0
    %2007 = vmatpush1.xpose.msra.mxu0 0.0
    %2008 = vmatprep.subr.mxu0 0.0
    %2009 = vmatpush1.xpose.msra.mxu0 0.0
    %2010 = vmatprep.subr.mxu0 0.0
    %2011 = vmatpush1.xpose.msra.mxu0 0.0
    %2012 = vmatprep.subr.mxu0 0.0
    %2013 = vmatpush1.xpose.msra.mxu0 0.0
    %2014 = vmatprep.subr.mxu0 0.0
    %2015 = vmatpush1.xpose.msra.mxu0 0.0
    %2016 = vmatprep.subr.mxu0 0.0
    %2017 = vmatpush1.xpose.msra.mxu0 0.0
    %2018 = vmatprep.subr.mxu0 0.0
    %2019 = vmatpush1.xpose.msra.mxu0 0.0
    %2020 = vmatprep.subr.mxu0 0.0
    %2021 = vmatpush1.xpose.msra.mxu0 0.0
    %2022 = vmatprep.subr.mxu0 0.0
    %2023 = vmatpush1.xpose.msra.mxu0 0.0
    %2024 = vmatprep.subr.mxu0 0.0
    %2025 = vmatpush1.xpose.msra.mxu0 0.0
    %2026 = vmatprep.subr.mxu0 0.0
    %2027 = vmatpush1.xpose.msra.mxu0 0.0
    %2028 = vmatprep.subr.mxu0 0.0
    %2029 = vmatpush1.xpose.msra.mxu0 0.0
    %2030 = vmatprep.subr.mxu0 0.0
    %2031 = vmatpush1.xpose.msra.mxu0 0.0
    %2032 = vmatprep.subr.mxu0 0.0
    %2033 = vmatpush1.xpose.msra.mxu0 0.0
    %2034 = vmatprep.subr.mxu0 0.0
    %2035 = vmatpush1.xpose.msra.mxu0 0.0
    %2036 = vmatprep.subr.mxu0 0.0
    %2037 = vmatpush1.xpose.msra.mxu0 0.0
    %2038 = vmatprep.subr.mxu0 0.0
    %2039 = vmatpush1.xpose.msra.mxu0 0.0
    %2040 = vmatprep.mubr.f32.mxu0 0.0
    %2041 = vmatmul.mubr.f32.gmra.mrb[0].mxu0 %v1968
    %v2042 = vpop.f32.mrb[0].mxu0
    %v2043 = vadd.f32 %v341, %v2042
    %v2044 = vpop.f32.mrb[0].mxu0
    %2045 = vmatprep.mubr.f32.mxu0 0.0
    %2046 = vmatmul.mubr.f32.gmra.mrb[0].mxu0 %v1970
    %v2047 = vpop.f32.mrb[0].mxu0
    %v2048 = vadd.f32 %v342, %v2047
    %v2049 = vpop.f32.mrb[0].mxu0
    %2050 = vdwg.mxu0
    %v2051 = vsel %vm524, %v2043, -inf
    %2052 = vmax.xlane.f32.xlu0 %v2051
    %v2053 = vpop.xlane.xlu0 %2052
    %v2054 = vsel %vm524, %v2048, -inf
    %2055 = vmax.xlane.f32.xlu0 %v2054
    %v2056 = vpop.xlane.xlu0 %2055
    %v2057 = vsub.f32 %v2043, %v2053
    %v2058 = vsub.f32 %v2048, %v2056
    %v2059 = vmul.f32 %v2057, 1.442695
    %v2060 = vpow.pop %v2059
    %v2061 = vmul.f32 %v2058, 1.442695
    %v2062 = vpow.pop %v2061
    %v2063 = vsel %vm524, %v2060, 0.0
    %2064 = vadd.xlane.f32.xlu0 %v2063
    %v2065 = vpop.xlane.xlu0 %2064
    %v2066 = vsel %vm524, %v2062, 0.0
    %2067 = vadd.xlane.f32.xlu0 %v2066
    %v2068 = vpop.xlane.xlu0 %2067
    %v2069 = vrcp.pop %v2065
    %v2070 = vrcp.pop %v2068
    %v2071 = vmul.f32 %v2060, %v2069
    %v2072 = vmul.f32 %v2062, %v2070
    %2073 = vrot.lane.b32.xlu0 %v1550, 80
    %v2074 = vpop.permute.xlu0 %2073
    %2075 = vrot.lane.b32.xlu0 %v1555, 80
    %v2076 = vpop.permute.xlu0 %2075
    %v2080 = vsel %vm524, %v2071, 0
    %v2083 = vsel %vm524, %v2072, 0
    %2085 = vmatprep.subr.mxu0 0.0
    %2086 = vmatpush1.msra.mxu0 %v2074
    %2087 = vmatprep.subr.mxu0 0.0
    %2088 = vmatpush1.msra.mxu0 %v2076
    %2089 = vmatprep.subr.mxu0 0.0
    %2090 = vmatpush1.msra.mxu0 0.0
    %2091 = vmatprep.subr.mxu0 0.0
    %2092 = vmatpush1.msra.mxu0 0.0
    %2093 = vmatprep.subr.mxu0 0.0
    %2094 = vmatpush1.msra.mxu0 0.0
    %2095 = vmatprep.subr.mxu0 0.0
    %2096 = vmatpush1.msra.mxu0 0.0
    %2097 = vmatprep.subr.mxu0 0.0
    %2098 = vmatpush1.msra.mxu0 0.0
    %2099 = vmatprep.subr.mxu0 0.0
    %2100 = vmatpush1.msra.mxu0 0.0
    %2101 = vmatprep.subr.mxu0 0.0
    %2102 = vmatpush1.msra.mxu0 0.0
    %2103 = vmatprep.subr.mxu0 0.0
    %2104 = vmatpush1.msra.mxu0 0.0
    %2105 = vmatprep.subr.mxu0 0.0
    %2106 = vmatpush1.msra.mxu0 0.0
    %2107 = vmatprep.subr.mxu0 0.0
    %2108 = vmatpush1.msra.mxu0 0.0
    %2109 = vmatprep.subr.mxu0 0.0
    %2110 = vmatpush1.msra.mxu0 0.0
    %2111 = vmatprep.subr.mxu0 0.0
    %2112 = vmatpush1.msra.mxu0 0.0
    %2113 = vmatprep.subr.mxu0 0.0
    %2114 = vmatpush1.msra.mxu0 0.0
    %2115 = vmatprep.subr.mxu0 0.0
    %2116 = vmatpush1.msra.mxu0 0.0
    %2117 = vmatprep.subr.mxu0 0.0
    %2118 = vmatpush1.msra.mxu0 0.0
    %2119 = vmatprep.subr.mxu0 0.0
    %2120 = vmatpush1.msra.mxu0 0.0
    %2121 = vmatprep.subr.mxu0 0.0
    %2122 = vmatpush1.msra.mxu0 0.0
    %2123 = vmatprep.subr.mxu0 0.0
    %2124 = vmatpush1.msra.mxu0 0.0
    %2125 = vmatprep.subr.mxu0 0.0
    %2126 = vmatpush1.msra.mxu0 0.0
    %2127 = vmatprep.subr.mxu0 0.0
    %2128 = vmatpush1.msra.mxu0 0.0
    %2129 = vmatprep.subr.mxu0 0.0
    %2130 = vmatpush1.msra.mxu0 0.0
    %2131 = vmatprep.subr.mxu0 0.0
    %2132 = vmatpush1.msra.mxu0 0.0
    %2133 = vmatprep.subr.mxu0 0.0
    %2134 = vmatpush1.msra.mxu0 0.0
    %2135 = vmatprep.subr.mxu0 0.0
    %2136 = vmatpush1.msra.mxu0 0.0
    %2137 = vmatprep.subr.mxu0 0.0
    %2138 = vmatpush1.msra.mxu0 0.0
    %2139 = vmatprep.subr.mxu0 0.0
    %2140 = vmatpush1.msra.mxu0 0.0
    %2141 = vmatprep.subr.mxu0 0.0
    %2142 = vmatpush1.msra.mxu0 0.0
    %2143 = vmatprep.subr.mxu0 0.0
    %2144 = vmatpush1.msra.mxu0 0.0
    %2145 = vmatprep.subr.mxu0 0.0
    %2146 = vmatpush1.msra.mxu0 0.0
    %2147 = vmatprep.subr.mxu0 0.0
    %2148 = vmatpush1.msra.mxu0 0.0
    %2149 = vmatprep.mubr.f32.mxu0 0.0
    %2150 = vmatmul.mubr.f32.gmra.mrb[0].mxu0 %v2080
    %v2151 = vpop.f32.mrb[0].mxu0
    %v2152 = vadd.f32 0.0, %v2151
    %v2153 = vpop.f32.mrb[0].mxu0
    %2154 = vmatprep.mubr.f32.mxu0 0.0
    %2155 = vmatmul.mubr.f32.gmra.mrb[0].mxu0 %v2083
    %v2156 = vpop.f32.mrb[0].mxu0
    %v2157 = vadd.f32 0.0, %v2156
    %v2158 = vpop.f32.mrb[0].mxu0
    %2159 = vdwg.mxu0
    %2160 = vrot.lane.b32.xlu0 %v1465, 104
    %v2161 = vpop.permute.xlu0 %2160
    %2162 = vrot.lane.b32.xlu0 %v1470, 104
    %v2163 = vpop.permute.xlu0 %2162
    %2164 = vrot.lane.b32.xlu0 %v1550, 104
    %v2165 = vpop.permute.xlu0 %2164
    %2166 = vrot.lane.b32.xlu0 %v1555, 104
    %v2167 = vpop.permute.xlu0 %2166
    %v2168 = vsel %vm440, %v2161, 0
    %v2170 = vsel %vm440, %v2163, 0
    %v2172 = vsel %vm440, %v2165, 0
    %v2174 = vsel %vm440, %v2167, 0
    %2176 = vmatprep.subr.mxu0 0.0
    %2177 = vmatpush1.xpose.msra.mxu0 %v2172
    %2178 = vmatprep.subr.mxu0 0.0
    %2179 = vmatpush1.xpose.msra.mxu0 %v2174
    %2180 = vmatprep.subr.mxu0 0.0
    %2181 = vmatpush1.xpose.msra.mxu0 0.0
    %2182 = vmatprep.subr.mxu0 0.0
    %2183 = vmatpush1.xpose.msra.mxu0 0.0
    %2184 = vmatprep.subr.mxu0 0.0
    %2185 = vmatpush1.xpose.msra.mxu0 0.0
    %2186 = vmatprep.subr.mxu0 0.0
    %2187 = vmatpush1.xpose.msra.mxu0 0.0
    %2188 = vmatprep.subr.mxu0 0.0
    %2189 = vmatpush1.xpose.msra.mxu0 0.0
    %2190 = vmatprep.subr.mxu0 0.0
    %2191 = vmatpush1.xpose.msra.mxu0 0.0
    %2192 = vmatprep.subr.mxu0 0.0
    %2193 = vmatpush1.xpose.msra.mxu0 0.0
    %2194 = vmatprep.subr.mxu0 0.0
    %2195 = vmatpush1.xpose.msra.mxu0 0.0
    %2196 = vmatprep.subr.mxu0 0.0
    %2197 = vmatpush1.xpose.msra.mxu0 0.0
    %2198 = vmatprep.subr.mxu0 0.0
    %2199 = vmatpush1.xpose.msra.mxu0 0.0
    %2200 = vmatprep.subr.mxu0 0.0
    %2201 = vmatpush1.xpose.msra.mxu0 0.0
    %2202 = vmatprep.subr.mxu0 0.0
    %2203 = vmatpush1.xpose.msra.mxu0 0.0
    %2204 = vmatprep.subr.mxu0 0.0
    %2205 = vmatpush1.xpose.msra.mxu0 0.0
    %2206 = vmatprep.subr.mxu0 0.0
    %2207 = vmatpush1.xpose.msra.mxu0 0.0
    %2208 = vmatprep.subr.mxu0 0.0
    %2209 = vmatpush1.xpose.msra.mxu0 0.0
    %2210 = vmatprep.subr.mxu0 0.0
    %2211 = vmatpush1.xpose.msra.mxu0 0.0
    %2212 = vmatprep.subr.mxu0 0.0
    %2213 = vmatpush1.xpose.msra.mxu0 0.0
    %2214 = vmatprep.subr.mxu0 0.0
    %2215 = vmatpush1.xpose.msra.mxu0 0.0
    %2216 = vmatprep.subr.mxu0 0.0
    %2217 = vmatpush1.xpose.msra.mxu0 0.0
    %2218 = vmatprep.subr.mxu0 0.0
    %2219 = vmatpush1.xpose.msra.mxu0 0.0
    %2220 = vmatprep.subr.mxu0 0.0
    %2221 = vmatpush1.xpose.msra.mxu0 0.0
    %2222 = vmatprep.subr.mxu0 0.0
    %2223 = vmatpush1.xpose.msra.mxu0 0.0
    %2224 = vmatprep.subr.mxu0 0.0
    %2225 = vmatpush1.xpose.msra.mxu0 0.0
    %2226 = vmatprep.subr.mxu0 0.0
    %2227 = vmatpush1.xpose.msra.mxu0 0.0
    %2228 = vmatprep.subr.mxu0 0.0
    %2229 = vmatpush1.xpose.msra.mxu0 0.0
    %2230 = vmatprep.subr.mxu0 0.0
    %2231 = vmatpush1.xpose.msra.mxu0 0.0
    %2232 = vmatprep.subr.mxu0 0.0
    %2233 = vmatpush1.xpose.msra.mxu0 0.0
    %2234 = vmatprep.subr.mxu0 0.0
    %2235 = vmatpush1.xpose.msra.mxu0 0.0
    %2236 = vmatprep.subr.mxu0 0.0
    %2237 = vmatpush1.xpose.msra.mxu0 0.0
    %2238 = vmatprep.subr.mxu0 0.0
    %2239 = vmatpush1.xpose.msra.mxu0 0.0
    %2240 = vmatprep.mubr.f32.mxu0 0.0
    %2241 = vmatmul.mubr.f32.gmra.mrb[0].mxu0 %v2168
    %v2242 = vpop.f32.mrb[0].mxu0
    %v2243 = vadd.f32 %v341, %v2242
    %v2244 = vpop.f32.mrb[0].mxu0
    %2245 = vmatprep.mubr.f32.mxu0 0.0
    %2246 = vmatmul.mubr.f32.gmra.mrb[0].mxu0 %v2170
    %v2247 = vpop.f32.mrb[0].mxu0
    %v2248 = vadd.f32 %v342, %v2247
    %v2249 = vpop.f32.mrb[0].mxu0
    %2250 = vdwg.mxu0
    %v2251 = vsel %vm524, %v2243, -inf
    %2252 = vmax.xlane.f32.xlu0 %v2251
    %v2253 = vpop.xlane.xlu0 %2252
    %v2254 = vsel %vm524, %v2248, -inf
    %2255 = vmax.xlane.f32.xlu0 %v2254
    %v2256 = vpop.xlane.xlu0 %2255
    %v2257 = vsub.f32 %v2243, %v2253
    %v2258 = vsub.f32 %v2248, %v2256
    %v2259 = vmul.f32 %v2257, 1.442695
    %v2260 = vpow.pop %v2259
    %v2261 = vmul.f32 %v2258, 1.442695
    %v2262 = vpow.pop %v2261
    %v2263 = vsel %vm524, %v2260, 0.0
    %2264 = vadd.xlane.f32.xlu0 %v2263
    %v2265 = vpop.xlane.xlu0 %2264
    %v2266 = vsel %vm524, %v2262, 0.0
    %2267 = vadd.xlane.f32.xlu0 %v2266
    %v2268 = vpop.xlane.xlu0 %2267
    %v2269 = vrcp.pop %v2265
    %v2270 = vrcp.pop %v2268
    %v2271 = vmul.f32 %v2260, %v2269
    %v2272 = vmul.f32 %v2262, %v2270
    %2273 = vrot.lane.b32.xlu0 %v1550, 72
    %v2274 = vpop.permute.xlu0 %2273
    %2275 = vrot.lane.b32.xlu0 %v1555, 72
    %v2276 = vpop.permute.xlu0 %2275
    %v2280 = vsel %vm524, %v2271, 0
    %v2283 = vsel %vm524, %v2272, 0
    %2285 = vmatprep.subr.mxu0 0.0
    %2286 = vmatpush1.msra.mxu0 %v2274
    %2287 = vmatprep.subr.mxu0 0.0
    %2288 = vmatpush1.msra.mxu0 %v2276
    %2289 = vmatprep.subr.mxu0 0.0
    %2290 = vmatpush1.msra.mxu0 0.0
    %2291 = vmatprep.subr.mxu0 0.0
    %2292 = vmatpush1.msra.mxu0 0.0
    %2293 = vmatprep.subr.mxu0 0.0
    %2294 = vmatpush1.msra.mxu0 0.0
    %2295 = vmatprep.subr.mxu0 0.0
    %2296 = vmatpush1.msra.mxu0 0.0
    %2297 = vmatprep.subr.mxu0 0.0
    %2298 = vmatpush1.msra.mxu0 0.0
    %2299 = vmatprep.subr.mxu0 0.0
    %2300 = vmatpush1.msra.mxu0 0.0
    %2301 = vmatprep.subr.mxu0 0.0
    %2302 = vmatpush1.msra.mxu0 0.0
    %2303 = vmatprep.subr.mxu0 0.0
    %2304 = vmatpush1.msra.mxu0 0.0
    %2305 = vmatprep.subr.mxu0 0.0
    %2306 = vmatpush1.msra.mxu0 0.0
    %2307 = vmatprep.subr.mxu0 0.0
    %2308 = vmatpush1.msra.mxu0 0.0
    %2309 = vmatprep.subr.mxu0 0.0
    %2310 = vmatpush1.msra.mxu0 0.0
    %2311 = vmatprep.subr.mxu0 0.0
    %2312 = vmatpush1.msra.mxu0 0.0
    %2313 = vmatprep.subr.mxu0 0.0
    %2314 = vmatpush1.msra.mxu0 0.0
    %2315 = vmatprep.subr.mxu0 0.0
    %2316 = vmatpush1.msra.mxu0 0.0
    %2317 = vmatprep.subr.mxu0 0.0
    %2318 = vmatpush1.msra.mxu0 0.0
    %2319 = vmatprep.subr.mxu0 0.0
    %2320 = vmatpush1.msra.mxu0 0.0
    %2321 = vmatprep.subr.mxu0 0.0
    %2322 = vmatpush1.msra.mxu0 0.0
    %2323 = vmatprep.subr.mxu0 0.0
    %2324 = vmatpush1.msra.mxu0 0.0
    %2325 = vmatprep.subr.mxu0 0.0
    %2326 = vmatpush1.msra.mxu0 0.0
    %2327 = vmatprep.subr.mxu0 0.0
    %2328 = vmatpush1.msra.mxu0 0.0
    %2329 = vmatprep.subr.mxu0 0.0
    %2330 = vmatpush1.msra.mxu0 0.0
    %2331 = vmatprep.subr.mxu0 0.0
    %2332 = vmatpush1.msra.mxu0 0.0
    %2333 = vmatprep.subr.mxu0 0.0
    %2334 = vmatpush1.msra.mxu0 0.0
    %2335 = vmatprep.subr.mxu0 0.0
    %2336 = vmatpush1.msra.mxu0 0.0
    %2337 = vmatprep.subr.mxu0 0.0
    %2338 = vmatpush1.msra.mxu0 0.0
    %2339 = vmatprep.subr.mxu0 0.0
    %2340 = vmatpush1.msra.mxu0 0.0
    %2341 = vmatprep.subr.mxu0 0.0
    %2342 = vmatpush1.msra.mxu0 0.0
    %2343 = vmatprep.subr.mxu0 0.0
    %2344 = vmatpush1.msra.mxu0 0.0
    %2345 = vmatprep.subr.mxu0 0.0
    %2346 = vmatpush1.msra.mxu0 0.0
    %2347 = vmatprep.subr.mxu0 0.0
    %2348 = vmatpush1.msra.mxu0 0.0
    %2349 = vmatprep.mubr.f32.mxu0 0.0
    %2350 = vmatmul.mubr.f32.gmra.mrb[0].mxu0 %v2280
    %v2351 = vpop.f32.mrb[0].mxu0
    %v2352 = vadd.f32 0.0, %v2351
    %v2353 = vpop.f32.mrb[0].mxu0
    %2354 = vmatprep.mubr.f32.mxu0 0.0
    %2355 = vmatmul.mubr.f32.gmra.mrb[0].mxu0 %v2283
    %v2356 = vpop.f32.mrb[0].mxu0
    %v2357 = vadd.f32 0.0, %v2356
    %v2358 = vpop.f32.mrb[0].mxu0
    %2359 = vdwg.mxu0
    %2362 = vrot.lane.b32.xlu0 %v1952, 8
    %v2363 = vpop.permute.xlu0 %2362
    %2364 = vrot.lane.b32.xlu0 %v1957, 8
    %v2365 = vpop.permute.xlu0 %2364
    %2370 = vrot.lane.b32.xlu0 %v2152, 16
    %v2371 = vpop.permute.xlu0 %2370
    %2372 = vrot.lane.b32.xlu0 %v2157, 16
    %v2373 = vpop.permute.xlu0 %2372
    %2378 = vrot.lane.b32.xlu0 %v2352, 24
    %v2379 = vpop.permute.xlu0 %2378
    %2380 = vrot.lane.b32.xlu0 %v2357, 24
    %v2381 = vpop.permute.xlu0 %2380
    %v2384 = vsel %vm440, %v1752, %v2363
    %v2385 = vsel %vm440, %v1757, %v2365
    %v2386 = vsel %vm524, %v2384, %v2371
    %v2387 = vsel %vm524, %v2385, %v2373
    %v2388 = vsel %vm1262, %v2386, %v2379
    %v2389 = vsel %vm1262, %v2387, %v2381
    %v2391 = vsel %vm293, %v2388, 0
    %v2394 = vsel %vm293, %v2389, 0
    %2396 = vmatprep.subr.mxu0 0.0
    %2397 = vmatpush1.msra.mxu0 %v1558
    %2398 = vmatprep.subr.mxu0 0.0
    %2399 = vmatpush1.msra.mxu0 %v1559
    %2400 = vmatprep.subr.mxu0 0.0
    %2401 = vmatpush1.msra.mxu0 %v1560
    %2402 = vmatprep.subr.mxu0 0.0
    %2403 = vmatpush1.msra.mxu0 %v1561
    %2404 = vmatprep.subr.mxu0 0.0
    %2405 = vmatpush1.msra.mxu0 0.0
    %2406 = vmatprep.subr.mxu0 0.0
    %2407 = vmatpush1.msra.mxu0 0.0
    %2408 = vmatprep.subr.mxu0 0.0
    %2409 = vmatpush1.msra.mxu0 0.0
    %2410 = vmatprep.subr.mxu0 0.0
    %2411 = vmatpush1.msra.mxu0 0.0
    %2412 = vmatprep.subr.mxu0 0.0
    %2413 = vmatpush1.msra.mxu0 0.0
    %2414 = vmatprep.subr.mxu0 0.0
    %2415 = vmatpush1.msra.mxu0 0.0
    %2416 = vmatprep.subr.mxu0 0.0
    %2417 = vmatpush1.msra.mxu0 0.0
    %2418 = vmatprep.subr.mxu0 0.0
    %2419 = vmatpush1.msra.mxu0 0.0
    %2420 = vmatprep.subr.mxu0 0.0
    %2421 = vmatpush1.msra.mxu0 0.0
    %2422 = vmatprep.subr.mxu0 0.0
    %2423 = vmatpush1.msra.mxu0 0.0
    %2424 = vmatprep.subr.mxu0 0.0
    %2425 = vmatpush1.msra.mxu0 0.0
    %2426 = vmatprep.subr.mxu0 0.0
    %2427 = vmatpush1.msra.mxu0 0.0
    %2428 = vmatprep.subr.mxu0 0.0
    %2429 = vmatpush1.msra.mxu0 0.0
    %2430 = vmatprep.subr.mxu0 0.0
    %2431 = vmatpush1.msra.mxu0 0.0
    %2432 = vmatprep.subr.mxu0 0.0
    %2433 = vmatpush1.msra.mxu0 0.0
    %2434 = vmatprep.subr.mxu0 0.0
    %2435 = vmatpush1.msra.mxu0 0.0
    %2436 = vmatprep.subr.mxu0 0.0
    %2437 = vmatpush1.msra.mxu0 0.0
    %2438 = vmatprep.subr.mxu0 0.0
    %2439 = vmatpush1.msra.mxu0 0.0
    %2440 = vmatprep.subr.mxu0 0.0
    %2441 = vmatpush1.msra.mxu0 0.0
    %2442 = vmatprep.subr.mxu0 0.0
    %2443 = vmatpush1.msra.mxu0 0.0
    %2444 = vmatprep.subr.mxu0 0.0
    %2445 = vmatpush1.msra.mxu0 0.0
    %2446 = vmatprep.subr.mxu0 0.0
    %2447 = vmatpush1.msra.mxu0 0.0
    %2448 = vmatprep.subr.mxu0 0.0
    %2449 = vmatpush1.msra.mxu0 0.0
    %2450 = vmatprep.subr.mxu0 0.0
    %2451 = vmatpush1.msra.mxu0 0.0
    %2452 = vmatprep.subr.mxu0 0.0
    %2453 = vmatpush1.msra.mxu0 0.0
    %2454 = vmatprep.subr.mxu0 0.0
    %2455 = vmatpush1.msra.mxu0 0.0
    %2456 = vmatprep.subr.mxu0 0.0
    %2457 = vmatpush1.msra.mxu0 0.0
    %2458 = vmatprep.subr.mxu0 0.0
    %2459 = vmatpush1.msra.mxu0 0.0
    %2460 = vmatprep.mubr.f32.mxu0 0.0
    %2461 = vmatmul.mubr.f32.gmra.mrb[0].mxu0 %v2391
    %v2462 = vpop.f32.mrb[0].mxu0
    %v2463 = vadd.f32 %v1386, %v2462
    %v2464 = vpop.f32.mrb[0].mxu0
    %2465 = vmatprep.mubr.f32.mxu0 0.0
    %2466 = vmatmul.mubr.f32.gmra.mrb[0].mxu0 %v2394
    %v2467 = vpop.f32.mrb[0].mxu0
    %v2468 = vadd.f32 %v1387, %v2467
    %v2469 = vpop.f32.mrb[0].mxu0
    %2470 = vdwg.mxu0
    %v2471 = vsel %vm293, %v2463, 0.0
    %2472 = vadd.xlane.f32.xlu0 %v2471
    %v2473 = vpop.xlane.xlu0 %2472
    %v2474 = vsel %vm293, %v2468, 0.0
    %2475 = vadd.xlane.f32.xlu0 %v2474
    %v2476 = vpop.xlane.xlu0 %2475
    %v2477 = vmul.f32 %v2473, %v300
    %v2478 = vmul.f32 %v2476, %v300
    %v2479 = vsub.f32 %v2463, %v2477
    %v2480 = vsub.f32 %v2468, %v2478
    %v2481 = vmul.f32 %v2479, %v2479
    %v2482 = vmul.f32 %v2480, %v2480
    %v2483 = vsel %vm293, %v2481, 0.0
    %2484 = vadd.xlane.f32.xlu0 %v2483
    %v2485 = vpop.xlane.xlu0 %2484
    %v2486 = vsel %vm293, %v2482, 0.0
    %2487 = vadd.xlane.f32.xlu0 %v2486
    %v2488 = vpop.xlane.xlu0 %2487
    %v2489 = vmul.f32 %v2485, %v300
    %v2490 = vmul.f32 %v2488, %v300
    %v2491 = vadd.f32 %v2489, 1e-06
    %v2492 = vadd.f32 %v2490, 1e-06
    %v2493 = vrsqrt.pop %v2491
    %v2494 = vrsqrt.pop %v2492
    %v2495 = vmul.f32 %v2479, %v2493
    %v2496 = vmul.f32 %v2480, %v2494
    %v2498 = vlaneseq
    %v2499 = vshrl.u32 %v2498, 7
    %v2500 = vsub.s32 0, %v2499
    %v2501 = vrot.slane %v1562, %v2500
    %v2503 = vmul.f32 %v2495, %v2501
    %v2504 = vmul.f32 %v2496, %v2501
    %v2506 = vlaneseq
    %v2507 = vshrl.u32 %v2506, 7
    %v2508 = vsub.s32 0, %v2507
    %v2509 = vrot.slane %v1563, %v2508
    %v2511 = vadd.f32 %v2503, %v2509
    %v2512 = vadd.f32 %v2504, %v2509
    %v2513 = vld [vmem:[#allocation14] sm:$0xff]
    %v2514 = vld [vmem:[#allocation14 + $0x8] sm:$0xff]
    %v2515 = vld [vmem:[#allocation14 + $0x10] sm:$0xff]
    %v2516 = vld [vmem:[#allocation14 + $0x18] sm:$0xff]
    %v2517 = vld [vmem:[%s18] sm:$0x1]
    %v2519 = vlaneseq
    %v2520 = vshrl.u32 %v2519, 7
    %v2521 = vsub.s32 0, %v2520
    %v2522 = vrot.slane %v2517, %v2521
    %v2525 = vsel %vm293, %v2511, 0
    %v2528 = vsel %vm293, %v2512, 0
    %2530 = vmatprep.subr.mxu0 0.0
    %2531 = vmatpush1.msra.mxu0 %v2513
    %2532 = vmatprep.subr.mxu0 0.0
    %2533 = vmatpush1.msra.mxu0 %v2514
    %2534 = vmatprep.subr.mxu0 0.0
    %2535 = vmatpush1.msra.mxu0 %v2515
    %2536 = vmatprep.subr.mxu0 0.0
    %2537 = vmatpush1.msra.mxu0 %v2516
    %2538 = vmatprep.subr.mxu0 0.0
    %2539 = vmatpush1.msra.mxu0 0.0
    %2540 = vmatprep.subr.mxu0 0.0
    %2541 = vmatpush1.msra.mxu0 0.0
    %2542 = vmatprep.subr.mxu0 0.0
    %2543 = vmatpush1.msra.mxu0 0.0
    %2544 = vmatprep.subr.mxu0 0.0
    %2545 = vmatpush1.msra.mxu0 0.0
    %2546 = vmatprep.subr.mxu0 0.0
    %2547 = vmatpush1.msra.mxu0 0.0
    %2548 = vmatprep.subr.mxu0 0.0
    %2549 = vmatpush1.msra.mxu0 0.0
    %2550 = vmatprep.subr.mxu0 0.0
    %2551 = vmatpush1.msra.mxu0 0.0
    %2552 = vmatprep.subr.mxu0 0.0
    %2553 = vmatpush1.msra.mxu0 0.0
    %2554 = vmatprep.subr.mxu0 0.0
    %2555 = vmatpush1.msra.mxu0 0.0
    %2556 = vmatprep.subr.mxu0 0.0
    %2557 = vmatpush1.msra.mxu0 0.0
    %2558 = vmatprep.subr.mxu0 0.0
    %2559 = vmatpush1.msra.mxu0 0.0
    %2560 = vmatprep.subr.mxu0 0.0
    %2561 = vmatpush1.msra.mxu0 0.0
    %2562 = vmatprep.subr.mxu0 0.0
    %2563 = vmatpush1.msra.mxu0 0.0
    %2564 = vmatprep.subr.mxu0 0.0
    %2565 = vmatpush1.msra.mxu0 0.0
    %2566 = vmatprep.subr.mxu0 0.0
    %2567 = vmatpush1.msra.mxu0 0.0
    %2568 = vmatprep.subr.mxu0 0.0
    %2569 = vmatpush1.msra.mxu0 0.0
    %2570 = vmatprep.subr.mxu0 0.0
    %2571 = vmatpush1.msra.mxu0 0.0
    %2572 = vmatprep.subr.mxu0 0.0
    %2573 = vmatpush1.msra.mxu0 0.0
    %2574 = vmatprep.subr.mxu0 0.0
    %2575 = vmatpush1.msra.mxu0 0.0
    %2576 = vmatprep.subr.mxu0 0.0
    %2577 = vmatpush1.msra.mxu0 0.0
    %2578 = vmatprep.subr.mxu0 0.0
    %2579 = vmatpush1.msra.mxu0 0.0
    %2580 = vmatprep.subr.mxu0 0.0
    %2581 = vmatpush1.msra.mxu0 0.0
    %2582 = vmatprep.subr.mxu0 0.0
    %2583 = vmatpush1.msra.mxu0 0.0
    %2584 = vmatprep.subr.mxu0 0.0
    %2585 = vmatpush1.msra.mxu0 0.0
    %2586 = vmatprep.subr.mxu0 0.0
    %2587 = vmatpush1.msra.mxu0 0.0
    %2588 = vmatprep.subr.mxu0 0.0
    %2589 = vmatpush1.msra.mxu0 0.0
    %2590 = vmatprep.subr.mxu0 0.0
    %2591 = vmatpush1.msra.mxu0 0.0
    %2592 = vmatprep.subr.mxu0 0.0
    %2593 = vmatpush1.msra.mxu0 0.0
    %2594 = vmatprep.mubr.f32.mxu0 0.0
    %2595 = vmatmul.mubr.f32.gmra.mrb[0].mxu0 %v2525
    %v2596 = vpop.f32.mrb[0].mxu0
    %v2597 = vadd.f32 %v2522, %v2596
    %v2598 = vpop.f32.mrb[0].mxu0
    %2599 = vmatprep.mubr.f32.mxu0 0.0
    %2600 = vmatmul.mubr.f32.gmra.mrb[0].mxu0 %v2528
    %v2601 = vpop.f32.mrb[0].mxu0
    %v2602 = vadd.f32 %v2522, %v2601
    %v2603 = vpop.f32.mrb[0].mxu0
    %2604 = vdwg.mxu0
    %v2605 = vmax.f32 %v2597, 0.0
    %v2606 = vmax.f32 %v2602, 0.0
    %v2607 = vld [vmem:[%s19] sm:$0xff]
    %v2608 = vld [vmem:[%s19 + $0x8] sm:$0xff]
    %v2609 = vld [vmem:[%s19 + $0x10] sm:$0xff]
    %v2610 = vld [vmem:[%s19 + $0x18] sm:$0xff]
    %v2611 = vld [vmem:[%s19 + $0x20] sm:$0xff]
    %v2612 = vld [vmem:[%s19 + $0x28] sm:$0xff]
    %v2613 = vld [vmem:[%s19 + $0x30] sm:$0xff]
    %v2614 = vld [vmem:[%s19 + $0x38] sm:$0xff]
    %v2615 = vld [vmem:[%s20] sm:$0x1]
    %v2617 = vlaneseq
    %v2618 = vshrl.u32 %v2617, 7
    %v2619 = vsub.s32 0, %v2618
    %v2620 = vrot.slane %v2615, %v2619
    %vm2622 = vcmask 523264
    %v2624 = vsel %vm2622, %v2605, 0
    %v2627 = vsel %vm2622, %v2606, 0
    %2629 = vmatprep.subr.mxu0 0.0
    %2630 = vmatpush1.msra.mxu0 %v2607
    %2631 = vmatprep.subr.mxu0 0.0
    %2632 = vmatpush1.msra.mxu0 %v2608
    %2633 = vmatprep.subr.mxu0 0.0
    %2634 = vmatpush1.msra.mxu0 %v2609
    %2635 = vmatprep.subr.mxu0 0.0
    %2636 = vmatpush1.msra.mxu0 %v2610
    %2637 = vmatprep.subr.mxu0 0.0
    %2638 = vmatpush1.msra.mxu0 %v2611
    %2639 = vmatprep.subr.mxu0 0.0
    %2640 = vmatpush1.msra.mxu0 %v2612
    %2641 = vmatprep.subr.mxu0 0.0
    %2642 = vmatpush1.msra.mxu0 %v2613
    %2643 = vmatprep.subr.mxu0 0.0
    %2644 = vmatpush1.msra.mxu0 %v2614
    %2645 = vmatprep.subr.mxu0 0.0
    %2646 = vmatpush1.msra.mxu0 0.0
    %2647 = vmatprep.subr.mxu0 0.0
    %2648 = vmatpush1.msra.mxu0 0.0
    %2649 = vmatprep.subr.mxu0 0.0
    %2650 = vmatpush1.msra.mxu0 0.0
    %2651 = vmatprep.subr.mxu0 0.0
    %2652 = vmatpush1.msra.mxu0 0.0
    %2653 = vmatprep.subr.mxu0 0.0
    %2654 = vmatpush1.msra.mxu0 0.0
    %2655 = vmatprep.subr.mxu0 0.0
    %2656 = vmatpush1.msra.mxu0 0.0
    %2657 = vmatprep.subr.mxu0 0.0
    %2658 = vmatpush1.msra.mxu0 0.0
    %2659 = vmatprep.subr.mxu0 0.0
    %2660 = vmatpush1.msra.mxu0 0.0
    %2661 = vmatprep.subr.mxu0 0.0
    %2662 = vmatpush1.msra.mxu0 0.0
    %2663 = vmatprep.subr.mxu0 0.0
    %2664 = vmatpush1.msra.mxu0 0.0
    %2665 = vmatprep.subr.mxu0 0.0
    %2666 = vmatpush1.msra.mxu0 0.0
    %2667 = vmatprep.subr.mxu0 0.0
    %2668 = vmatpush1.msra.mxu0 0.0
    %2669 = vmatprep.subr.mxu0 0.0
    %2670 = vmatpush1.msra.mxu0 0.0
    %2671 = vmatprep.subr.mxu0 0.0
    %2672 = vmatpush1.msra.mxu0 0.0
    %2673 = vmatprep.subr.mxu0 0.0
    %2674 = vmatpush1.msra.mxu0 0.0
    %2675 = vmatprep.subr.mxu0 0.0
    %2676 = vmatpush1.msra.mxu0 0.0
    %2677 = vmatprep.subr.mxu0 0.0
    %2678 = vmatpush1.msra.mxu0 0.0
    %2679 = vmatprep.subr.mxu0 0.0
    %2680 = vmatpush1.msra.mxu0 0.0
    %2681 = vmatprep.subr.mxu0 0.0
    %2682 = vmatpush1.msra.mxu0 0.0
    %2683 = vmatprep.subr.mxu0 0.0
    %2684 = vmatpush1.msra.mxu0 0.0
    %2685 = vmatprep.subr.mxu0 0.0
    %2686 = vmatpush1.msra.mxu0 0.0
    %2687 = vmatprep.subr.mxu0 0.0
    %2688 = vmatpush1.msra.mxu0 0.0
    %2689 = vmatprep.subr.mxu0 0.0
    %2690 = vmatpush1.msra.mxu0 0.0
    %2691 = vmatprep.subr.mxu0 0.0
    %2692 = vmatpush1.msra.mxu0 0.0
    %2693 = vmatprep.mubr.f32.mxu0 0.0
    %2694 = vmatmul.mubr.f32.gmra.mrb[0].mxu0 %v2624
    %v2695 = vpop.f32.mrb[0].mxu0
    %v2696 = vadd.f32 %v2620, %v2695
    %v2697 = vpop.f32.mrb[0].mxu0
    %2698 = vmatprep.mubr.f32.mxu0 0.0
    %2699 = vmatmul.mubr.f32.gmra.mrb[0].mxu0 %v2627
    %v2700 = vpop.f32.mrb[0].mxu0
    %v2701 = vadd.f32 %v2620, %v2700
    %v2702 = vpop.f32.mrb[0].mxu0
    %2703 = vdwg.mxu0
    %v2704 = vadd.f32 %v2696, %v2511
    %v2705 = vadd.f32 %v2701, %v2512
    %v2706 = vld [vmem:[%s21] sm:$0x1]
    %v2707 = vld [vmem:[%s22] sm:$0x1]
    %v2708 = vsel %vm293, %v2704, 0.0
    %2709 = vadd.xlane.f32.xlu0 %v2708
    %v2710 = vpop.xlane.xlu0 %2709
    %v2711 = vsel %vm293, %v2705, 0.0
    %2712 = vadd.xlane.f32.xlu0 %v2711
    %v2713 = vpop.xlane.xlu0 %2712
    %v2714 = vmul.f32 %v2710, %v300
    %v2715 = vmul.f32 %v2713, %v300
    %v2716 = vsub.f32 %v2704, %v2714
    %v2717 = vsub.f32 %v2705, %v2715
    %v2718 = vmul.f32 %v2716, %v2716
    %v2719 = vmul.f32 %v2717, %v2717
    %v2720 = vsel %vm293, %v2718, 0.0
    %2721 = vadd.xlane.f32.xlu0 %v2720
    %v2722 = vpop.xlane.xlu0 %2721
    %v2723 = vsel %vm293, %v2719, 0.0
    %2724 = vadd.xlane.f32.xlu0 %v2723
    %v2725 = vpop.xlane.xlu0 %2724
    %v2726 = vmul.f32 %v2722, %v300
    %v2727 = vmul.f32 %v2725, %v300
    %v2728 = vadd.f32 %v2726, 1e-06
    %v2729 = vadd.f32 %v2727, 1e-06
    %v2730 = vrsqrt.pop %v2728
    %v2731 = vrsqrt.pop %v2729
    %v2732 = vmul.f32 %v2716, %v2730
    %v2733 = vmul.f32 %v2717, %v2731
    %v2735 = vlaneseq
    %v2736 = vshrl.u32 %v2735, 7
    %v2737 = vsub.s32 0, %v2736
    %v2738 = vrot.slane %v2706, %v2737
    %v2740 = vmul.f32 %v2732, %v2738
    %v2741 = vmul.f32 %v2733, %v2738
    %v2743 = vlaneseq
    %v2744 = vshrl.u32 %v2743, 7
    %v2745 = vsub.s32 0, %v2744
    %v2746 = vrot.slane %v2707, %v2745
    %v2748 = vadd.f32 %v2740, %v2746
    %v2749 = vadd.f32 %v2741, %v2746
    %s2750 = scalar_lea.vmem %s8, 32
    %v2751 = vld [vmem:[%s2750] sm:$0xff]
    %v2752 = vld [vmem:[%s2750 + $0x8] sm:$0xff]
    %v2753 = vld [vmem:[%s2750 + $0x10] sm:$0xff]
    %v2754 = vld [vmem:[%s2750 + $0x18] sm:$0xff]
    %v2756 = vsel %vm293, %v2748, 0
    %v2759 = vsel %vm293, %v2749, 0
    %2761 = vmatprep.subr.mxu0 0.0
    %2762 = vmatpush1.msra.mxu0 %v2751
    %2763 = vmatprep.subr.mxu0 0.0
    %2764 = vmatpush1.msra.mxu0 %v2752
    %2765 = vmatprep.subr.mxu0 0.0
    %2766 = vmatpush1.msra.mxu0 %v2753
    %2767 = vmatprep.subr.mxu0 0.0
    %2768 = vmatpush1.msra.mxu0 %v2754
    %2769 = vmatprep.subr.mxu0 0.0
    %2770 = vmatpush1.msra.mxu0 0.0
    %2771 = vmatprep.subr.mxu0 0.0
    %2772 = vmatpush1.msra.mxu0 0.0
    %2773 = vmatprep.subr.mxu0 0.0
    %2774 = vmatpush1.msra.mxu0 0.0
    %2775 = vmatprep.subr.mxu0 0.0
    %2776 = vmatpush1.msra.mxu0 0.0
    %2777 = vmatprep.subr.mxu0 0.0
    %2778 = vmatpush1.msra.mxu0 0.0
    %2779 = vmatprep.subr.mxu0 0.0
    %2780 = vmatpush1.msra.mxu0 0.0
    %2781 = vmatprep.subr.mxu0 0.0
    %2782 = vmatpush1.msra.mxu0 0.0
    %2783 = vmatprep.subr.mxu0 0.0
    %2784 = vmatpush1.msra.mxu0 0.0
    %2785 = vmatprep.subr.mxu0 0.0
    %2786 = vmatpush1.msra.mxu0 0.0
    %2787 = vmatprep.subr.mxu0 0.0
    %2788 = vmatpush1.msra.mxu0 0.0
    %2789 = vmatprep.subr.mxu0 0.0
    %2790 = vmatpush1.msra.mxu0 0.0
    %2791 = vmatprep.subr.mxu0 0.0
    %2792 = vmatpush1.msra.mxu0 0.0
    %2793 = vmatprep.subr.mxu0 0.0
    %2794 = vmatpush1.msra.mxu0 0.0
    %2795 = vmatprep.subr.mxu0 0.0
    %2796 = vmatpush1.msra.mxu0 0.0
    %2797 = vmatprep.subr.mxu0 0.0
    %2798 = vmatpush1.msra.mxu0 0.0
    %2799 = vmatprep.subr.mxu0 0.0
    %2800 = vmatpush1.msra.mxu0 0.0
    %2801 = vmatprep.subr.mxu0 0.0
    %2802 = vmatpush1.msra.mxu0 0.0
    %2803 = vmatprep.subr.mxu0 0.0
    %2804 = vmatpush1.msra.mxu0 0.0
    %2805 = vmatprep.subr.mxu0 0.0
    %2806 = vmatpush1.msra.mxu0 0.0
    %2807 = vmatprep.subr.mxu0 0.0
    %2808 = vmatpush1.msra.mxu0 0.0
    %2809 = vmatprep.subr.mxu0 0.0
    %2810 = vmatpush1.msra.mxu0 0.0
    %2811 = vmatprep.subr.mxu0 0.0
    %2812 = vmatpush1.msra.mxu0 0.0
    %2813 = vmatprep.subr.mxu0 0.0
    %2814 = vmatpush1.msra.mxu0 0.0
    %2815 = vmatprep.subr.mxu0 0.0
    %2816 = vmatpush1.msra.mxu0 0.0
    %2817 = vmatprep.subr.mxu0 0.0
    %2818 = vmatpush1.msra.mxu0 0.0
    %2819 = vmatprep.subr.mxu0 0.0
    %2820 = vmatpush1.msra.mxu0 0.0
    %2821 = vmatprep.subr.mxu0 0.0
    %2822 = vmatpush1.msra.mxu0 0.0
    %2823 = vmatprep.subr.mxu0 0.0
    %2824 = vmatpush1.msra.mxu0 0.0
    %2825 = vmatprep.mubr.f32.mxu0 0.0
    %2826 = vmatmul.mubr.f32.gmra.mrb[0].mxu0 %v2756
    %v2827 = vpop.f32.mrb[0].mxu0
    %v2828 = vadd.f32 0.0, %v2827
    %v2829 = vpop.f32.mrb[0].mxu0
    %2830 = vmatprep.mubr.f32.mxu0 0.0
    %2831 = vmatmul.mubr.f32.gmra.mrb[0].mxu0 %v2759
    %v2832 = vpop.f32.mrb[0].mxu0
    %v2833 = vadd.f32 0.0, %v2832
    %v2834 = vpop.f32.mrb[0].mxu0
    %2835 = vdwg.mxu0
    %s2836 = scalar_lea.vmem %s9, 32
    %v2837 = vld [vmem:[%s2836] sm:$0xff]
    %v2838 = vld [vmem:[%s2836 + $0x8] sm:$0xff]
    %v2839 = vld [vmem:[%s2836 + $0x10] sm:$0xff]
    %v2840 = vld [vmem:[%s2836 + $0x18] sm:$0xff]
    %s2841 = scalar_lea.vmem %s10, 1
    %v2842 = vld [vmem:[%s2841] sm:$0x1]
    %s2843 = scalar_lea.vmem %s11, 1
    %v2844 = vld [vmem:[%s2843] sm:$0x1]
    %2847 = vrot.lane.b32.xlu0 %v2828, 96
    %v2848 = vpop.permute.xlu0 %2847
    %2849 = vrot.lane.b32.xlu0 %v2833, 96
    %v2850 = vpop.permute.xlu0 %2849
    %v2851 = vsel %vm440, %v2828, 0
    %v2853 = vsel %vm440, %v2833, 0
    %v2855 = vsel %vm440, %v2848, 0
    %v2857 = vsel %vm440, %v2850, 0
    %2859 = vmatprep.subr.mxu0 0.0
    %2860 = vmatpush1.xpose.msra.mxu0 %v2855
    %2861 = vmatprep.subr.mxu0 0.0
    %2862 = vmatpush1.xpose.msra.mxu0 %v2857
    %2863 = vmatprep.subr.mxu0 0.0
    %2864 = vmatpush1.xpose.msra.mxu0 0.0
    %2865 = vmatprep.subr.mxu0 0.0
    %2866 = vmatpush1.xpose.msra.mxu0 0.0
    %2867 = vmatprep.subr.mxu0 0.0
    %2868 = vmatpush1.xpose.msra.mxu0 0.0
    %2869 = vmatprep.subr.mxu0 0.0
    %2870 = vmatpush1.xpose.msra.mxu0 0.0
    %2871 = vmatprep.subr.mxu0 0.0
    %2872 = vmatpush1.xpose.msra.mxu0 0.0
    %2873 = vmatprep.subr.mxu0 0.0
    %2874 = vmatpush1.xpose.msra.mxu0 0.0
    %2875 = vmatprep.subr.mxu0 0.0
    %2876 = vmatpush1.xpose.msra.mxu0 0.0
    %2877 = vmatprep.subr.mxu0 0.0
    %2878 = vmatpush1.xpose.msra.mxu0 0.0
    %2879 = vmatprep.subr.mxu0 0.0
    %2880 = vmatpush1.xpose.msra.mxu0 0.0
    %2881 = vmatprep.subr.mxu0 0.0
    %2882 = vmatpush1.xpose.msra.mxu0 0.0
    %2883 = vmatprep.subr.mxu0 0.0
    %2884 = vmatpush1.xpose.msra.mxu0 0.0
    %2885 = vmatprep.subr.mxu0 0.0
    %2886 = vmatpush1.xpose.msra.mxu0 0.0
    %2887 = vmatprep.subr.mxu0 0.0
    %2888 = vmatpush1.xpose.msra.mxu0 0.0
    %2889 = vmatprep.subr.mxu0 0.0
    %2890 = vmatpush1.xpose.msra.mxu0 0.0
    %2891 = vmatprep.subr.mxu0 0.0
    %2892 = vmatpush1.xpose.msra.mxu0 0.0
    %2893 = vmatprep.subr.mxu0 0.0
    %2894 = vmatpush1.xpose.msra.mxu0 0.0
    %2895 = vmatprep.subr.mxu0 0.0
    %2896 = vmatpush1.xpose.msra.mxu0 0.0
    %2897 = vmatprep.subr.mxu0 0.0
    %2898 = vmatpush1.xpose.msra.mxu0 0.0
    %2899 = vmatprep.subr.mxu0 0.0
    %2900 = vmatpush1.xpose.msra.mxu0 0.0
    %2901 = vmatprep.subr.mxu0 0.0
    %2902 = vmatpush1.xpose.msra.mxu0 0.0
    %2903 = vmatprep.subr.mxu0 0.0
    %2904 = vmatpush1.xpose.msra.mxu0 0.0
    %2905 = vmatprep.subr.mxu0 0.0
    %2906 = vmatpush1.xpose.msra.mxu0 0.0
    %2907 = vmatprep.subr.mxu0 0.0
    %2908 = vmatpush1.xpose.msra.mxu0 0.0
    %2909 = vmatprep.subr.mxu0 0.0
    %2910 = vmatpush1.xpose.msra.mxu0 0.0
    %2911 = vmatprep.subr.mxu0 0.0
    %2912 = vmatpush1.xpose.msra.mxu0 0.0
    %2913 = vmatprep.subr.mxu0 0.0
    %2914 = vmatpush1.xpose.msra.mxu0 0.0
    %2915 = vmatprep.subr.mxu0 0.0
    %2916 = vmatpush1.xpose.msra.mxu0 0.0
    %2917 = vmatprep.subr.mxu0 0.0
    %2918 = vmatpush1.xpose.msra.mxu0 0.0
    %2919 = vmatprep.subr.mxu0 0.0
    %2920 = vmatpush1.xpose.msra.mxu0 0.0
    %2921 = vmatprep.subr.mxu0 0.0
    %2922 = vmatpush1.xpose.msra.mxu0 0.0
    %2923 = vmatprep.mubr.f32.mxu0 0.0
    %2924 = vmatmul.mubr.f32.gmra.mrb[0].mxu0 %v2851
    %v2925 = vpop.f32.mrb[0].mxu0
    %v2926 = vadd.f32 %v339, %v2925
    %v2927 = vpop.f32.mrb[0].mxu0
    %2928 = vmatprep.mubr.f32.mxu0 0.0
    %2929 = vmatmul.mubr.f32.gmra.mrb[0].mxu0 %v2853
    %v2930 = vpop.f32.mrb[0].mxu0
    %v2931 = vadd.f32 %v340, %v2930
    %v2932 = vpop.f32.mrb[0].mxu0
    %2933 = vdwg.mxu0
    %v2934 = vsel %vm524, %v2926, -inf
    %2935 = vmax.xlane.f32.xlu0 %v2934
    %v2936 = vpop.xlane.xlu0 %2935
    %v2937 = vsel %vm524, %v2931, -inf
    %2938 = vmax.xlane.f32.xlu0 %v2937
    %v2939 = vpop.xlane.xlu0 %2938
    %v2940 = vsub.f32 %v2926, %v2936
    %v2941 = vsub.f32 %v2931, %v2939
    %v2942 = vmul.f32 %v2940, 1.442695
    %v2943 = vpow.pop %v2942
    %v2944 = vmul.f32 %v2941, 1.442695
    %v2945 = vpow.pop %v2944
    %v2946 = vsel %vm524, %v2943, 0.0
    %2947 = vadd.xlane.f32.xlu0 %v2946
    %v2948 = vpop.xlane.xlu0 %2947
    %v2949 = vsel %vm524, %v2945, 0.0
    %2950 = vadd.xlane.f32.xlu0 %v2949
    %v2951 = vpop.xlane.xlu0 %2950
    %v2952 = vrcp.pop %v2948
    %v2953 = vrcp.pop %v2951
    %v2954 = vmul.f32 %v2943, %v2952
    %v2955 = vmul.f32 %v2945, %v2953
    %2956 = vrot.lane.b32.xlu0 %v2828, 64
    %v2957 = vpop.permute.xlu0 %2956
    %2958 = vrot.lane.b32.xlu0 %v2833, 64
    %v2959 = vpop.permute.xlu0 %2958
    %v2963 = vsel %vm524, %v2954, 0
    %v2966 = vsel %vm524, %v2955, 0
    %2968 = vmatprep.subr.mxu0 0.0
    %2969 = vmatpush1.msra.mxu0 %v2957
    %2970 = vmatprep.subr.mxu0 0.0
    %2971 = vmatpush1.msra.mxu0 %v2959
    %2972 = vmatprep.subr.mxu0 0.0
    %2973 = vmatpush1.msra.mxu0 0.0
    %2974 = vmatprep.subr.mxu0 0.0
    %2975 = vmatpush1.msra.mxu0 0.0
    %2976 = vmatprep.subr.mxu0 0.0
    %2977 = vmatpush1.msra.mxu0 0.0
    %2978 = vmatprep.subr.mxu0 0.0
    %2979 = vmatpush1.msra.mxu0 0.0
    %2980 = vmatprep.subr.mxu0 0.0
    %2981 = vmatpush1.msra.mxu0 0.0
    %2982 = vmatprep.subr.mxu0 0.0
    %2983 = vmatpush1.msra.mxu0 0.0
    %2984 = vmatprep.subr.mxu0 0.0
    %2985 = vmatpush1.msra.mxu0 0.0
    %2986 = vmatprep.subr.mxu0 0.0
    %2987 = vmatpush1.msra.mxu0 0.0
    %2988 = vmatprep.subr.mxu0 0.0
    %2989 = vmatpush1.msra.mxu0 0.0
    %2990 = vmatprep.subr.mxu0 0.0
    %2991 = vmatpush1.msra.mxu0 0.0
    %2992 = vmatprep.subr.mxu0 0.0
    %2993 = vmatpush1.msra.mxu0 0.0
    %2994 = vmatprep.subr.mxu0 0.0
    %2995 = vmatpush1.msra.mxu0 0.0
    %2996 = vmatprep.subr.mxu0 0.0
    %2997 = vmatpush1.msra.mxu0 0.0
    %2998 = vmatprep.subr.mxu0 0.0
    %2999 = vmatpush1.msra.mxu0 0.0
    %3000 = vmatprep.subr.mxu0 0.0
    %3001 = vmatpush1.msra.mxu0 0.0
    %3002 = vmatprep.subr.mxu0 0.0
    %3003 = vmatpush1.msra.mxu0 0.0
    %3004 = vmatprep.subr.mxu0 0.0
    %3005 = vmatpush1.msra.mxu0 0.0
    %3006 = vmatprep.subr.mxu0 0.0
    %3007 = vmatpush1.msra.mxu0 0.0
    %3008 = vmatprep.subr.mxu0 0.0
    %3009 = vmatpush1.msra.mxu0 0.0
    %3010 = vmatprep.subr.mxu0 0.0
    %3011 = vmatpush1.msra.mxu0 0.0
    %3012 = vmatprep.subr.mxu0 0.0
    %3013 = vmatpush1.msra.mxu0 0.0
    %3014 = vmatprep.subr.mxu0 0.0
    %3015 = vmatpush1.msra.mxu0 0.0
    %3016 = vmatprep.subr.mxu0 0.0
    %3017 = vmatpush1.msra.mxu0 0.0
    %3018 = vmatprep.subr.mxu0 0.0
    %3019 = vmatpush1.msra.mxu0 0.0
    %3020 = vmatprep.subr.mxu0 0.0
    %3021 = vmatpush1.msra.mxu0 0.0
    %3022 = vmatprep.subr.mxu0 0.0
    %3023 = vmatpush1.msra.mxu0 0.0
    %3024 = vmatprep.subr.mxu0 0.0
    %3025 = vmatpush1.msra.mxu0 0.0
    %3026 = vmatprep.subr.mxu0 0.0
    %3027 = vmatpush1.msra.mxu0 0.0
    %3028 = vmatprep.subr.mxu0 0.0
    %3029 = vmatpush1.msra.mxu0 0.0
    %3030 = vmatprep.subr.mxu0 0.0
    %3031 = vmatpush1.msra.mxu0 0.0
    %3032 = vmatprep.mubr.f32.mxu0 0.0
    %3033 = vmatmul.mubr.f32.gmra.mrb[0].mxu0 %v2963
    %v3034 = vpop.f32.mrb[0].mxu0
    %v3035 = vadd.f32 0.0, %v3034
    %v3036 = vpop.f32.mrb[0].mxu0
    %3037 = vmatprep.mubr.f32.mxu0 0.0
    %3038 = vmatmul.mubr.f32.gmra.mrb[0].mxu0 %v2966
    %v3039 = vpop.f32.mrb[0].mxu0
    %v3040 = vadd.f32 0.0, %v3039
    %v3041 = vpop.f32.mrb[0].mxu0
    %3042 = vdwg.mxu0
    %3043 = vrot.lane.b32.xlu0 %v2828, 120
    %v3044 = vpop.permute.xlu0 %3043
    %3045 = vrot.lane.b32.xlu0 %v2833, 120
    %v3046 = vpop.permute.xlu0 %3045
    %3047 = vrot.lane.b32.xlu0 %v2828, 88
    %v3048 = vpop.permute.xlu0 %3047
    %3049 = vrot.lane.b32.xlu0 %v2833, 88
    %v3050 = vpop.permute.xlu0 %3049
    %v3051 = vsel %vm440, %v3044, 0
    %v3053 = vsel %vm440, %v3046, 0
    %v3055 = vsel %vm440, %v3048, 0
    %v3057 = vsel %vm440, %v3050, 0
    %3059 = vmatprep.subr.mxu0 0.0
    %3060 = vmatpush1.xpose.msra.mxu0 %v3055
    %3061 = vmatprep.subr.mxu0 0.0
    %3062 = vmatpush1.xpose.msra.mxu0 %v3057
    %3063 = vmatprep.subr.mxu0 0.0
    %3064 = vmatpush1.xpose.msra.mxu0 0.0
    %3065 = vmatprep.subr.mxu0 0.0
    %3066 = vmatpush1.xpose.msra.mxu0 0.0
    %3067 = vmatprep.subr.mxu0 0.0
    %3068 = vmatpush1.xpose.msra.mxu0 0.0
    %3069 = vmatprep.subr.mxu0 0.0
    %3070 = vmatpush1.xpose.msra.mxu0 0.0
    %3071 = vmatprep.subr.mxu0 0.0
    %3072 = vmatpush1.xpose.msra.mxu0 0.0
    %3073 = vmatprep.subr.mxu0 0.0
    %3074 = vmatpush1.xpose.msra.mxu0 0.0
    %3075 = vmatprep.subr.mxu0 0.0
    %3076 = vmatpush1.xpose.msra.mxu0 0.0
    %3077 = vmatprep.subr.mxu0 0.0
    %3078 = vmatpush1.xpose.msra.mxu0 0.0
    %3079 = vmatprep.subr.mxu0 0.0
    %3080 = vmatpush1.xpose.msra.mxu0 0.0
    %3081 = vmatprep.subr.mxu0 0.0
    %3082 = vmatpush1.xpose.msra.mxu0 0.0
    %3083 = vmatprep.subr.mxu0 0.0
    %3084 = vmatpush1.xpose.msra.mxu0 0.0
    %3085 = vmatprep.subr.mxu0 0.0
    %3086 = vmatpush1.xpose.msra.mxu0 0.0
    %3087 = vmatprep.subr.mxu0 0.0
    %3088 = vmatpush1.xpose.msra.mxu0 0.0
    %3089 = vmatprep.subr.mxu0 0.0
    %3090 = vmatpush1.xpose.msra.mxu0 0.0
    %3091 = vmatprep.subr.mxu0 0.0
    %3092 = vmatpush1.xpose.msra.mxu0 0.0
    %3093 = vmatprep.subr.mxu0 0.0
    %3094 = vmatpush1.xpose.msra.mxu0 0.0
    %3095 = vmatprep.subr.mxu0 0.0
    %3096 = vmatpush1.xpose.msra.mxu0 0.0
    %3097 = vmatprep.subr.mxu0 0.0
    %3098 = vmatpush1.xpose.msra.mxu0 0.0
    %3099 = vmatprep.subr.mxu0 0.0
    %3100 = vmatpush1.xpose.msra.mxu0 0.0
    %3101 = vmatprep.subr.mxu0 0.0
    %3102 = vmatpush1.xpose.msra.mxu0 0.0
    %3103 = vmatprep.subr.mxu0 0.0
    %3104 = vmatpush1.xpose.msra.mxu0 0.0
    %3105 = vmatprep.subr.mxu0 0.0
    %3106 = vmatpush1.xpose.msra.mxu0 0.0
    %3107 = vmatprep.subr.mxu0 0.0
    %3108 = vmatpush1.xpose.msra.mxu0 0.0
    %3109 = vmatprep.subr.mxu0 0.0
    %3110 = vmatpush1.xpose.msra.mxu0 0.0
    %3111 = vmatprep.subr.mxu0 0.0
    %3112 = vmatpush1.xpose.msra.mxu0 0.0
    %3113 = vmatprep.subr.mxu0 0.0
    %3114 = vmatpush1.xpose.msra.mxu0 0.0
    %3115 = vmatprep.subr.mxu0 0.0
    %3116 = vmatpush1.xpose.msra.mxu0 0.0
    %3117 = vmatprep.subr.mxu0 0.0
    %3118 = vmatpush1.xpose.msra.mxu0 0.0
    %3119 = vmatprep.subr.mxu0 0.0
    %3120 = vmatpush1.xpose.msra.mxu0 0.0
    %3121 = vmatprep.subr.mxu0 0.0
    %3122 = vmatpush1.xpose.msra.mxu0 0.0
    %3123 = vmatprep.mubr.f32.mxu0 0.0
    %3124 = vmatmul.mubr.f32.gmra.mrb[0].mxu0 %v3051
    %v3125 = vpop.f32.mrb[0].mxu0
    %v3126 = vadd.f32 %v339, %v3125
    %v3127 = vpop.f32.mrb[0].mxu0
    %3128 = vmatprep.mubr.f32.mxu0 0.0
    %3129 = vmatmul.mubr.f32.gmra.mrb[0].mxu0 %v3053
    %v3130 = vpop.f32.mrb[0].mxu0
    %v3131 = vadd.f32 %v340, %v3130
    %v3132 = vpop.f32.mrb[0].mxu0
    %3133 = vdwg.mxu0
    %v3134 = vsel %vm524, %v3126, -inf
    %3135 = vmax.xlane.f32.xlu0 %v3134
    %v3136 = vpop.xlane.xlu0 %3135
    %v3137 = vsel %vm524, %v3131, -inf
    %3138 = vmax.xlane.f32.xlu0 %v3137
    %v3139 = vpop.xlane.xlu0 %3138
    %v3140 = vsub.f32 %v3126, %v3136
    %v3141 = vsub.f32 %v3131, %v3139
    %v3142 = vmul.f32 %v3140, 1.442695
    %v3143 = vpow.pop %v3142
    %v3144 = vmul.f32 %v3141, 1.442695
    %v3145 = vpow.pop %v3144
    %v3146 = vsel %vm524, %v3143, 0.0
    %3147 = vadd.xlane.f32.xlu0 %v3146
    %v3148 = vpop.xlane.xlu0 %3147
    %v3149 = vsel %vm524, %v3145, 0.0
    %3150 = vadd.xlane.f32.xlu0 %v3149
    %v3151 = vpop.xlane.xlu0 %3150
    %v3152 = vrcp.pop %v3148
    %v3153 = vrcp.pop %v3151
    %v3154 = vmul.f32 %v3143, %v3152
    %v3155 = vmul.f32 %v3145, %v3153
    %3156 = vrot.lane.b32.xlu0 %v2828, 56
    %v3157 = vpop.permute.xlu0 %3156
    %3158 = vrot.lane.b32.xlu0 %v2833, 56
    %v3159 = vpop.permute.xlu0 %3158
    %v3163 = vsel %vm524, %v3154, 0
    %v3166 = vsel %vm524, %v3155, 0
    %3168 = vmatprep.subr.mxu0 0.0
    %3169 = vmatpush1.msra.mxu0 %v3157
    %3170 = vmatprep.subr.mxu0 0.0
    %3171 = vmatpush1.msra.mxu0 %v3159
    %3172 = vmatprep.subr.mxu0 0.0
    %3173 = vmatpush1.msra.mxu0 0.0
    %3174 = vmatprep.subr.mxu0 0.0
    %3175 = vmatpush1.msra.mxu0 0.0
    %3176 = vmatprep.subr.mxu0 0.0
    %3177 = vmatpush1.msra.mxu0 0.0
    %3178 = vmatprep.subr.mxu0 0.0
    %3179 = vmatpush1.msra.mxu0 0.0
    %3180 = vmatprep.subr.mxu0 0.0
    %3181 = vmatpush1.msra.mxu0 0.0
    %3182 = vmatprep.subr.mxu0 0.0
    %3183 = vmatpush1.msra.mxu0 0.0
    %3184 = vmatprep.subr.mxu0 0.0
    %3185 = vmatpush1.msra.mxu0 0.0
    %3186 = vmatprep.subr.mxu0 0.0
    %3187 = vmatpush1.msra.mxu0 0.0
    %3188 = vmatprep.subr.mxu0 0.0
    %3189 = vmatpush1.msra.mxu0 0.0
    %3190 = vmatprep.subr.mxu0 0.0
    %3191 = vmatpush1.msra.mxu0 0.0
    %3192 = vmatprep.subr.mxu0 0.0
    %3193 = vmatpush1.msra.mxu0 0.0
    %3194 = vmatprep.subr.mxu0 0.0
    %3195 = vmatpush1.msra.mxu0 0.0
    %3196 = vmatprep.subr.mxu0 0.0
    %3197 = vmatpush1.msra.mxu0 0.0
    %3198 = vmatprep.subr.mxu0 0.0
    %3199 = vmatpush1.msra.mxu0 0.0
    %3200 = vmatprep.subr.mxu0 0.0
    %3201 = vmatpush1.msra.mxu0 0.0
    %3202 = vmatprep.subr.mxu0 0.0
    %3203 = vmatpush1.msra.mxu0 0.0
    %3204 = vmatprep.subr.mxu0 0.0
    %3205 = vmatpush1.msra.mxu0 0.0
    %3206 = vmatprep.subr.mxu0 0.0
    %3207 = vmatpush1.msra.mxu0 0.0
    %3208 = vmatprep.subr.mxu0 0.0
    %3209 = vmatpush1.msra.mxu0 0.0
    %3210 = vmatprep.subr.mxu0 0.0
    %3211 = vmatpush1.msra.mxu0 0.0
    %3212 = vmatprep.subr.mxu0 0.0
    %3213 = vmatpush1.msra.mxu0 0.0
    %3214 = vmatprep.subr.mxu0 0.0
    %3215 = vmatpush1.msra.mxu0 0.0
    %3216 = vmatprep.subr.mxu0 0.0
    %3217 = vmatpush1.msra.mxu0 0.0
    %3218 = vmatprep.subr.mxu0 0.0
    %3219 = vmatpush1.msra.mxu0 0.0
    %3220 = vmatprep.subr.mxu0 0.0
    %3221 = vmatpush1.msra.mxu0 0.0
    %3222 = vmatprep.subr.mxu0 0.0
    %3223 = vmatpush1.msra.mxu0 0.0
    %3224 = vmatprep.subr.mxu0 0.0
    %3225 = vmatpush1.msra.mxu0 0.0
    %3226 = vmatprep.subr.mxu0 0.0
    %3227 = vmatpush1.msra.mxu0 0.0
    %3228 = vmatprep.subr.mxu0 0.0
    %3229 = vmatpush1.msra.mxu0 0.0
    %3230 = vmatprep.subr.mxu0 0.0
    %3231 = vmatpush1.msra.mxu0 0.0
    %3232 = vmatprep.mubr.f32.mxu0 0.0
    %3233 = vmatmul.mubr.f32.gmra.mrb[0].mxu0 %v3163
    %v3234 = vpop.f32.mrb[0].mxu0
    %v3235 = vadd.f32 0.0, %v3234
    %v3236 = vpop.f32.mrb[0].mxu0
    %3237 = vmatprep.mubr.f32.mxu0 0.0
    %3238 = vmatmul.mubr.f32.gmra.mrb[0].mxu0 %v3166
    %v3239 = vpop.f32.mrb[0].mxu0
    %v3240 = vadd.f32 0.0, %v3239
    %v3241 = vpop.f32.mrb[0].mxu0
    %3242 = vdwg.mxu0
    %3243 = vrot.lane.b32.xlu0 %v2828, 112
    %v3244 = vpop.permute.xlu0 %3243
    %3245 = vrot.lane.b32.xlu0 %v2833, 112
    %v3246 = vpop.permute.xlu0 %3245
    %3247 = vrot.lane.b32.xlu0 %v2828, 80
    %v3248 = vpop.permute.xlu0 %3247
    %3249 = vrot.lane.b32.xlu0 %v2833, 80
    %v3250 = vpop.permute.xlu0 %3249
    %v3251 = vsel %vm440, %v3244, 0
    %v3253 = vsel %vm440, %v3246, 0
    %v3255 = vsel %vm440, %v3248, 0
    %v3257 = vsel %vm440, %v3250, 0
    %3259 = vmatprep.subr.mxu0 0.0
    %3260 = vmatpush1.xpose.msra.mxu0 %v3255
    %3261 = vmatprep.subr.mxu0 0.0
    %3262 = vmatpush1.xpose.msra.mxu0 %v3257
    %3263 = vmatprep.subr.mxu0 0.0
    %3264 = vmatpush1.xpose.msra.mxu0 0.0
    %3265 = vmatprep.subr.mxu0 0.0
    %3266 = vmatpush1.xpose.msra.mxu0 0.0
    %3267 = vmatprep.subr.mxu0 0.0
    %3268 = vmatpush1.xpose.msra.mxu0 0.0
    %3269 = vmatprep.subr.mxu0 0.0
    %3270 = vmatpush1.xpose.msra.mxu0 0.0
    %3271 = vmatprep.subr.mxu0 0.0
    %3272 = vmatpush1.xpose.msra.mxu0 0.0
    %3273 = vmatprep.subr.mxu0 0.0
    %3274 = vmatpush1.xpose.msra.mxu0 0.0
    %3275 = vmatprep.subr.mxu0 0.0
    %3276 = vmatpush1.xpose.msra.mxu0 0.0
    %3277 = vmatprep.subr.mxu0 0.0
    %3278 = vmatpush1.xpose.msra.mxu0 0.0
    %3279 = vmatprep.subr.mxu0 0.0
    %3280 = vmatpush1.xpose.msra.mxu0 0.0
    %3281 = vmatprep.subr.mxu0 0.0
    %3282 = vmatpush1.xpose.msra.mxu0 0.0
    %3283 = vmatprep.subr.mxu0 0.0
    %3284 = vmatpush1.xpose.msra.mxu0 0.0
    %3285 = vmatprep.subr.mxu0 0.0
    %3286 = vmatpush1.xpose.msra.mxu0 0.0
    %3287 = vmatprep.subr.mxu0 0.0
    %3288 = vmatpush1.xpose.msra.mxu0 0.0
    %3289 = vmatprep.subr.mxu0 0.0
    %3290 = vmatpush1.xpose.msra.mxu0 0.0
    %3291 = vmatprep.subr.mxu0 0.0
    %3292 = vmatpush1.xpose.msra.mxu0 0.0
    %3293 = vmatprep.subr.mxu0 0.0
    %3294 = vmatpush1.xpose.msra.mxu0 0.0
    %3295 = vmatprep.subr.mxu0 0.0
    %3296 = vmatpush1.xpose.msra.mxu0 0.0
    %3297 = vmatprep.subr.mxu0 0.0
    %3298 = vmatpush1.xpose.msra.mxu0 0.0
    %3299 = vmatprep.subr.mxu0 0.0
    %3300 = vmatpush1.xpose.msra.mxu0 0.0
    %3301 = vmatprep.subr.mxu0 0.0
    %3302 = vmatpush1.xpose.msra.mxu0 0.0
    %3303 = vmatprep.subr.mxu0 0.0
    %3304 = vmatpush1.xpose.msra.mxu0 0.0
    %3305 = vmatprep.subr.mxu0 0.0
    %3306 = vmatpush1.xpose.msra.mxu0 0.0
    %3307 = vmatprep.subr.mxu0 0.0
    %3308 = vmatpush1.xpose.msra.mxu0 0.0
    %3309 = vmatprep.subr.mxu0 0.0
    %3310 = vmatpush1.xpose.msra.mxu0 0.0
    %3311 = vmatprep.subr.mxu0 0.0
    %3312 = vmatpush1.xpose.msra.mxu0 0.0
    %3313 = vmatprep.subr.mxu0 0.0
    %3314 = vmatpush1.xpose.msra.mxu0 0.0
    %3315 = vmatprep.subr.mxu0 0.0
    %3316 = vmatpush1.xpose.msra.mxu0 0.0
    %3317 = vmatprep.subr.mxu0 0.0
    %3318 = vmatpush1.xpose.msra.mxu0 0.0
    %3319 = vmatprep.subr.mxu0 0.0
    %3320 = vmatpush1.xpose.msra.mxu0 0.0
    %3321 = vmatprep.subr.mxu0 0.0
    %3322 = vmatpush1.xpose.msra.mxu0 0.0
    %3323 = vmatprep.mubr.f32.mxu0 0.0
    %3324 = vmatmul.mubr.f32.gmra.mrb[0].mxu0 %v3251
    %v3325 = vpop.f32.mrb[0].mxu0
    %v3326 = vadd.f32 %v339, %v3325
    %v3327 = vpop.f32.mrb[0].mxu0
    %3328 = vmatprep.mubr.f32.mxu0 0.0
    %3329 = vmatmul.mubr.f32.gmra.mrb[0].mxu0 %v3253
    %v3330 = vpop.f32.mrb[0].mxu0
    %v3331 = vadd.f32 %v340, %v3330
    %v3332 = vpop.f32.mrb[0].mxu0
    %3333 = vdwg.mxu0
    %v3334 = vsel %vm524, %v3326, -inf
    %3335 = vmax.xlane.f32.xlu0 %v3334
    %v3336 = vpop.xlane.xlu0 %3335
    %v3337 = vsel %vm524, %v3331, -inf
    %3338 = vmax.xlane.f32.xlu0 %v3337
    %v3339 = vpop.xlane.xlu0 %3338
    %v3340 = vsub.f32 %v3326, %v3336
    %v3341 = vsub.f32 %v3331, %v3339
    %v3342 = vmul.f32 %v3340, 1.442695
    %v3343 = vpow.pop %v3342
    %v3344 = vmul.f32 %v3341, 1.442695
    %v3345 = vpow.pop %v3344
    %v3346 = vsel %vm524, %v3343, 0.0
    %3347 = vadd.xlane.f32.xlu0 %v3346
    %v3348 = vpop.xlane.xlu0 %3347
    %v3349 = vsel %vm524, %v3345, 0.0
    %3350 = vadd.xlane.f32.xlu0 %v3349
    %v3351 = vpop.xlane.xlu0 %3350
    %v3352 = vrcp.pop %v3348
    %v3353 = vrcp.pop %v3351
    %v3354 = vmul.f32 %v3343, %v3352
    %v3355 = vmul.f32 %v3345, %v3353
    %3356 = vrot.lane.b32.xlu0 %v2828, 48
    %v3357 = vpop.permute.xlu0 %3356
    %3358 = vrot.lane.b32.xlu0 %v2833, 48
    %v3359 = vpop.permute.xlu0 %3358
    %v3363 = vsel %vm524, %v3354, 0
    %v3366 = vsel %vm524, %v3355, 0
    %3368 = vmatprep.subr.mxu0 0.0
    %3369 = vmatpush1.msra.mxu0 %v3357
    %3370 = vmatprep.subr.mxu0 0.0
    %3371 = vmatpush1.msra.mxu0 %v3359
    %3372 = vmatprep.subr.mxu0 0.0
    %3373 = vmatpush1.msra.mxu0 0.0
    %3374 = vmatprep.subr.mxu0 0.0
    %3375 = vmatpush1.msra.mxu0 0.0
    %3376 = vmatprep.subr.mxu0 0.0
    %3377 = vmatpush1.msra.mxu0 0.0
    %3378 = vmatprep.subr.mxu0 0.0
    %3379 = vmatpush1.msra.mxu0 0.0
    %3380 = vmatprep.subr.mxu0 0.0
    %3381 = vmatpush1.msra.mxu0 0.0
    %3382 = vmatprep.subr.mxu0 0.0
    %3383 = vmatpush1.msra.mxu0 0.0
    %3384 = vmatprep.subr.mxu0 0.0
    %3385 = vmatpush1.msra.mxu0 0.0
    %3386 = vmatprep.subr.mxu0 0.0
    %3387 = vmatpush1.msra.mxu0 0.0
    %3388 = vmatprep.subr.mxu0 0.0
    %3389 = vmatpush1.msra.mxu0 0.0
    %3390 = vmatprep.subr.mxu0 0.0
    %3391 = vmatpush1.msra.mxu0 0.0
    %3392 = vmatprep.subr.mxu0 0.0
    %3393 = vmatpush1.msra.mxu0 0.0
    %3394 = vmatprep.subr.mxu0 0.0
    %3395 = vmatpush1.msra.mxu0 0.0
    %3396 = vmatprep.subr.mxu0 0.0
    %3397 = vmatpush1.msra.mxu0 0.0
    %3398 = vmatprep.subr.mxu0 0.0
    %3399 = vmatpush1.msra.mxu0 0.0
    %3400 = vmatprep.subr.mxu0 0.0
    %3401 = vmatpush1.msra.mxu0 0.0
    %3402 = vmatprep.subr.mxu0 0.0
    %3403 = vmatpush1.msra.mxu0 0.0
    %3404 = vmatprep.subr.mxu0 0.0
    %3405 = vmatpush1.msra.mxu0 0.0
    %3406 = vmatprep.subr.mxu0 0.0
    %3407 = vmatpush1.msra.mxu0 0.0
    %3408 = vmatprep.subr.mxu0 0.0
    %3409 = vmatpush1.msra.mxu0 0.0
    %3410 = vmatprep.subr.mxu0 0.0
    %3411 = vmatpush1.msra.mxu0 0.0
    %3412 = vmatprep.subr.mxu0 0.0
    %3413 = vmatpush1.msra.mxu0 0.0
    %3414 = vmatprep.subr.mxu0 0.0
    %3415 = vmatpush1.msra.mxu0 0.0
    %3416 = vmatprep.subr.mxu0 0.0
    %3417 = vmatpush1.msra.mxu0 0.0
    %3418 = vmatprep.subr.mxu0 0.0
    %3419 = vmatpush1.msra.mxu0 0.0
    %3420 = vmatprep.subr.mxu0 0.0
    %3421 = vmatpush1.msra.mxu0 0.0
    %3422 = vmatprep.subr.mxu0 0.0
    %3423 = vmatpush1.msra.mxu0 0.0
    %3424 = vmatprep.subr.mxu0 0.0
    %3425 = vmatpush1.msra.mxu0 0.0
    %3426 = vmatprep.subr.mxu0 0.0
    %3427 = vmatpush1.msra.mxu0 0.0
    %3428 = vmatprep.subr.mxu0 0.0
    %3429 = vmatpush1.msra.mxu0 0.0
    %3430 = vmatprep.subr.mxu0 0.0
    %3431 = vmatpush1.msra.mxu0 0.0
    %3432 = vmatprep.mubr.f32.mxu0 0.0
    %3433 = vmatmul.mubr.f32.gmra.mrb[0].mxu0 %v3363
    %v3434 = vpop.f32.mrb[0].mxu0
    %v3435 = vadd.f32 0.0, %v3434
    %v3436 = vpop.f32.mrb[0].mxu0
    %3437 = vmatprep.mubr.f32.mxu0 0.0
    %3438 = vmatmul.mubr.f32.gmra.mrb[0].mxu0 %v3366
    %v3439 = vpop.f32.mrb[0].mxu0
    %v3440 = vadd.f32 0.0, %v3439
    %v3441 = vpop.f32.mrb[0].mxu0
    %3442 = vdwg.mxu0
    %3443 = vrot.lane.b32.xlu0 %v2828, 104
    %v3444 = vpop.permute.xlu0 %3443
    %3445 = vrot.lane.b32.xlu0 %v2833, 104
    %v3446 = vpop.permute.xlu0 %3445
    %3447 = vrot.lane.b32.xlu0 %v2828, 72
    %v3448 = vpop.permute.xlu0 %3447
    %3449 = vrot.lane.b32.xlu0 %v2833, 72
    %v3450 = vpop.permute.xlu0 %3449
    %v3451 = vsel %vm440, %v3444, 0
    %v3453 = vsel %vm440, %v3446, 0
    %v3455 = vsel %vm440, %v3448, 0
    %v3457 = vsel %vm440, %v3450, 0
    %3459 = vmatprep.subr.mxu0 0.0
    %3460 = vmatpush1.xpose.msra.mxu0 %v3455
    %3461 = vmatprep.subr.mxu0 0.0
    %3462 = vmatpush1.xpose.msra.mxu0 %v3457
    %3463 = vmatprep.subr.mxu0 0.0
    %3464 = vmatpush1.xpose.msra.mxu0 0.0
    %3465 = vmatprep.subr.mxu0 0.0
    %3466 = vmatpush1.xpose.msra.mxu0 0.0
    %3467 = vmatprep.subr.mxu0 0.0
    %3468 = vmatpush1.xpose.msra.mxu0 0.0
    %3469 = vmatprep.subr.mxu0 0.0
    %3470 = vmatpush1.xpose.msra.mxu0 0.0
    %3471 = vmatprep.subr.mxu0 0.0
    %3472 = vmatpush1.xpose.msra.mxu0 0.0
    %3473 = vmatprep.subr.mxu0 0.0
    %3474 = vmatpush1.xpose.msra.mxu0 0.0
    %3475 = vmatprep.subr.mxu0 0.0
    %3476 = vmatpush1.xpose.msra.mxu0 0.0
    %3477 = vmatprep.subr.mxu0 0.0
    %3478 = vmatpush1.xpose.msra.mxu0 0.0
    %3479 = vmatprep.subr.mxu0 0.0
    %3480 = vmatpush1.xpose.msra.mxu0 0.0
    %3481 = vmatprep.subr.mxu0 0.0
    %3482 = vmatpush1.xpose.msra.mxu0 0.0
    %3483 = vmatprep.subr.mxu0 0.0
    %3484 = vmatpush1.xpose.msra.mxu0 0.0
    %3485 = vmatprep.subr.mxu0 0.0
    %3486 = vmatpush1.xpose.msra.mxu0 0.0
    %3487 = vmatprep.subr.mxu0 0.0
    %3488 = vmatpush1.xpose.msra.mxu0 0.0
    %3489 = vmatprep.subr.mxu0 0.0
    %3490 = vmatpush1.xpose.msra.mxu0 0.0
    %3491 = vmatprep.subr.mxu0 0.0
    %3492 = vmatpush1.xpose.msra.mxu0 0.0
    %3493 = vmatprep.subr.mxu0 0.0
    %3494 = vmatpush1.xpose.msra.mxu0 0.0
    %3495 = vmatprep.subr.mxu0 0.0
    %3496 = vmatpush1.xpose.msra.mxu0 0.0
    %3497 = vmatprep.subr.mxu0 0.0
    %3498 = vmatpush1.xpose.msra.mxu0 0.0
    %3499 = vmatprep.subr.mxu0 0.0
    %3500 = vmatpush1.xpose.msra.mxu0 0.0
    %3501 = vmatprep.subr.mxu0 0.0
    %3502 = vmatpush1.xpose.msra.mxu0 0.0
    %3503 = vmatprep.subr.mxu0 0.0
    %3504 = vmatpush1.xpose.msra.mxu0 0.0
    %3505 = vmatprep.subr.mxu0 0.0
    %3506 = vmatpush1.xpose.msra.mxu0 0.0
    %3507 = vmatprep.subr.mxu0 0.0
    %3508 = vmatpush1.xpose.msra.mxu0 0.0
    %3509 = vmatprep.subr.mxu0 0.0
    %3510 = vmatpush1.xpose.msra.mxu0 0.0
    %3511 = vmatprep.subr.mxu0 0.0
    %3512 = vmatpush1.xpose.msra.mxu0 0.0
    %3513 = vmatprep.subr.mxu0 0.0
    %3514 = vmatpush1.xpose.msra.mxu0 0.0
    %3515 = vmatprep.subr.mxu0 0.0
    %3516 = vmatpush1.xpose.msra.mxu0 0.0
    %3517 = vmatprep.subr.mxu0 0.0
    %3518 = vmatpush1.xpose.msra.mxu0 0.0
    %3519 = vmatprep.subr.mxu0 0.0
    %3520 = vmatpush1.xpose.msra.mxu0 0.0
    %3521 = vmatprep.subr.mxu0 0.0
    %3522 = vmatpush1.xpose.msra.mxu0 0.0
    %3523 = vmatprep.mubr.f32.mxu0 0.0
    %3524 = vmatmul.mubr.f32.gmra.mrb[0].mxu0 %v3451
    %v3525 = vpop.f32.mrb[0].mxu0
    %v3526 = vadd.f32 %v339, %v3525
    %v3527 = vpop.f32.mrb[0].mxu0
    %3528 = vmatprep.mubr.f32.mxu0 0.0
    %3529 = vmatmul.mubr.f32.gmra.mrb[0].mxu0 %v3453
    %v3530 = vpop.f32.mrb[0].mxu0
    %v3531 = vadd.f32 %v340, %v3530
    %v3532 = vpop.f32.mrb[0].mxu0
    %3533 = vdwg.mxu0
    %v3534 = vsel %vm524, %v3526, -inf
    %3535 = vmax.xlane.f32.xlu0 %v3534
    %v3536 = vpop.xlane.xlu0 %3535
    %v3537 = vsel %vm524, %v3531, -inf
    %3538 = vmax.xlane.f32.xlu0 %v3537
    %v3539 = vpop.xlane.xlu0 %3538
    %v3540 = vsub.f32 %v3526, %v3536
    %v3541 = vsub.f32 %v3531, %v3539
    %v3542 = vmul.f32 %v3540, 1.442695
    %v3543 = vpow.pop %v3542
    %v3544 = vmul.f32 %v3541, 1.442695
    %v3545 = vpow.pop %v3544
    %v3546 = vsel %vm524, %v3543, 0.0
    %3547 = vadd.xlane.f32.xlu0 %v3546
    %v3548 = vpop.xlane.xlu0 %3547
    %v3549 = vsel %vm524, %v3545, 0.0
    %3550 = vadd.xlane.f32.xlu0 %v3549
    %v3551 = vpop.xlane.xlu0 %3550
    %v3552 = vrcp.pop %v3548
    %v3553 = vrcp.pop %v3551
    %v3554 = vmul.f32 %v3543, %v3552
    %v3555 = vmul.f32 %v3545, %v3553
    %3556 = vrot.lane.b32.xlu0 %v2828, 40
    %v3557 = vpop.permute.xlu0 %3556
    %3558 = vrot.lane.b32.xlu0 %v2833, 40
    %v3559 = vpop.permute.xlu0 %3558
    %v3563 = vsel %vm524, %v3554, 0
    %v3566 = vsel %vm524, %v3555, 0
    %3568 = vmatprep.subr.mxu0 0.0
    %3569 = vmatpush1.msra.mxu0 %v3557
    %3570 = vmatprep.subr.mxu0 0.0
    %3571 = vmatpush1.msra.mxu0 %v3559
    %3572 = vmatprep.subr.mxu0 0.0
    %3573 = vmatpush1.msra.mxu0 0.0
    %3574 = vmatprep.subr.mxu0 0.0
    %3575 = vmatpush1.msra.mxu0 0.0
    %3576 = vmatprep.subr.mxu0 0.0
    %3577 = vmatpush1.msra.mxu0 0.0
    %3578 = vmatprep.subr.mxu0 0.0
    %3579 = vmatpush1.msra.mxu0 0.0
    %3580 = vmatprep.subr.mxu0 0.0
    %3581 = vmatpush1.msra.mxu0 0.0
    %3582 = vmatprep.subr.mxu0 0.0
    %3583 = vmatpush1.msra.mxu0 0.0
    %3584 = vmatprep.subr.mxu0 0.0
    %3585 = vmatpush1.msra.mxu0 0.0
    %3586 = vmatprep.subr.mxu0 0.0
    %3587 = vmatpush1.msra.mxu0 0.0
    %3588 = vmatprep.subr.mxu0 0.0
    %3589 = vmatpush1.msra.mxu0 0.0
    %3590 = vmatprep.subr.mxu0 0.0
    %3591 = vmatpush1.msra.mxu0 0.0
    %3592 = vmatprep.subr.mxu0 0.0
    %3593 = vmatpush1.msra.mxu0 0.0
    %3594 = vmatprep.subr.mxu0 0.0
    %3595 = vmatpush1.msra.mxu0 0.0
    %3596 = vmatprep.subr.mxu0 0.0
    %3597 = vmatpush1.msra.mxu0 0.0
    %3598 = vmatprep.subr.mxu0 0.0
    %3599 = vmatpush1.msra.mxu0 0.0
    %3600 = vmatprep.subr.mxu0 0.0
    %3601 = vmatpush1.msra.mxu0 0.0
    %3602 = vmatprep.subr.mxu0 0.0
    %3603 = vmatpush1.msra.mxu0 0.0
    %3604 = vmatprep.subr.mxu0 0.0
    %3605 = vmatpush1.msra.mxu0 0.0
    %3606 = vmatprep.subr.mxu0 0.0
    %3607 = vmatpush1.msra.mxu0 0.0
    %3608 = vmatprep.subr.mxu0 0.0
    %3609 = vmatpush1.msra.mxu0 0.0
    %3610 = vmatprep.subr.mxu0 0.0
    %3611 = vmatpush1.msra.mxu0 0.0
    %3612 = vmatprep.subr.mxu0 0.0
    %3613 = vmatpush1.msra.mxu0 0.0
    %3614 = vmatprep.subr.mxu0 0.0
    %3615 = vmatpush1.msra.mxu0 0.0
    %3616 = vmatprep.subr.mxu0 0.0
    %3617 = vmatpush1.msra.mxu0 0.0
    %3618 = vmatprep.subr.mxu0 0.0
    %3619 = vmatpush1.msra.mxu0 0.0
    %3620 = vmatprep.subr.mxu0 0.0
    %3621 = vmatpush1.msra.mxu0 0.0
    %3622 = vmatprep.subr.mxu0 0.0
    %3623 = vmatpush1.msra.mxu0 0.0
    %3624 = vmatprep.subr.mxu0 0.0
    %3625 = vmatpush1.msra.mxu0 0.0
    %3626 = vmatprep.subr.mxu0 0.0
    %3627 = vmatpush1.msra.mxu0 0.0
    %3628 = vmatprep.subr.mxu0 0.0
    %3629 = vmatpush1.msra.mxu0 0.0
    %3630 = vmatprep.subr.mxu0 0.0
    %3631 = vmatpush1.msra.mxu0 0.0
    %3632 = vmatprep.mubr.f32.mxu0 0.0
    %3633 = vmatmul.mubr.f32.gmra.mrb[0].mxu0 %v3563
    %v3634 = vpop.f32.mrb[0].mxu0
    %v3635 = vadd.f32 0.0, %v3634
    %v3636 = vpop.f32.mrb[0].mxu0
    %3637 = vmatprep.mubr.f32.mxu0 0.0
    %3638 = vmatmul.mubr.f32.gmra.mrb[0].mxu0 %v3566
    %v3639 = vpop.f32.mrb[0].mxu0
    %v3640 = vadd.f32 0.0, %v3639
    %v3641 = vpop.f32.mrb[0].mxu0
    %3642 = vdwg.mxu0
    %3645 = vrot.lane.b32.xlu0 %v3235, 8
    %v3646 = vpop.permute.xlu0 %3645
    %3647 = vrot.lane.b32.xlu0 %v3240, 8
    %v3648 = vpop.permute.xlu0 %3647
    %3653 = vrot.lane.b32.xlu0 %v3435, 16
    %v3654 = vpop.permute.xlu0 %3653
    %3655 = vrot.lane.b32.xlu0 %v3440, 16
    %v3656 = vpop.permute.xlu0 %3655
    %3661 = vrot.lane.b32.xlu0 %v3635, 24
    %v3662 = vpop.permute.xlu0 %3661
    %3663 = vrot.lane.b32.xlu0 %v3640, 24
    %v3664 = vpop.permute.xlu0 %3663
    %v3667 = vsel %vm440, %v3035, %v3646
    %v3668 = vsel %vm440, %v3040, %v3648
    %v3669 = vsel %vm524, %v3667, %v3654
    %v3670 = vsel %vm524, %v3668, %v3656
    %v3671 = vsel %vm1262, %v3669, %v3662
    %v3672 = vsel %vm1262, %v3670, %v3664
    %v3674 = vsel %vm293, %v3671, 0
    %v3677 = vsel %vm293, %v3672, 0
    %3679 = vmatprep.subr.mxu0 0.0
    %3680 = vmatpush1.msra.mxu0 %v2837
    %3681 = vmatprep.subr.mxu0 0.0
    %3682 = vmatpush1.msra.mxu0 %v2838
    %3683 = vmatprep.subr.mxu0 0.0
    %3684 = vmatpush1.msra.mxu0 %v2839
    %3685 = vmatprep.subr.mxu0 0.0
    %3686 = vmatpush1.msra.mxu0 %v2840
    %3687 = vmatprep.subr.mxu0 0.0
    %3688 = vmatpush1.msra.mxu0 0.0
    %3689 = vmatprep.subr.mxu0 0.0
    %3690 = vmatpush1.msra.mxu0 0.0
    %3691 = vmatprep.subr.mxu0 0.0
    %3692 = vmatpush1.msra.mxu0 0.0
    %3693 = vmatprep.subr.mxu0 0.0
    %3694 = vmatpush1.msra.mxu0 0.0
    %3695 = vmatprep.subr.mxu0 0.0
    %3696 = vmatpush1.msra.mxu0 0.0
    %3697 = vmatprep.subr.mxu0 0.0
    %3698 = vmatpush1.msra.mxu0 0.0
    %3699 = vmatprep.subr.mxu0 0.0
    %3700 = vmatpush1.msra.mxu0 0.0
    %3701 = vmatprep.subr.mxu0 0.0
    %3702 = vmatpush1.msra.mxu0 0.0
    %3703 = vmatprep.subr.mxu0 0.0
    %3704 = vmatpush1.msra.mxu0 0.0
    %3705 = vmatprep.subr.mxu0 0.0
    %3706 = vmatpush1.msra.mxu0 0.0
    %3707 = vmatprep.subr.mxu0 0.0
    %3708 = vmatpush1.msra.mxu0 0.0
    %3709 = vmatprep.subr.mxu0 0.0
    %3710 = vmatpush1.msra.mxu0 0.0
    %3711 = vmatprep.subr.mxu0 0.0
    %3712 = vmatpush1.msra.mxu0 0.0
    %3713 = vmatprep.subr.mxu0 0.0
    %3714 = vmatpush1.msra.mxu0 0.0
    %3715 = vmatprep.subr.mxu0 0.0
    %3716 = vmatpush1.msra.mxu0 0.0
    %3717 = vmatprep.subr.mxu0 0.0
    %3718 = vmatpush1.msra.mxu0 0.0
    %3719 = vmatprep.subr.mxu0 0.0
    %3720 = vmatpush1.msra.mxu0 0.0
    %3721 = vmatprep.subr.mxu0 0.0
    %3722 = vmatpush1.msra.mxu0 0.0
    %3723 = vmatprep.subr.mxu0 0.0
    %3724 = vmatpush1.msra.mxu0 0.0
    %3725 = vmatprep.subr.mxu0 0.0
    %3726 = vmatpush1.msra.mxu0 0.0
    %3727 = vmatprep.subr.mxu0 0.0
    %3728 = vmatpush1.msra.mxu0 0.0
    %3729 = vmatprep.subr.mxu0 0.0
    %3730 = vmatpush1.msra.mxu0 0.0
    %3731 = vmatprep.subr.mxu0 0.0
    %3732 = vmatpush1.msra.mxu0 0.0
    %3733 = vmatprep.subr.mxu0 0.0
    %3734 = vmatpush1.msra.mxu0 0.0
    %3735 = vmatprep.subr.mxu0 0.0
    %3736 = vmatpush1.msra.mxu0 0.0
    %3737 = vmatprep.subr.mxu0 0.0
    %3738 = vmatpush1.msra.mxu0 0.0
    %3739 = vmatprep.subr.mxu0 0.0
    %3740 = vmatpush1.msra.mxu0 0.0
    %3741 = vmatprep.subr.mxu0 0.0
    %3742 = vmatpush1.msra.mxu0 0.0
    %3743 = vmatprep.mubr.f32.mxu0 0.0
    %3744 = vmatmul.mubr.f32.gmra.mrb[0].mxu0 %v3674
    %v3745 = vpop.f32.mrb[0].mxu0
    %v3746 = vadd.f32 %v2748, %v3745
    %v3747 = vpop.f32.mrb[0].mxu0
    %3748 = vmatprep.mubr.f32.mxu0 0.0
    %3749 = vmatmul.mubr.f32.gmra.mrb[0].mxu0 %v3677
    %v3750 = vpop.f32.mrb[0].mxu0
    %v3751 = vadd.f32 %v2749, %v3750
    %v3752 = vpop.f32.mrb[0].mxu0
    %3753 = vdwg.mxu0
    %v3754 = vsel %vm293, %v3746, 0.0
    %3755 = vadd.xlane.f32.xlu0 %v3754
    %v3756 = vpop.xlane.xlu0 %3755
    %v3757 = vsel %vm293, %v3751, 0.0
    %3758 = vadd.xlane.f32.xlu0 %v3757
    %v3759 = vpop.xlane.xlu0 %3758
    %v3760 = vmul.f32 %v3756, %v300
    %v3761 = vmul.f32 %v3759, %v300
    %v3762 = vsub.f32 %v3746, %v3760
    %v3763 = vsub.f32 %v3751, %v3761
    %v3764 = vmul.f32 %v3762, %v3762
    %v3765 = vmul.f32 %v3763, %v3763
    %v3766 = vsel %vm293, %v3764, 0.0
    %3767 = vadd.xlane.f32.xlu0 %v3766
    %v3768 = vpop.xlane.xlu0 %3767
    %v3769 = vsel %vm293, %v3765, 0.0
    %3770 = vadd.xlane.f32.xlu0 %v3769
    %v3771 = vpop.xlane.xlu0 %3770
    %v3772 = vmul.f32 %v3768, %v300
    %v3773 = vmul.f32 %v3771, %v300
    %v3774 = vadd.f32 %v3772, 1e-06
    %v3775 = vadd.f32 %v3773, 1e-06
    %v3776 = vrsqrt.pop %v3774
    %v3777 = vrsqrt.pop %v3775
    %v3778 = vmul.f32 %v3762, %v3776
    %v3779 = vmul.f32 %v3763, %v3777
    %v3781 = vlaneseq
    %v3782 = vshrl.u32 %v3781, 7
    %v3783 = vsub.s32 0, %v3782
    %v3784 = vrot.slane %v2842, %v3783
    %v3786 = vmul.f32 %v3778, %v3784
    %v3787 = vmul.f32 %v3779, %v3784
    %v3789 = vlaneseq
    %v3790 = vshrl.u32 %v3789, 7
    %v3791 = vsub.s32 0, %v3790
    %v3792 = vrot.slane %v2844, %v3791
    %v3794 = vadd.f32 %v3786, %v3792
    %v3795 = vadd.f32 %v3787, %v3792
    %s3796 = scalar_lea.vmem %s12, 32
    %v3797 = vld [vmem:[%s3796] sm:$0xff]
    %v3798 = vld [vmem:[%s3796 + $0x8] sm:$0xff]
    %v3799 = vld [vmem:[%s3796 + $0x10] sm:$0xff]
    %v3800 = vld [vmem:[%s3796 + $0x18] sm:$0xff]
    %v3802 = vsel %vm293, %v3794, 0
    %v3805 = vsel %vm293, %v3795, 0
    %3807 = vmatprep.subr.mxu0 0.0
    %3808 = vmatpush1.msra.mxu0 %v3797
    %3809 = vmatprep.subr.mxu0 0.0
    %3810 = vmatpush1.msra.mxu0 %v3798
    %3811 = vmatprep.subr.mxu0 0.0
    %3812 = vmatpush1.msra.mxu0 %v3799
    %3813 = vmatprep.subr.mxu0 0.0
    %3814 = vmatpush1.msra.mxu0 %v3800
    %3815 = vmatprep.subr.mxu0 0.0
    %3816 = vmatpush1.msra.mxu0 0.0
    %3817 = vmatprep.subr.mxu0 0.0
    %3818 = vmatpush1.msra.mxu0 0.0
    %3819 = vmatprep.subr.mxu0 0.0
    %3820 = vmatpush1.msra.mxu0 0.0
    %3821 = vmatprep.subr.mxu0 0.0
    %3822 = vmatpush1.msra.mxu0 0.0
    %3823 = vmatprep.subr.mxu0 0.0
    %3824 = vmatpush1.msra.mxu0 0.0
    %3825 = vmatprep.subr.mxu0 0.0
    %3826 = vmatpush1.msra.mxu0 0.0
    %3827 = vmatprep.subr.mxu0 0.0
    %3828 = vmatpush1.msra.mxu0 0.0
    %3829 = vmatprep.subr.mxu0 0.0
    %3830 = vmatpush1.msra.mxu0 0.0
    %3831 = vmatprep.subr.mxu0 0.0
    %3832 = vmatpush1.msra.mxu0 0.0
    %3833 = vmatprep.subr.mxu0 0.0
    %3834 = vmatpush1.msra.mxu0 0.0
    %3835 = vmatprep.subr.mxu0 0.0
    %3836 = vmatpush1.msra.mxu0 0.0
    %3837 = vmatprep.subr.mxu0 0.0
    %3838 = vmatpush1.msra.mxu0 0.0
    %3839 = vmatprep.subr.mxu0 0.0
    %3840 = vmatpush1.msra.mxu0 0.0
    %3841 = vmatprep.subr.mxu0 0.0
    %3842 = vmatpush1.msra.mxu0 0.0
    %3843 = vmatprep.subr.mxu0 0.0
    %3844 = vmatpush1.msra.mxu0 0.0
    %3845 = vmatprep.subr.mxu0 0.0
    %3846 = vmatpush1.msra.mxu0 0.0
    %3847 = vmatprep.subr.mxu0 0.0
    %3848 = vmatpush1.msra.mxu0 0.0
    %3849 = vmatprep.subr.mxu0 0.0
    %3850 = vmatpush1.msra.mxu0 0.0
    %3851 = vmatprep.subr.mxu0 0.0
    %3852 = vmatpush1.msra.mxu0 0.0
    %3853 = vmatprep.subr.mxu0 0.0
    %3854 = vmatpush1.msra.mxu0 0.0
    %3855 = vmatprep.subr.mxu0 0.0
    %3856 = vmatpush1.msra.mxu0 0.0
    %3857 = vmatprep.subr.mxu0 0.0
    %3858 = vmatpush1.msra.mxu0 0.0
    %3859 = vmatprep.subr.mxu0 0.0
    %3860 = vmatpush1.msra.mxu0 0.0
    %3861 = vmatprep.subr.mxu0 0.0
    %3862 = vmatpush1.msra.mxu0 0.0
    %3863 = vmatprep.subr.mxu0 0.0
    %3864 = vmatpush1.msra.mxu0 0.0
    %3865 = vmatprep.subr.mxu0 0.0
    %3866 = vmatpush1.msra.mxu0 0.0
    %3867 = vmatprep.subr.mxu0 0.0
    %3868 = vmatpush1.msra.mxu0 0.0
    %3869 = vmatprep.subr.mxu0 0.0
    %3870 = vmatpush1.msra.mxu0 0.0
    %3871 = vmatprep.mubr.f32.mxu0 0.0
    %3872 = vmatmul.mubr.f32.gmra.mrb[0].mxu0 %v3802
    %v3873 = vpop.f32.mrb[0].mxu0
    %v3874 = vadd.f32 0.0, %v3873
    %v3875 = vpop.f32.mrb[0].mxu0
    %3876 = vmatprep.mubr.f32.mxu0 0.0
    %3877 = vmatmul.mubr.f32.gmra.mrb[0].mxu0 %v3805
    %v3878 = vpop.f32.mrb[0].mxu0
    %v3879 = vadd.f32 0.0, %v3878
    %v3880 = vpop.f32.mrb[0].mxu0
    %3881 = vdwg.mxu0
    %s3882 = scalar_lea.vmem %s13, 32
    %v3883 = vld [vmem:[%s3882] sm:$0xff]
    %v3884 = vld [vmem:[%s3882 + $0x8] sm:$0xff]
    %v3885 = vld [vmem:[%s3882 + $0x10] sm:$0xff]
    %v3886 = vld [vmem:[%s3882 + $0x18] sm:$0xff]
    %3887 = vmatprep.subr.mxu0 0.0
    %3888 = vmatpush1.msra.mxu0 %v3883
    %3889 = vmatprep.subr.mxu0 0.0
    %3890 = vmatpush1.msra.mxu0 %v3884
    %3891 = vmatprep.subr.mxu0 0.0
    %3892 = vmatpush1.msra.mxu0 %v3885
    %3893 = vmatprep.subr.mxu0 0.0
    %3894 = vmatpush1.msra.mxu0 %v3886
    %3895 = vmatprep.subr.mxu0 0.0
    %3896 = vmatpush1.msra.mxu0 0.0
    %3897 = vmatprep.subr.mxu0 0.0
    %3898 = vmatpush1.msra.mxu0 0.0
    %3899 = vmatprep.subr.mxu0 0.0
    %3900 = vmatpush1.msra.mxu0 0.0
    %3901 = vmatprep.subr.mxu0 0.0
    %3902 = vmatpush1.msra.mxu0 0.0
    %3903 = vmatprep.subr.mxu0 0.0
    %3904 = vmatpush1.msra.mxu0 0.0
    %3905 = vmatprep.subr.mxu0 0.0
    %3906 = vmatpush1.msra.mxu0 0.0
    %3907 = vmatprep.subr.mxu0 0.0
    %3908 = vmatpush1.msra.mxu0 0.0
    %3909 = vmatprep.subr.mxu0 0.0
    %3910 = vmatpush1.msra.mxu0 0.0
    %3911 = vmatprep.subr.mxu0 0.0
    %3912 = vmatpush1.msra.mxu0 0.0
    %3913 = vmatprep.subr.mxu0 0.0
    %3914 = vmatpush1.msra.mxu0 0.0
    %3915 = vmatprep.subr.mxu0 0.0
    %3916 = vmatpush1.msra.mxu0 0.0
    %3917 = vmatprep.subr.mxu0 0.0
    %3918 = vmatpush1.msra.mxu0 0.0
    %3919 = vmatprep.subr.mxu0 0.0
    %3920 = vmatpush1.msra.mxu0 0.0
    %3921 = vmatprep.subr.mxu0 0.0
    %3922 = vmatpush1.msra.mxu0 0.0
    %3923 = vmatprep.subr.mxu0 0.0
    %3924 = vmatpush1.msra.mxu0 0.0
    %3925 = vmatprep.subr.mxu0 0.0
    %3926 = vmatpush1.msra.mxu0 0.0
    %3927 = vmatprep.subr.mxu0 0.0
    %3928 = vmatpush1.msra.mxu0 0.0
    %3929 = vmatprep.subr.mxu0 0.0
    %3930 = vmatpush1.msra.mxu0 0.0
    %3931 = vmatprep.subr.mxu0 0.0
    %3932 = vmatpush1.msra.mxu0 0.0
    %3933 = vmatprep.subr.mxu0 0.0
    %3934 = vmatpush1.msra.mxu0 0.0
    %3935 = vmatprep.subr.mxu0 0.0
    %3936 = vmatpush1.msra.mxu0 0.0
    %3937 = vmatprep.subr.mxu0 0.0
    %3938 = vmatpush1.msra.mxu0 0.0
    %3939 = vmatprep.subr.mxu0 0.0
    %3940 = vmatpush1.msra.mxu0 0.0
    %3941 = vmatprep.subr.mxu0 0.0
    %3942 = vmatpush1.msra.mxu0 0.0
    %3943 = vmatprep.subr.mxu0 0.0
    %3944 = vmatpush1.msra.mxu0 0.0
    %3945 = vmatprep.subr.mxu0 0.0
    %3946 = vmatpush1.msra.mxu0 0.0
    %3947 = vmatprep.subr.mxu0 0.0
    %3948 = vmatpush1.msra.mxu0 0.0
    %3949 = vmatprep.subr.mxu0 0.0
    %3950 = vmatpush1.msra.mxu0 0.0
    %3951 = vmatprep.mubr.f32.mxu0 0.0
    %3952 = vmatmul.mubr.f32.gmra.mrb[0].mxu0 %v1478
    %v3953 = vpop.f32.mrb[0].mxu0
    %v3954 = vadd.f32 0.0, %v3953
    %v3955 = vpop.f32.mrb[0].mxu0
    %3956 = vmatprep.mubr.f32.mxu0 0.0
    %3957 = vmatmul.mubr.f32.gmra.mrb[0].mxu0 %v1481
    %v3958 = vpop.f32.mrb[0].mxu0
    %v3959 = vadd.f32 0.0, %v3958
    %v3960 = vpop.f32.mrb[0].mxu0
    %3961 = vdwg.mxu0
    %s3962 = scalar_lea.vmem [#allocation13], 32
    %v3963 = vld [vmem:[%s3962] sm:$0xff]
    %v3964 = vld [vmem:[%s3962 + $0x8] sm:$0xff]
    %v3965 = vld [vmem:[%s3962 + $0x10] sm:$0xff]
    %v3966 = vld [vmem:[%s3962 + $0x18] sm:$0xff]
    %s3967 = scalar_lea.vmem %s15, 1
    %v3968 = vld [vmem:[%s3967] sm:$0x1]
    %s3969 = scalar_lea.vmem %s16, 1
    %v3970 = vld [vmem:[%s3969] sm:$0x1]
    %v3972 = vsel %vm440, %v3874, 0
    %v3975 = vsel %vm440, %v3879, 0
    %v3978 = vsel %vm440, %v3954, 0
    %v3981 = vsel %vm440, %v3959, 0
    %3983 = vmatprep.subr.mxu0 0.0
    %3984 = vmatpush1.xpose.msra.mxu0 %v3978
    %3985 = vmatprep.subr.mxu0 0.0
    %3986 = vmatpush1.xpose.msra.mxu0 %v3981
    %3987 = vmatprep.subr.mxu0 0.0
    %3988 = vmatpush1.xpose.msra.mxu0 0.0
    %3989 = vmatprep.subr.mxu0 0.0
    %3990 = vmatpush1.xpose.msra.mxu0 0.0
    %3991 = vmatprep.subr.mxu0 0.0
    %3992 = vmatpush1.xpose.msra.mxu0 0.0
    %3993 = vmatprep.subr.mxu0 0.0
    %3994 = vmatpush1.xpose.msra.mxu0 0.0
    %3995 = vmatprep.subr.mxu0 0.0
    %3996 = vmatpush1.xpose.msra.mxu0 0.0
    %3997 = vmatprep.subr.mxu0 0.0
    %3998 = vmatpush1.xpose.msra.mxu0 0.0
    %3999 = vmatprep.subr.mxu0 0.0
    %4000 = vmatpush1.xpose.msra.mxu0 0.0
    %4001 = vmatprep.subr.mxu0 0.0
    %4002 = vmatpush1.xpose.msra.mxu0 0.0
    %4003 = vmatprep.subr.mxu0 0.0
    %4004 = vmatpush1.xpose.msra.mxu0 0.0
    %4005 = vmatprep.subr.mxu0 0.0
    %4006 = vmatpush1.xpose.msra.mxu0 0.0
    %4007 = vmatprep.subr.mxu0 0.0
    %4008 = vmatpush1.xpose.msra.mxu0 0.0
    %4009 = vmatprep.subr.mxu0 0.0
    %4010 = vmatpush1.xpose.msra.mxu0 0.0
    %4011 = vmatprep.subr.mxu0 0.0
    %4012 = vmatpush1.xpose.msra.mxu0 0.0
    %4013 = vmatprep.subr.mxu0 0.0
    %4014 = vmatpush1.xpose.msra.mxu0 0.0
    %4015 = vmatprep.subr.mxu0 0.0
    %4016 = vmatpush1.xpose.msra.mxu0 0.0
    %4017 = vmatprep.subr.mxu0 0.0
    %4018 = vmatpush1.xpose.msra.mxu0 0.0
    %4019 = vmatprep.subr.mxu0 0.0
    %4020 = vmatpush1.xpose.msra.mxu0 0.0
    %4021 = vmatprep.subr.mxu0 0.0
    %4022 = vmatpush1.xpose.msra.mxu0 0.0
    %4023 = vmatprep.subr.mxu0 0.0
    %4024 = vmatpush1.xpose.msra.mxu0 0.0
    %4025 = vmatprep.subr.mxu0 0.0
    %4026 = vmatpush1.xpose.msra.mxu0 0.0
    %4027 = vmatprep.subr.mxu0 0.0
    %4028 = vmatpush1.xpose.msra.mxu0 0.0
    %4029 = vmatprep.subr.mxu0 0.0
    %4030 = vmatpush1.xpose.msra.mxu0 0.0
    %4031 = vmatprep.subr.mxu0 0.0
    %4032 = vmatpush1.xpose.msra.mxu0 0.0
    %4033 = vmatprep.subr.mxu0 0.0
    %4034 = vmatpush1.xpose.msra.mxu0 0.0
    %4035 = vmatprep.subr.mxu0 0.0
    %4036 = vmatpush1.xpose.msra.mxu0 0.0
    %4037 = vmatprep.subr.mxu0 0.0
    %4038 = vmatpush1.xpose.msra.mxu0 0.0
    %4039 = vmatprep.subr.mxu0 0.0
    %4040 = vmatpush1.xpose.msra.mxu0 0.0
    %4041 = vmatprep.subr.mxu0 0.0
    %4042 = vmatpush1.xpose.msra.mxu0 0.0
    %4043 = vmatprep.subr.mxu0 0.0
    %4044 = vmatpush1.xpose.msra.mxu0 0.0
    %4045 = vmatprep.subr.mxu0 0.0
    %4046 = vmatpush1.xpose.msra.mxu0 0.0
    %4047 = vmatprep.mubr.f32.mxu0 0.0
    %4048 = vmatmul.mubr.f32.gmra.mrb[0].mxu0 %v3972
    %v4049 = vpop.f32.mrb[0].mxu0
    %v4050 = vadd.f32 %v341, %v4049
    %v4051 = vpop.f32.mrb[0].mxu0
    %4052 = vmatprep.mubr.f32.mxu0 0.0
    %4053 = vmatmul.mubr.f32.gmra.mrb[0].mxu0 %v3975
    %v4054 = vpop.f32.mrb[0].mxu0
    %v4055 = vadd.f32 %v342, %v4054
    %v4056 = vpop.f32.mrb[0].mxu0
    %4057 = vdwg.mxu0
    %v4058 = vsel %vm524, %v4050, -inf
    %4059 = vmax.xlane.f32.xlu0 %v4058
    %v4060 = vpop.xlane.xlu0 %4059
    %v4061 = vsel %vm524, %v4055, -inf
    %4062 = vmax.xlane.f32.xlu0 %v4061
    %v4063 = vpop.xlane.xlu0 %4062
    %v4064 = vsub.f32 %v4050, %v4060
    %v4065 = vsub.f32 %v4055, %v4063
    %v4066 = vmul.f32 %v4064, 1.442695
    %v4067 = vpow.pop %v4066
    %v4068 = vmul.f32 %v4065, 1.442695
    %v4069 = vpow.pop %v4068
    %v4070 = vsel %vm524, %v4067, 0.0
    %4071 = vadd.xlane.f32.xlu0 %v4070
    %v4072 = vpop.xlane.xlu0 %4071
    %v4073 = vsel %vm524, %v4069, 0.0
    %4074 = vadd.xlane.f32.xlu0 %v4073
    %v4075 = vpop.xlane.xlu0 %4074
    %v4076 = vrcp.pop %v4072
    %v4077 = vrcp.pop %v4075
    %v4078 = vmul.f32 %v4067, %v4076
    %v4079 = vmul.f32 %v4069, %v4077
    %4080 = vrot.lane.b32.xlu0 %v3954, 96
    %v4081 = vpop.permute.xlu0 %4080
    %4082 = vrot.lane.b32.xlu0 %v3959, 96
    %v4083 = vpop.permute.xlu0 %4082
    %v4087 = vsel %vm524, %v4078, 0
    %v4090 = vsel %vm524, %v4079, 0
    %4092 = vmatprep.subr.mxu0 0.0
    %4093 = vmatpush1.msra.mxu0 %v4081
    %4094 = vmatprep.subr.mxu0 0.0
    %4095 = vmatpush1.msra.mxu0 %v4083
    %4096 = vmatprep.subr.mxu0 0.0
    %4097 = vmatpush1.msra.mxu0 0.0
    %4098 = vmatprep.subr.mxu0 0.0
    %4099 = vmatpush1.msra.mxu0 0.0
    %4100 = vmatprep.subr.mxu0 0.0
    %4101 = vmatpush1.msra.mxu0 0.0
    %4102 = vmatprep.subr.mxu0 0.0
    %4103 = vmatpush1.msra.mxu0 0.0
    %4104 = vmatprep.subr.mxu0 0.0
    %4105 = vmatpush1.msra.mxu0 0.0
    %4106 = vmatprep.subr.mxu0 0.0
    %4107 = vmatpush1.msra.mxu0 0.0
    %4108 = vmatprep.subr.mxu0 0.0
    %4109 = vmatpush1.msra.mxu0 0.0
    %4110 = vmatprep.subr.mxu0 0.0
    %4111 = vmatpush1.msra.mxu0 0.0
    %4112 = vmatprep.subr.mxu0 0.0
    %4113 = vmatpush1.msra.mxu0 0.0
    %4114 = vmatprep.subr.mxu0 0.0
    %4115 = vmatpush1.msra.mxu0 0.0
    %4116 = vmatprep.subr.mxu0 0.0
    %4117 = vmatpush1.msra.mxu0 0.0
    %4118 = vmatprep.subr.mxu0 0.0
    %4119 = vmatpush1.msra.mxu0 0.0
    %4120 = vmatprep.subr.mxu0 0.0
    %4121 = vmatpush1.msra.mxu0 0.0
    %4122 = vmatprep.subr.mxu0 0.0
    %4123 = vmatpush1.msra.mxu0 0.0
    %4124 = vmatprep.subr.mxu0 0.0
    %4125 = vmatpush1.msra.mxu0 0.0
    %4126 = vmatprep.subr.mxu0 0.0
    %4127 = vmatpush1.msra.mxu0 0.0
    %4128 = vmatprep.subr.mxu0 0.0
    %4129 = vmatpush1.msra.mxu0 0.0
    %4130 = vmatprep.subr.mxu0 0.0
    %4131 = vmatpush1.msra.mxu0 0.0
    %4132 = vmatprep.subr.mxu0 0.0
    %4133 = vmatpush1.msra.mxu0 0.0
    %4134 = vmatprep.subr.mxu0 0.0
    %4135 = vmatpush1.msra.mxu0 0.0
    %4136 = vmatprep.subr.mxu0 0.0
    %4137 = vmatpush1.msra.mxu0 0.0
    %4138 = vmatprep.subr.mxu0 0.0
    %4139 = vmatpush1.msra.mxu0 0.0
    %4140 = vmatprep.subr.mxu0 0.0
    %4141 = vmatpush1.msra.mxu0 0.0
    %4142 = vmatprep.subr.mxu0 0.0
    %4143 = vmatpush1.msra.mxu0 0.0
    %4144 = vmatprep.subr.mxu0 0.0
    %4145 = vmatpush1.msra.mxu0 0.0
    %4146 = vmatprep.subr.mxu0 0.0
    %4147 = vmatpush1.msra.mxu0 0.0
    %4148 = vmatprep.subr.mxu0 0.0
    %4149 = vmatpush1.msra.mxu0 0.0
    %4150 = vmatprep.subr.mxu0 0.0
    %4151 = vmatpush1.msra.mxu0 0.0
    %4152 = vmatprep.subr.mxu0 0.0
    %4153 = vmatpush1.msra.mxu0 0.0
    %4154 = vmatprep.subr.mxu0 0.0
    %4155 = vmatpush1.msra.mxu0 0.0
    %4156 = vmatprep.mubr.f32.mxu0 0.0
    %4157 = vmatmul.mubr.f32.gmra.mrb[0].mxu0 %v4087
    %v4158 = vpop.f32.mrb[0].mxu0
    %v4159 = vadd.f32 0.0, %v4158
    %v4160 = vpop.f32.mrb[0].mxu0
    %4161 = vmatprep.mubr.f32.mxu0 0.0
    %4162 = vmatmul.mubr.f32.gmra.mrb[0].mxu0 %v4090
    %v4163 = vpop.f32.mrb[0].mxu0
    %v4164 = vadd.f32 0.0, %v4163
    %v4165 = vpop.f32.mrb[0].mxu0
    %4166 = vdwg.mxu0
    %4167 = vrot.lane.b32.xlu0 %v3874, 120
    %v4168 = vpop.permute.xlu0 %4167
    %4169 = vrot.lane.b32.xlu0 %v3879, 120
    %v4170 = vpop.permute.xlu0 %4169
    %4171 = vrot.lane.b32.xlu0 %v3954, 120
    %v4172 = vpop.permute.xlu0 %4171
    %4173 = vrot.lane.b32.xlu0 %v3959, 120
    %v4174 = vpop.permute.xlu0 %4173
    %v4175 = vsel %vm440, %v4168, 0
    %v4177 = vsel %vm440, %v4170, 0
    %v4179 = vsel %vm440, %v4172, 0
    %v4181 = vsel %vm440, %v4174, 0
    %4183 = vmatprep.subr.mxu0 0.0
    %4184 = vmatpush1.xpose.msra.mxu0 %v4179
    %4185 = vmatprep.subr.mxu0 0.0
    %4186 = vmatpush1.xpose.msra.mxu0 %v4181
    %4187 = vmatprep.subr.mxu0 0.0
    %4188 = vmatpush1.xpose.msra.mxu0 0.0
    %4189 = vmatprep.subr.mxu0 0.0
    %4190 = vmatpush1.xpose.msra.mxu0 0.0
    %4191 = vmatprep.subr.mxu0 0.0
    %4192 = vmatpush1.xpose.msra.mxu0 0.0
    %4193 = vmatprep.subr.mxu0 0.0
    %4194 = vmatpush1.xpose.msra.mxu0 0.0
    %4195 = vmatprep.subr.mxu0 0.0
    %4196 = vmatpush1.xpose.msra.mxu0 0.0
    %4197 = vmatprep.subr.mxu0 0.0
    %4198 = vmatpush1.xpose.msra.mxu0 0.0
    %4199 = vmatprep.subr.mxu0 0.0
    %4200 = vmatpush1.xpose.msra.mxu0 0.0
    %4201 = vmatprep.subr.mxu0 0.0
    %4202 = vmatpush1.xpose.msra.mxu0 0.0
    %4203 = vmatprep.subr.mxu0 0.0
    %4204 = vmatpush1.xpose.msra.mxu0 0.0
    %4205 = vmatprep.subr.mxu0 0.0
    %4206 = vmatpush1.xpose.msra.mxu0 0.0
    %4207 = vmatprep.subr.mxu0 0.0
    %4208 = vmatpush1.xpose.msra.mxu0 0.0
    %4209 = vmatprep.subr.mxu0 0.0
    %4210 = vmatpush1.xpose.msra.mxu0 0.0
    %4211 = vmatprep.subr.mxu0 0.0
    %4212 = vmatpush1.xpose.msra.mxu0 0.0
    %4213 = vmatprep.subr.mxu0 0.0
    %4214 = vmatpush1.xpose.msra.mxu0 0.0
    %4215 = vmatprep.subr.mxu0 0.0
    %4216 = vmatpush1.xpose.msra.mxu0 0.0
    %4217 = vmatprep.subr.mxu0 0.0
    %4218 = vmatpush1.xpose.msra.mxu0 0.0
    %4219 = vmatprep.subr.mxu0 0.0
    %4220 = vmatpush1.xpose.msra.mxu0 0.0
    %4221 = vmatprep.subr.mxu0 0.0
    %4222 = vmatpush1.xpose.msra.mxu0 0.0
    %4223 = vmatprep.subr.mxu0 0.0
    %4224 = vmatpush1.xpose.msra.mxu0 0.0
    %4225 = vmatprep.subr.mxu0 0.0
    %4226 = vmatpush1.xpose.msra.mxu0 0.0
    %4227 = vmatprep.subr.mxu0 0.0
    %4228 = vmatpush1.xpose.msra.mxu0 0.0
    %4229 = vmatprep.subr.mxu0 0.0
    %4230 = vmatpush1.xpose.msra.mxu0 0.0
    %4231 = vmatprep.subr.mxu0 0.0
    %4232 = vmatpush1.xpose.msra.mxu0 0.0
    %4233 = vmatprep.subr.mxu0 0.0
    %4234 = vmatpush1.xpose.msra.mxu0 0.0
    %4235 = vmatprep.subr.mxu0 0.0
    %4236 = vmatpush1.xpose.msra.mxu0 0.0
    %4237 = vmatprep.subr.mxu0 0.0
    %4238 = vmatpush1.xpose.msra.mxu0 0.0
    %4239 = vmatprep.subr.mxu0 0.0
    %4240 = vmatpush1.xpose.msra.mxu0 0.0
    %4241 = vmatprep.subr.mxu0 0.0
    %4242 = vmatpush1.xpose.msra.mxu0 0.0
    %4243 = vmatprep.subr.mxu0 0.0
    %4244 = vmatpush1.xpose.msra.mxu0 0.0
    %4245 = vmatprep.subr.mxu0 0.0
    %4246 = vmatpush1.xpose.msra.mxu0 0.0
    %4247 = vmatprep.mubr.f32.mxu0 0.0
    %4248 = vmatmul.mubr.f32.gmra.mrb[0].mxu0 %v4175
    %v4249 = vpop.f32.mrb[0].mxu0
    %v4250 = vadd.f32 %v341, %v4249
    %v4251 = vpop.f32.mrb[0].mxu0
    %4252 = vmatprep.mubr.f32.mxu0 0.0
    %4253 = vmatmul.mubr.f32.gmra.mrb[0].mxu0 %v4177
    %v4254 = vpop.f32.mrb[0].mxu0
    %v4255 = vadd.f32 %v342, %v4254
    %v4256 = vpop.f32.mrb[0].mxu0
    %4257 = vdwg.mxu0
    %v4258 = vsel %vm524, %v4250, -inf
    %4259 = vmax.xlane.f32.xlu0 %v4258
    %v4260 = vpop.xlane.xlu0 %4259
    %v4261 = vsel %vm524, %v4255, -inf
    %4262 = vmax.xlane.f32.xlu0 %v4261
    %v4263 = vpop.xlane.xlu0 %4262
    %v4264 = vsub.f32 %v4250, %v4260
    %v4265 = vsub.f32 %v4255, %v4263
    %v4266 = vmul.f32 %v4264, 1.442695
    %v4267 = vpow.pop %v4266
    %v4268 = vmul.f32 %v4265, 1.442695
    %v4269 = vpow.pop %v4268
    %v4270 = vsel %vm524, %v4267, 0.0
    %4271 = vadd.xlane.f32.xlu0 %v4270
    %v4272 = vpop.xlane.xlu0 %4271
    %v4273 = vsel %vm524, %v4269, 0.0
    %4274 = vadd.xlane.f32.xlu0 %v4273
    %v4275 = vpop.xlane.xlu0 %4274
    %v4276 = vrcp.pop %v4272
    %v4277 = vrcp.pop %v4275
    %v4278 = vmul.f32 %v4267, %v4276
    %v4279 = vmul.f32 %v4269, %v4277
    %4280 = vrot.lane.b32.xlu0 %v3954, 88
    %v4281 = vpop.permute.xlu0 %4280
    %4282 = vrot.lane.b32.xlu0 %v3959, 88
    %v4283 = vpop.permute.xlu0 %4282
    %v4287 = vsel %vm524, %v4278, 0
    %v4290 = vsel %vm524, %v4279, 0
    %4292 = vmatprep.subr.mxu0 0.0
    %4293 = vmatpush1.msra.mxu0 %v4281
    %4294 = vmatprep.subr.mxu0 0.0
    %4295 = vmatpush1.msra.mxu0 %v4283
    %4296 = vmatprep.subr.mxu0 0.0
    %4297 = vmatpush1.msra.mxu0 0.0
    %4298 = vmatprep.subr.mxu0 0.0
    %4299 = vmatpush1.msra.mxu0 0.0
    %4300 = vmatprep.subr.mxu0 0.0
    %4301 = vmatpush1.msra.mxu0 0.0
    %4302 = vmatprep.subr.mxu0 0.0
    %4303 = vmatpush1.msra.mxu0 0.0
    %4304 = vmatprep.subr.mxu0 0.0
    %4305 = vmatpush1.msra.mxu0 0.0
    %4306 = vmatprep.subr.mxu0 0.0
    %4307 = vmatpush1.msra.mxu0 0.0
    %4308 = vmatprep.subr.mxu0 0.0
    %4309 = vmatpush1.msra.mxu0 0.0
    %4310 = vmatprep.subr.mxu0 0.0
    %4311 = vmatpush1.msra.mxu0 0.0
    %4312 = vmatprep.subr.mxu0 0.0
    %4313 = vmatpush1.msra.mxu0 0.0
    %4314 = vmatprep.subr.mxu0 0.0
    %4315 = vmatpush1.msra.mxu0 0.0
    %4316 = vmatprep.subr.mxu0 0.0
    %4317 = vmatpush1.msra.mxu0 0.0
    %4318 = vmatprep.subr.mxu0 0.0
    %4319 = vmatpush1.msra.mxu0 0.0
    %4320 = vmatprep.subr.mxu0 0.0
    %4321 = vmatpush1.msra.mxu0 0.0
    %4322 = vmatprep.subr.mxu0 0.0
    %4323 = vmatpush1.msra.mxu0 0.0
    %4324 = vmatprep.subr.mxu0 0.0
    %4325 = vmatpush1.msra.mxu0 0.0
    %4326 = vmatprep.subr.mxu0 0.0
    %4327 = vmatpush1.msra.mxu0 0.0
    %4328 = vmatprep.subr.mxu0 0.0
    %4329 = vmatpush1.msra.mxu0 0.0
    %4330 = vmatprep.subr.mxu0 0.0
    %4331 = vmatpush1.msra.mxu0 0.0
    %4332 = vmatprep.subr.mxu0 0.0
    %4333 = vmatpush1.msra.mxu0 0.0
    %4334 = vmatprep.subr.mxu0 0.0
    %4335 = vmatpush1.msra.mxu0 0.0
    %4336 = vmatprep.subr.mxu0 0.0
    %4337 = vmatpush1.msra.mxu0 0.0
    %4338 = vmatprep.subr.mxu0 0.0
    %4339 = vmatpush1.msra.mxu0 0.0
    %4340 = vmatprep.subr.mxu0 0.0
    %4341 = vmatpush1.msra.mxu0 0.0
    %4342 = vmatprep.subr.mxu0 0.0
    %4343 = vmatpush1.msra.mxu0 0.0
    %4344 = vmatprep.subr.mxu0 0.0
    %4345 = vmatpush1.msra.mxu0 0.0
    %4346 = vmatprep.subr.mxu0 0.0
    %4347 = vmatpush1.msra.mxu0 0.0
    %4348 = vmatprep.subr.mxu0 0.0
    %4349 = vmatpush1.msra.mxu0 0.0
    %4350 = vmatprep.subr.mxu0 0.0
    %4351 = vmatpush1.msra.mxu0 0.0
    %4352 = vmatprep.subr.mxu0 0.0
    %4353 = vmatpush1.msra.mxu0 0.0
    %4354 = vmatprep.subr.mxu0 0.0
    %4355 = vmatpush1.msra.mxu0 0.0
    %4356 = vmatprep.mubr.f32.mxu0 0.0
    %4357 = vmatmul.mubr.f32.gmra.mrb[0].mxu0 %v4287
    %v4358 = vpop.f32.mrb[0].mxu0
    %v4359 = vadd.f32 0.0, %v4358
    %v4360 = vpop.f32.mrb[0].mxu0
    %4361 = vmatprep.mubr.f32.mxu0 0.0
    %4362 = vmatmul.mubr.f32.gmra.mrb[0].mxu0 %v4290
    %v4363 = vpop.f32.mrb[0].mxu0
    %v4364 = vadd.f32 0.0, %v4363
    %v4365 = vpop.f32.mrb[0].mxu0
    %4366 = vdwg.mxu0
    %4367 = vrot.lane.b32.xlu0 %v3874, 112
    %v4368 = vpop.permute.xlu0 %4367
    %4369 = vrot.lane.b32.xlu0 %v3879, 112
    %v4370 = vpop.permute.xlu0 %4369
    %4371 = vrot.lane.b32.xlu0 %v3954, 112
    %v4372 = vpop.permute.xlu0 %4371
    %4373 = vrot.lane.b32.xlu0 %v3959, 112
    %v4374 = vpop.permute.xlu0 %4373
    %v4375 = vsel %vm440, %v4368, 0
    %v4377 = vsel %vm440, %v4370, 0
    %v4379 = vsel %vm440, %v4372, 0
    %v4381 = vsel %vm440, %v4374, 0
    %4383 = vmatprep.subr.mxu0 0.0
    %4384 = vmatpush1.xpose.msra.mxu0 %v4379
    %4385 = vmatprep.subr.mxu0 0.0
    %4386 = vmatpush1.xpose.msra.mxu0 %v4381
    %4387 = vmatprep.subr.mxu0 0.0
    %4388 = vmatpush1.xpose.msra.mxu0 0.0
    %4389 = vmatprep.subr.mxu0 0.0
    %4390 = vmatpush1.xpose.msra.mxu0 0.0
    %4391 = vmatprep.subr.mxu0 0.0
    %4392 = vmatpush1.xpose.msra.mxu0 0.0
    %4393 = vmatprep.subr.mxu0 0.0
    %4394 = vmatpush1.xpose.msra.mxu0 0.0
    %4395 = vmatprep.subr.mxu0 0.0
    %4396 = vmatpush1.xpose.msra.mxu0 0.0
    %4397 = vmatprep.subr.mxu0 0.0
    %4398 = vmatpush1.xpose.msra.mxu0 0.0
    %4399 = vmatprep.subr.mxu0 0.0
    %4400 = vmatpush1.xpose.msra.mxu0 0.0
    %4401 = vmatprep.subr.mxu0 0.0
    %4402 = vmatpush1.xpose.msra.mxu0 0.0
    %4403 = vmatprep.subr.mxu0 0.0
    %4404 = vmatpush1.xpose.msra.mxu0 0.0
    %4405 = vmatprep.subr.mxu0 0.0
    %4406 = vmatpush1.xpose.msra.mxu0 0.0
    %4407 = vmatprep.subr.mxu0 0.0
    %4408 = vmatpush1.xpose.msra.mxu0 0.0
    %4409 = vmatprep.subr.mxu0 0.0
    %4410 = vmatpush1.xpose.msra.mxu0 0.0
    %4411 = vmatprep.subr.mxu0 0.0
    %4412 = vmatpush1.xpose.msra.mxu0 0.0
    %4413 = vmatprep.subr.mxu0 0.0
    %4414 = vmatpush1.xpose.msra.mxu0 0.0
    %4415 = vmatprep.subr.mxu0 0.0
    %4416 = vmatpush1.xpose.msra.mxu0 0.0
    %4417 = vmatprep.subr.mxu0 0.0
    %4418 = vmatpush1.xpose.msra.mxu0 0.0
    %4419 = vmatprep.subr.mxu0 0.0
    %4420 = vmatpush1.xpose.msra.mxu0 0.0
    %4421 = vmatprep.subr.mxu0 0.0
    %4422 = vmatpush1.xpose.msra.mxu0 0.0
    %4423 = vmatprep.subr.mxu0 0.0
    %4424 = vmatpush1.xpose.msra.mxu0 0.0
    %4425 = vmatprep.subr.mxu0 0.0
    %4426 = vmatpush1.xpose.msra.mxu0 0.0
    %4427 = vmatprep.subr.mxu0 0.0
    %4428 = vmatpush1.xpose.msra.mxu0 0.0
    %4429 = vmatprep.subr.mxu0 0.0
    %4430 = vmatpush1.xpose.msra.mxu0 0.0
    %4431 = vmatprep.subr.mxu0 0.0
    %4432 = vmatpush1.xpose.msra.mxu0 0.0
    %4433 = vmatprep.subr.mxu0 0.0
    %4434 = vmatpush1.xpose.msra.mxu0 0.0
    %4435 = vmatprep.subr.mxu0 0.0
    %4436 = vmatpush1.xpose.msra.mxu0 0.0
    %4437 = vmatprep.subr.mxu0 0.0
    %4438 = vmatpush1.xpose.msra.mxu0 0.0
    %4439 = vmatprep.subr.mxu0 0.0
    %4440 = vmatpush1.xpose.msra.mxu0 0.0
    %4441 = vmatprep.subr.mxu0 0.0
    %4442 = vmatpush1.xpose.msra.mxu0 0.0
    %4443 = vmatprep.subr.mxu0 0.0
    %4444 = vmatpush1.xpose.msra.mxu0 0.0
    %4445 = vmatprep.subr.mxu0 0.0
    %4446 = vmatpush1.xpose.msra.mxu0 0.0
    %4447 = vmatprep.mubr.f32.mxu0 0.0
    %4448 = vmatmul.mubr.f32.gmra.mrb[0].mxu0 %v4375
    %v4449 = vpop.f32.mrb[0].mxu0
    %v4450 = vadd.f32 %v341, %v4449
    %v4451 = vpop.f32.mrb[0].mxu0
    %4452 = vmatprep.mubr.f32.mxu0 0.0
    %4453 = vmatmul.mubr.f32.gmra.mrb[0].mxu0 %v4377
    %v4454 = vpop.f32.mrb[0].mxu0
    %v4455 = vadd.f32 %v342, %v4454
    %v4456 = vpop.f32.mrb[0].mxu0
    %4457 = vdwg.mxu0
    %v4458 = vsel %vm524, %v4450, -inf
    %4459 = vmax.xlane.f32.xlu0 %v4458
    %v4460 = vpop.xlane.xlu0 %4459
    %v4461 = vsel %vm524, %v4455, -inf
    %4462 = vmax.xlane.f32.xlu0 %v4461
    %v4463 = vpop.xlane.xlu0 %4462
    %v4464 = vsub.f32 %v4450, %v4460
    %v4465 = vsub.f32 %v4455, %v4463
    %v4466 = vmul.f32 %v4464, 1.442695
    %v4467 = vpow.pop %v4466
    %v4468 = vmul.f32 %v4465, 1.442695
    %v4469 = vpow.pop %v4468
    %v4470 = vsel %vm524, %v4467, 0.0
    %4471 = vadd.xlane.f32.xlu0 %v4470
    %v4472 = vpop.xlane.xlu0 %4471
    %v4473 = vsel %vm524, %v4469, 0.0
    %4474 = vadd.xlane.f32.xlu0 %v4473
    %v4475 = vpop.xlane.xlu0 %4474
    %v4476 = vrcp.pop %v4472
    %v4477 = vrcp.pop %v4475
    %v4478 = vmul.f32 %v4467, %v4476
    %v4479 = vmul.f32 %v4469, %v4477
    %4480 = vrot.lane.b32.xlu0 %v3954, 80
    %v4481 = vpop.permute.xlu0 %4480
    %4482 = vrot.lane.b32.xlu0 %v3959, 80
    %v4483 = vpop.permute.xlu0 %4482
    %v4487 = vsel %vm524, %v4478, 0
    %v4490 = vsel %vm524, %v4479, 0
    %4492 = vmatprep.subr.mxu0 0.0
    %4493 = vmatpush1.msra.mxu0 %v4481
    %4494 = vmatprep.subr.mxu0 0.0
    %4495 = vmatpush1.msra.mxu0 %v4483
    %4496 = vmatprep.subr.mxu0 0.0
    %4497 = vmatpush1.msra.mxu0 0.0
    %4498 = vmatprep.subr.mxu0 0.0
    %4499 = vmatpush1.msra.mxu0 0.0
    %4500 = vmatprep.subr.mxu0 0.0
    %4501 = vmatpush1.msra.mxu0 0.0
    %4502 = vmatprep.subr.mxu0 0.0
    %4503 = vmatpush1.msra.mxu0 0.0
    %4504 = vmatprep.subr.mxu0 0.0
    %4505 = vmatpush1.msra.mxu0 0.0
    %4506 = vmatprep.subr.mxu0 0.0
    %4507 = vmatpush1.msra.mxu0 0.0
    %4508 = vmatprep.subr.mxu0 0.0
    %4509 = vmatpush1.msra.mxu0 0.0
    %4510 = vmatprep.subr.mxu0 0.0
    %4511 = vmatpush1.msra.mxu0 0.0
    %4512 = vmatprep.subr.mxu0 0.0
    %4513 = vmatpush1.msra.mxu0 0.0
    %4514 = vmatprep.subr.mxu0 0.0
    %4515 = vmatpush1.msra.mxu0 0.0
    %4516 = vmatprep.subr.mxu0 0.0
    %4517 = vmatpush1.msra.mxu0 0.0
    %4518 = vmatprep.subr.mxu0 0.0
    %4519 = vmatpush1.msra.mxu0 0.0
    %4520 = vmatprep.subr.mxu0 0.0
    %4521 = vmatpush1.msra.mxu0 0.0
    %4522 = vmatprep.subr.mxu0 0.0
    %4523 = vmatpush1.msra.mxu0 0.0
    %4524 = vmatprep.subr.mxu0 0.0
    %4525 = vmatpush1.msra.mxu0 0.0
    %4526 = vmatprep.subr.mxu0 0.0
    %4527 = vmatpush1.msra.mxu0 0.0
    %4528 = vmatprep.subr.mxu0 0.0
    %4529 = vmatpush1.msra.mxu0 0.0
    %4530 = vmatprep.subr.mxu0 0.0
    %4531 = vmatpush1.msra.mxu0 0.0
    %4532 = vmatprep.subr.mxu0 0.0
    %4533 = vmatpush1.msra.mxu0 0.0
    %4534 = vmatprep.subr.mxu0 0.0
    %4535 = vmatpush1.msra.mxu0 0.0
    %4536 = vmatprep.subr.mxu0 0.0
    %4537 = vmatpush1.msra.mxu0 0.0
    %4538 = vmatprep.subr.mxu0 0.0
    %4539 = vmatpush1.msra.mxu0 0.0
    %4540 = vmatprep.subr.mxu0 0.0
    %4541 = vmatpush1.msra.mxu0 0.0
    %4542 = vmatprep.subr.mxu0 0.0
    %4543 = vmatpush1.msra.mxu0 0.0
    %4544 = vmatprep.subr.mxu0 0.0
    %4545 = vmatpush1.msra.mxu0 0.0
    %4546 = vmatprep.subr.mxu0 0.0
    %4547 = vmatpush1.msra.mxu0 0.0
    %4548 = vmatprep.subr.mxu0 0.0
    %4549 = vmatpush1.msra.mxu0 0.0
    %4550 = vmatprep.subr.mxu0 0.0
    %4551 = vmatpush1.msra.mxu0 0.0
    %4552 = vmatprep.subr.mxu0 0.0
    %4553 = vmatpush1.msra.mxu0 0.0
    %4554 = vmatprep.subr.mxu0 0.0
    %4555 = vmatpush1.msra.mxu0 0.0
    %4556 = vmatprep.mubr.f32.mxu0 0.0
    %4557 = vmatmul.mubr.f32.gmra.mrb[0].mxu0 %v4487
    %v4558 = vpop.f32.mrb[0].mxu0
    %v4559 = vadd.f32 0.0, %v4558
    %v4560 = vpop.f32.mrb[0].mxu0
    %4561 = vmatprep.mubr.f32.mxu0 0.0
    %4562 = vmatmul.mubr.f32.gmra.mrb[0].mxu0 %v4490
    %v4563 = vpop.f32.mrb[0].mxu0
    %v4564 = vadd.f32 0.0, %v4563
    %v4565 = vpop.f32.mrb[0].mxu0
    %4566 = vdwg.mxu0
    %4567 = vrot.lane.b32.xlu0 %v3874, 104
    %v4568 = vpop.permute.xlu0 %4567
    %4569 = vrot.lane.b32.xlu0 %v3879, 104
    %v4570 = vpop.permute.xlu0 %4569
    %4571 = vrot.lane.b32.xlu0 %v3954, 104
    %v4572 = vpop.permute.xlu0 %4571
    %4573 = vrot.lane.b32.xlu0 %v3959, 104
    %v4574 = vpop.permute.xlu0 %4573
    %v4575 = vsel %vm440, %v4568, 0
    %v4577 = vsel %vm440, %v4570, 0
    %v4579 = vsel %vm440, %v4572, 0
    %v4581 = vsel %vm440, %v4574, 0
    %4583 = vmatprep.subr.mxu0 0.0
    %4584 = vmatpush1.xpose.msra.mxu0 %v4579
    %4585 = vmatprep.subr.mxu0 0.0
    %4586 = vmatpush1.xpose.msra.mxu0 %v4581
    %4587 = vmatprep.subr.mxu0 0.0
    %4588 = vmatpush1.xpose.msra.mxu0 0.0
    %4589 = vmatprep.subr.mxu0 0.0
    %4590 = vmatpush1.xpose.msra.mxu0 0.0
    %4591 = vmatprep.subr.mxu0 0.0
    %4592 = vmatpush1.xpose.msra.mxu0 0.0
    %4593 = vmatprep.subr.mxu0 0.0
    %4594 = vmatpush1.xpose.msra.mxu0 0.0
    %4595 = vmatprep.subr.mxu0 0.0
    %4596 = vmatpush1.xpose.msra.mxu0 0.0
    %4597 = vmatprep.subr.mxu0 0.0
    %4598 = vmatpush1.xpose.msra.mxu0 0.0
    %4599 = vmatprep.subr.mxu0 0.0
    %4600 = vmatpush1.xpose.msra.mxu0 0.0
    %4601 = vmatprep.subr.mxu0 0.0
    %4602 = vmatpush1.xpose.msra.mxu0 0.0
    %4603 = vmatprep.subr.mxu0 0.0
    %4604 = vmatpush1.xpose.msra.mxu0 0.0
    %4605 = vmatprep.subr.mxu0 0.0
    %4606 = vmatpush1.xpose.msra.mxu0 0.0
    %4607 = vmatprep.subr.mxu0 0.0
    %4608 = vmatpush1.xpose.msra.mxu0 0.0
    %4609 = vmatprep.subr.mxu0 0.0
    %4610 = vmatpush1.xpose.msra.mxu0 0.0
    %4611 = vmatprep.subr.mxu0 0.0
    %4612 = vmatpush1.xpose.msra.mxu0 0.0
    %4613 = vmatprep.subr.mxu0 0.0
    %4614 = vmatpush1.xpose.msra.mxu0 0.0
    %4615 = vmatprep.subr.mxu0 0.0
    %4616 = vmatpush1.xpose.msra.mxu0 0.0
    %4617 = vmatprep.subr.mxu0 0.0
    %4618 = vmatpush1.xpose.msra.mxu0 0.0
    %4619 = vmatprep.subr.mxu0 0.0
    %4620 = vmatpush1.xpose.msra.mxu0 0.0
    %4621 = vmatprep.subr.mxu0 0.0
    %4622 = vmatpush1.xpose.msra.mxu0 0.0
    %4623 = vmatprep.subr.mxu0 0.0
    %4624 = vmatpush1.xpose.msra.mxu0 0.0
    %4625 = vmatprep.subr.mxu0 0.0
    %4626 = vmatpush1.xpose.msra.mxu0 0.0
    %4627 = vmatprep.subr.mxu0 0.0
    %4628 = vmatpush1.xpose.msra.mxu0 0.0
    %4629 = vmatprep.subr.mxu0 0.0
    %4630 = vmatpush1.xpose.msra.mxu0 0.0
    %4631 = vmatprep.subr.mxu0 0.0
    %4632 = vmatpush1.xpose.msra.mxu0 0.0
    %4633 = vmatprep.subr.mxu0 0.0
    %4634 = vmatpush1.xpose.msra.mxu0 0.0
    %4635 = vmatprep.subr.mxu0 0.0
    %4636 = vmatpush1.xpose.msra.mxu0 0.0
    %4637 = vmatprep.subr.mxu0 0.0
    %4638 = vmatpush1.xpose.msra.mxu0 0.0
    %4639 = vmatprep.subr.mxu0 0.0
    %4640 = vmatpush1.xpose.msra.mxu0 0.0
    %4641 = vmatprep.subr.mxu0 0.0
    %4642 = vmatpush1.xpose.msra.mxu0 0.0
    %4643 = vmatprep.subr.mxu0 0.0
    %4644 = vmatpush1.xpose.msra.mxu0 0.0
    %4645 = vmatprep.subr.mxu0 0.0
    %4646 = vmatpush1.xpose.msra.mxu0 0.0
    %4647 = vmatprep.mubr.f32.mxu0 0.0
    %4648 = vmatmul.mubr.f32.gmra.mrb[0].mxu0 %v4575
    %v4649 = vpop.f32.mrb[0].mxu0
    %v4650 = vadd.f32 %v341, %v4649
    %v4651 = vpop.f32.mrb[0].mxu0
    %4652 = vmatprep.mubr.f32.mxu0 0.0
    %4653 = vmatmul.mubr.f32.gmra.mrb[0].mxu0 %v4577
    %v4654 = vpop.f32.mrb[0].mxu0
    %v4655 = vadd.f32 %v342, %v4654
    %v4656 = vpop.f32.mrb[0].mxu0
    %4657 = vdwg.mxu0
    %v4658 = vsel %vm524, %v4650, -inf
    %4659 = vmax.xlane.f32.xlu0 %v4658
    %v4660 = vpop.xlane.xlu0 %4659
    %v4661 = vsel %vm524, %v4655, -inf
    %4662 = vmax.xlane.f32.xlu0 %v4661
    %v4663 = vpop.xlane.xlu0 %4662
    %v4664 = vsub.f32 %v4650, %v4660
    %v4665 = vsub.f32 %v4655, %v4663
    %v4666 = vmul.f32 %v4664, 1.442695
    %v4667 = vpow.pop %v4666
    %v4668 = vmul.f32 %v4665, 1.442695
    %v4669 = vpow.pop %v4668
    %v4670 = vsel %vm524, %v4667, 0.0
    %4671 = vadd.xlane.f32.xlu0 %v4670
    %v4672 = vpop.xlane.xlu0 %4671
    %v4673 = vsel %vm524, %v4669, 0.0
    %4674 = vadd.xlane.f32.xlu0 %v4673
    %v4675 = vpop.xlane.xlu0 %4674
    %v4676 = vrcp.pop %v4672
    %v4677 = vrcp.pop %v4675
    %v4678 = vmul.f32 %v4667, %v4676
    %v4679 = vmul.f32 %v4669, %v4677
    %4680 = vrot.lane.b32.xlu0 %v3954, 72
    %v4681 = vpop.permute.xlu0 %4680
    %4682 = vrot.lane.b32.xlu0 %v3959, 72
    %v4683 = vpop.permute.xlu0 %4682
    %v4687 = vsel %vm524, %v4678, 0
    %v4690 = vsel %vm524, %v4679, 0
    %4692 = vmatprep.subr.mxu0 0.0
    %4693 = vmatpush1.msra.mxu0 %v4681
    %4694 = vmatprep.subr.mxu0 0.0
    %4695 = vmatpush1.msra.mxu0 %v4683
    %4696 = vmatprep.subr.mxu0 0.0
    %4697 = vmatpush1.msra.mxu0 0.0
    %4698 = vmatprep.subr.mxu0 0.0
    %4699 = vmatpush1.msra.mxu0 0.0
    %4700 = vmatprep.subr.mxu0 0.0
    %4701 = vmatpush1.msra.mxu0 0.0
    %4702 = vmatprep.subr.mxu0 0.0
    %4703 = vmatpush1.msra.mxu0 0.0
    %4704 = vmatprep.subr.mxu0 0.0
    %4705 = vmatpush1.msra.mxu0 0.0
    %4706 = vmatprep.subr.mxu0 0.0
    %4707 = vmatpush1.msra.mxu0 0.0
    %4708 = vmatprep.subr.mxu0 0.0
    %4709 = vmatpush1.msra.mxu0 0.0
    %4710 = vmatprep.subr.mxu0 0.0
    %4711 = vmatpush1.msra.mxu0 0.0
    %4712 = vmatprep.subr.mxu0 0.0
    %4713 = vmatpush1.msra.mxu0 0.0
    %4714 = vmatprep.subr.mxu0 0.0
    %4715 = vmatpush1.msra.mxu0 0.0
    %4716 = vmatprep.subr.mxu0 0.0
    %4717 = vmatpush1.msra.mxu0 0.0
    %4718 = vmatprep.subr.mxu0 0.0
    %4719 = vmatpush1.msra.mxu0 0.0
    %4720 = vmatprep.subr.mxu0 0.0
    %4721 = vmatpush1.msra.mxu0 0.0
    %4722 = vmatprep.subr.mxu0 0.0
    %4723 = vmatpush1.msra.mxu0 0.0
    %4724 = vmatprep.subr.mxu0 0.0
    %4725 = vmatpush1.msra.mxu0 0.0
    %4726 = vmatprep.subr.mxu0 0.0
    %4727 = vmatpush1.msra.mxu0 0.0
    %4728 = vmatprep.subr.mxu0 0.0
    %4729 = vmatpush1.msra.mxu0 0.0
    %4730 = vmatprep.subr.mxu0 0.0
    %4731 = vmatpush1.msra.mxu0 0.0
    %4732 = vmatprep.subr.mxu0 0.0
    %4733 = vmatpush1.msra.mxu0 0.0
    %4734 = vmatprep.subr.mxu0 0.0
    %4735 = vmatpush1.msra.mxu0 0.0
    %4736 = vmatprep.subr.mxu0 0.0
    %4737 = vmatpush1.msra.mxu0 0.0
    %4738 = vmatprep.subr.mxu0 0.0
    %4739 = vmatpush1.msra.mxu0 0.0
    %4740 = vmatprep.subr.mxu0 0.0
    %4741 = vmatpush1.msra.mxu0 0.0
    %4742 = vmatprep.subr.mxu0 0.0
    %4743 = vmatpush1.msra.mxu0 0.0
    %4744 = vmatprep.subr.mxu0 0.0
    %4745 = vmatpush1.msra.mxu0 0.0
    %4746 = vmatprep.subr.mxu0 0.0
    %4747 = vmatpush1.msra.mxu0 0.0
    %4748 = vmatprep.subr.mxu0 0.0
    %4749 = vmatpush1.msra.mxu0 0.0
    %4750 = vmatprep.subr.mxu0 0.0
    %4751 = vmatpush1.msra.mxu0 0.0
    %4752 = vmatprep.subr.mxu0 0.0
    %4753 = vmatpush1.msra.mxu0 0.0
    %4754 = vmatprep.subr.mxu0 0.0
    %4755 = vmatpush1.msra.mxu0 0.0
    %4756 = vmatprep.mubr.f32.mxu0 0.0
    %4757 = vmatmul.mubr.f32.gmra.mrb[0].mxu0 %v4687
    %v4758 = vpop.f32.mrb[0].mxu0
    %v4759 = vadd.f32 0.0, %v4758
    %v4760 = vpop.f32.mrb[0].mxu0
    %4761 = vmatprep.mubr.f32.mxu0 0.0
    %4762 = vmatmul.mubr.f32.gmra.mrb[0].mxu0 %v4690
    %v4763 = vpop.f32.mrb[0].mxu0
    %v4764 = vadd.f32 0.0, %v4763
    %v4765 = vpop.f32.mrb[0].mxu0
    %4766 = vdwg.mxu0
    %4769 = vrot.lane.b32.xlu0 %v4359, 8
    %v4770 = vpop.permute.xlu0 %4769
    %4771 = vrot.lane.b32.xlu0 %v4364, 8
    %v4772 = vpop.permute.xlu0 %4771
    %4777 = vrot.lane.b32.xlu0 %v4559, 16
    %v4778 = vpop.permute.xlu0 %4777
    %4779 = vrot.lane.b32.xlu0 %v4564, 16
    %v4780 = vpop.permute.xlu0 %4779
    %4785 = vrot.lane.b32.xlu0 %v4759, 24
    %v4786 = vpop.permute.xlu0 %4785
    %4787 = vrot.lane.b32.xlu0 %v4764, 24
    %v4788 = vpop.permute.xlu0 %4787
    %v4791 = vsel %vm440, %v4159, %v4770
    %v4792 = vsel %vm440, %v4164, %v4772
    %v4793 = vsel %vm524, %v4791, %v4778
    %v4794 = vsel %vm524, %v4792, %v4780
    %v4795 = vsel %vm1262, %v4793, %v4786
    %v4796 = vsel %vm1262, %v4794, %v4788
    %v4798 = vsel %vm293, %v4795, 0
    %v4801 = vsel %vm293, %v4796, 0
    %4803 = vmatprep.subr.mxu0 0.0
    %4804 = vmatpush1.msra.mxu0 %v3963
    %4805 = vmatprep.subr.mxu0 0.0
    %4806 = vmatpush1.msra.mxu0 %v3964
    %4807 = vmatprep.subr.mxu0 0.0
    %4808 = vmatpush1.msra.mxu0 %v3965
    %4809 = vmatprep.subr.mxu0 0.0
    %4810 = vmatpush1.msra.mxu0 %v3966
    %4811 = vmatprep.subr.mxu0 0.0
    %4812 = vmatpush1.msra.mxu0 0.0
    %4813 = vmatprep.subr.mxu0 0.0
    %4814 = vmatpush1.msra.mxu0 0.0
    %4815 = vmatprep.subr.mxu0 0.0
    %4816 = vmatpush1.msra.mxu0 0.0
    %4817 = vmatprep.subr.mxu0 0.0
    %4818 = vmatpush1.msra.mxu0 0.0
    %4819 = vmatprep.subr.mxu0 0.0
    %4820 = vmatpush1.msra.mxu0 0.0
    %4821 = vmatprep.subr.mxu0 0.0
    %4822 = vmatpush1.msra.mxu0 0.0
    %4823 = vmatprep.subr.mxu0 0.0
    %4824 = vmatpush1.msra.mxu0 0.0
    %4825 = vmatprep.subr.mxu0 0.0
    %4826 = vmatpush1.msra.mxu0 0.0
    %4827 = vmatprep.subr.mxu0 0.0
    %4828 = vmatpush1.msra.mxu0 0.0
    %4829 = vmatprep.subr.mxu0 0.0
    %4830 = vmatpush1.msra.mxu0 0.0
    %4831 = vmatprep.subr.mxu0 0.0
    %4832 = vmatpush1.msra.mxu0 0.0
    %4833 = vmatprep.subr.mxu0 0.0
    %4834 = vmatpush1.msra.mxu0 0.0
    %4835 = vmatprep.subr.mxu0 0.0
    %4836 = vmatpush1.msra.mxu0 0.0
    %4837 = vmatprep.subr.mxu0 0.0
    %4838 = vmatpush1.msra.mxu0 0.0
    %4839 = vmatprep.subr.mxu0 0.0
    %4840 = vmatpush1.msra.mxu0 0.0
    %4841 = vmatprep.subr.mxu0 0.0
    %4842 = vmatpush1.msra.mxu0 0.0
    %4843 = vmatprep.subr.mxu0 0.0
    %4844 = vmatpush1.msra.mxu0 0.0
    %4845 = vmatprep.subr.mxu0 0.0
    %4846 = vmatpush1.msra.mxu0 0.0
    %4847 = vmatprep.subr.mxu0 0.0
    %4848 = vmatpush1.msra.mxu0 0.0
    %4849 = vmatprep.subr.mxu0 0.0
    %4850 = vmatpush1.msra.mxu0 0.0
    %4851 = vmatprep.subr.mxu0 0.0
    %4852 = vmatpush1.msra.mxu0 0.0
    %4853 = vmatprep.subr.mxu0 0.0
    %4854 = vmatpush1.msra.mxu0 0.0
    %4855 = vmatprep.subr.mxu0 0.0
    %4856 = vmatpush1.msra.mxu0 0.0
    %4857 = vmatprep.subr.mxu0 0.0
    %4858 = vmatpush1.msra.mxu0 0.0
    %4859 = vmatprep.subr.mxu0 0.0
    %4860 = vmatpush1.msra.mxu0 0.0
    %4861 = vmatprep.subr.mxu0 0.0
    %4862 = vmatpush1.msra.mxu0 0.0
    %4863 = vmatprep.subr.mxu0 0.0
    %4864 = vmatpush1.msra.mxu0 0.0
    %4865 = vmatprep.subr.mxu0 0.0
    %4866 = vmatpush1.msra.mxu0 0.0
    %4867 = vmatprep.mubr.f32.mxu0 0.0
    %4868 = vmatmul.mubr.f32.gmra.mrb[0].mxu0 %v4798
    %v4869 = vpop.f32.mrb[0].mxu0
    %v4870 = vadd.f32 %v3794, %v4869
    %v4871 = vpop.f32.mrb[0].mxu0
    %4872 = vmatprep.mubr.f32.mxu0 0.0
    %4873 = vmatmul.mubr.f32.gmra.mrb[0].mxu0 %v4801
    %v4874 = vpop.f32.mrb[0].mxu0
    %v4875 = vadd.f32 %v3795, %v4874
    %v4876 = vpop.f32.mrb[0].mxu0
    %4877 = vdwg.mxu0
    %v4878 = vsel %vm293, %v4870, 0.0
    %4879 = vadd.xlane.f32.xlu0 %v4878
    %v4880 = vpop.xlane.xlu0 %4879
    %v4881 = vsel %vm293, %v4875, 0.0
    %4882 = vadd.xlane.f32.xlu0 %v4881
    %v4883 = vpop.xlane.xlu0 %4882
    %v4884 = vmul.f32 %v4880, %v300
    %v4885 = vmul.f32 %v4883, %v300
    %v4886 = vsub.f32 %v4870, %v4884
    %v4887 = vsub.f32 %v4875, %v4885
    %v4888 = vmul.f32 %v4886, %v4886
    %v4889 = vmul.f32 %v4887, %v4887
    %v4890 = vsel %vm293, %v4888, 0.0
    %4891 = vadd.xlane.f32.xlu0 %v4890
    %v4892 = vpop.xlane.xlu0 %4891
    %v4893 = vsel %vm293, %v4889, 0.0
    %4894 = vadd.xlane.f32.xlu0 %v4893
    %v4895 = vpop.xlane.xlu0 %4894
    %v4896 = vmul.f32 %v4892, %v300
    %v4897 = vmul.f32 %v4895, %v300
    %v4898 = vadd.f32 %v4896, 1e-06
    %v4899 = vadd.f32 %v4897, 1e-06
    %v4900 = vrsqrt.pop %v4898
    %v4901 = vrsqrt.pop %v4899
    %v4902 = vmul.f32 %v4886, %v4900
    %v4903 = vmul.f32 %v4887, %v4901
    %v4905 = vlaneseq
    %v4906 = vshrl.u32 %v4905, 7
    %v4907 = vsub.s32 0, %v4906
    %v4908 = vrot.slane %v3968, %v4907
    %v4910 = vmul.f32 %v4902, %v4908
    %v4911 = vmul.f32 %v4903, %v4908
    %v4913 = vlaneseq
    %v4914 = vshrl.u32 %v4913, 7
    %v4915 = vsub.s32 0, %v4914
    %v4916 = vrot.slane %v3970, %v4915
    %v4918 = vadd.f32 %v4910, %v4916
    %v4919 = vadd.f32 %v4911, %v4916
    %s4920 = scalar_lea.vmem [#allocation14], 32
    %v4921 = vld [vmem:[%s4920] sm:$0xff]
    %v4922 = vld [vmem:[%s4920 + $0x8] sm:$0xff]
    %v4923 = vld [vmem:[%s4920 + $0x10] sm:$0xff]
    %v4924 = vld [vmem:[%s4920 + $0x18] sm:$0xff]
    %s4925 = scalar_lea.vmem %s18, 1
    %v4926 = vld [vmem:[%s4925] sm:$0x1]
    %v4928 = vlaneseq
    %v4929 = vshrl.u32 %v4928, 7
    %v4930 = vsub.s32 0, %v4929
    %v4931 = vrot.slane %v4926, %v4930
    %v4934 = vsel %vm293, %v4918, 0
    %v4937 = vsel %vm293, %v4919, 0
    %4939 = vmatprep.subr.mxu0 0.0
    %4940 = vmatpush1.msra.mxu0 %v4921
    %4941 = vmatprep.subr.mxu0 0.0
    %4942 = vmatpush1.msra.mxu0 %v4922
    %4943 = vmatprep.subr.mxu0 0.0
    %4944 = vmatpush1.msra.mxu0 %v4923
    %4945 = vmatprep.subr.mxu0 0.0
    %4946 = vmatpush1.msra.mxu0 %v4924
    %4947 = vmatprep.subr.mxu0 0.0
    %4948 = vmatpush1.msra.mxu0 0.0
    %4949 = vmatprep.subr.mxu0 0.0
    %4950 = vmatpush1.msra.mxu0 0.0
    %4951 = vmatprep.subr.mxu0 0.0
    %4952 = vmatpush1.msra.mxu0 0.0
    %4953 = vmatprep.subr.mxu0 0.0
    %4954 = vmatpush1.msra.mxu0 0.0
    %4955 = vmatprep.subr.mxu0 0.0
    %4956 = vmatpush1.msra.mxu0 0.0
    %4957 = vmatprep.subr.mxu0 0.0
    %4958 = vmatpush1.msra.mxu0 0.0
    %4959 = vmatprep.subr.mxu0 0.0
    %4960 = vmatpush1.msra.mxu0 0.0
    %4961 = vmatprep.subr.mxu0 0.0
    %4962 = vmatpush1.msra.mxu0 0.0
    %4963 = vmatprep.subr.mxu0 0.0
    %4964 = vmatpush1.msra.mxu0 0.0
    %4965 = vmatprep.subr.mxu0 0.0
    %4966 = vmatpush1.msra.mxu0 0.0
    %4967 = vmatprep.subr.mxu0 0.0
    %4968 = vmatpush1.msra.mxu0 0.0
    %4969 = vmatprep.subr.mxu0 0.0
    %4970 = vmatpush1.msra.mxu0 0.0
    %4971 = vmatprep.subr.mxu0 0.0
    %4972 = vmatpush1.msra.mxu0 0.0
    %4973 = vmatprep.subr.mxu0 0.0
    %4974 = vmatpush1.msra.mxu0 0.0
    %4975 = vmatprep.subr.mxu0 0.0
    %4976 = vmatpush1.msra.mxu0 0.0
    %4977 = vmatprep.subr.mxu0 0.0
    %4978 = vmatpush1.msra.mxu0 0.0
    %4979 = vmatprep.subr.mxu0 0.0
    %4980 = vmatpush1.msra.mxu0 0.0
    %4981 = vmatprep.subr.mxu0 0.0
    %4982 = vmatpush1.msra.mxu0 0.0
    %4983 = vmatprep.subr.mxu0 0.0
    %4984 = vmatpush1.msra.mxu0 0.0
    %4985 = vmatprep.subr.mxu0 0.0
    %4986 = vmatpush1.msra.mxu0 0.0
    %4987 = vmatprep.subr.mxu0 0.0
    %4988 = vmatpush1.msra.mxu0 0.0
    %4989 = vmatprep.subr.mxu0 0.0
    %4990 = vmatpush1.msra.mxu0 0.0
    %4991 = vmatprep.subr.mxu0 0.0
    %4992 = vmatpush1.msra.mxu0 0.0
    %4993 = vmatprep.subr.mxu0 0.0
    %4994 = vmatpush1.msra.mxu0 0.0
    %4995 = vmatprep.subr.mxu0 0.0
    %4996 = vmatpush1.msra.mxu0 0.0
    %4997 = vmatprep.subr.mxu0 0.0
    %4998 = vmatpush1.msra.mxu0 0.0
    %4999 = vmatprep.subr.mxu0 0.0
    %5000 = vmatpush1.msra.mxu0 0.0
    %5001 = vmatprep.subr.mxu0 0.0
    %5002 = vmatpush1.msra.mxu0 0.0
    %5003 = vmatprep.mubr.f32.mxu0 0.0
    %5004 = vmatmul.mubr.f32.gmra.mrb[0].mxu0 %v4934
    %v5005 = vpop.f32.mrb[0].mxu0
    %v5006 = vadd.f32 %v4931, %v5005
    %v5007 = vpop.f32.mrb[0].mxu0
    %5008 = vmatprep.mubr.f32.mxu0 0.0
    %5009 = vmatmul.mubr.f32.gmra.mrb[0].mxu0 %v4937
    %v5010 = vpop.f32.mrb[0].mxu0
    %v5011 = vadd.f32 %v4931, %v5010
    %v5012 = vpop.f32.mrb[0].mxu0
    %5013 = vdwg.mxu0
    %v5014 = vmax.f32 %v5006, 0.0
    %v5015 = vmax.f32 %v5011, 0.0
    %s5016 = scalar_lea.vmem %s19, 64
    %v5017 = vld [vmem:[%s5016] sm:$0xff]
    %v5018 = vld [vmem:[%s5016 + $0x8] sm:$0xff]
    %v5019 = vld [vmem:[%s5016 + $0x10] sm:$0xff]
    %v5020 = vld [vmem:[%s5016 + $0x18] sm:$0xff]
    %v5021 = vld [vmem:[%s5016 + $0x20] sm:$0xff]
    %v5022 = vld [vmem:[%s5016 + $0x28] sm:$0xff]
    %v5023 = vld [vmem:[%s5016 + $0x30] sm:$0xff]
    %v5024 = vld [vmem:[%s5016 + $0x38] sm:$0xff]
    %s5025 = scalar_lea.vmem %s20, 1
    %v5026 = vld [vmem:[%s5025] sm:$0x1]
    %v5028 = vlaneseq
    %v5029 = vshrl.u32 %v5028, 7
    %v5030 = vsub.s32 0, %v5029
    %v5031 = vrot.slane %v5026, %v5030
    %v5034 = vsel %vm2622, %v5014, 0
    %v5037 = vsel %vm2622, %v5015, 0
    %5039 = vmatprep.subr.mxu0 0.0
    %5040 = vmatpush1.msra.mxu0 %v5017
    %5041 = vmatprep.subr.mxu0 0.0
    %5042 = vmatpush1.msra.mxu0 %v5018
    %5043 = vmatprep.subr.mxu0 0.0
    %5044 = vmatpush1.msra.mxu0 %v5019
    %5045 = vmatprep.subr.mxu0 0.0
    %5046 = vmatpush1.msra.mxu0 %v5020
    %5047 = vmatprep.subr.mxu0 0.0
    %5048 = vmatpush1.msra.mxu0 %v5021
    %5049 = vmatprep.subr.mxu0 0.0
    %5050 = vmatpush1.msra.mxu0 %v5022
    %5051 = vmatprep.subr.mxu0 0.0
    %5052 = vmatpush1.msra.mxu0 %v5023
    %5053 = vmatprep.subr.mxu0 0.0
    %5054 = vmatpush1.msra.mxu0 %v5024
    %5055 = vmatprep.subr.mxu0 0.0
    %5056 = vmatpush1.msra.mxu0 0.0
    %5057 = vmatprep.subr.mxu0 0.0
    %5058 = vmatpush1.msra.mxu0 0.0
    %5059 = vmatprep.subr.mxu0 0.0
    %5060 = vmatpush1.msra.mxu0 0.0
    %5061 = vmatprep.subr.mxu0 0.0
    %5062 = vmatpush1.msra.mxu0 0.0
    %5063 = vmatprep.subr.mxu0 0.0
    %5064 = vmatpush1.msra.mxu0 0.0
    %5065 = vmatprep.subr.mxu0 0.0
    %5066 = vmatpush1.msra.mxu0 0.0
    %5067 = vmatprep.subr.mxu0 0.0
    %5068 = vmatpush1.msra.mxu0 0.0
    %5069 = vmatprep.subr.mxu0 0.0
    %5070 = vmatpush1.msra.mxu0 0.0
    %5071 = vmatprep.subr.mxu0 0.0
    %5072 = vmatpush1.msra.mxu0 0.0
    %5073 = vmatprep.subr.mxu0 0.0
    %5074 = vmatpush1.msra.mxu0 0.0
    %5075 = vmatprep.subr.mxu0 0.0
    %5076 = vmatpush1.msra.mxu0 0.0
    %5077 = vmatprep.subr.mxu0 0.0
    %5078 = vmatpush1.msra.mxu0 0.0
    %5079 = vmatprep.subr.mxu0 0.0
    %5080 = vmatpush1.msra.mxu0 0.0
    %5081 = vmatprep.subr.mxu0 0.0
    %5082 = vmatpush1.msra.mxu0 0.0
    %5083 = vmatprep.subr.mxu0 0.0
    %5084 = vmatpush1.msra.mxu0 0.0
    %5085 = vmatprep.subr.mxu0 0.0
    %5086 = vmatpush1.msra.mxu0 0.0
    %5087 = vmatprep.subr.mxu0 0.0
    %5088 = vmatpush1.msra.mxu0 0.0
    %5089 = vmatprep.subr.mxu0 0.0
    %5090 = vmatpush1.msra.mxu0 0.0
    %5091 = vmatprep.subr.mxu0 0.0
    %5092 = vmatpush1.msra.mxu0 0.0
    %5093 = vmatprep.subr.mxu0 0.0
    %5094 = vmatpush1.msra.mxu0 0.0
    %5095 = vmatprep.subr.mxu0 0.0
    %5096 = vmatpush1.msra.mxu0 0.0
    %5097 = vmatprep.subr.mxu0 0.0
    %5098 = vmatpush1.msra.mxu0 0.0
    %5099 = vmatprep.subr.mxu0 0.0
    %5100 = vmatpush1.msra.mxu0 0.0
    %5101 = vmatprep.subr.mxu0 0.0
    %5102 = vmatpush1.msra.mxu0 0.0
    %5103 = vmatprep.mubr.f32.mxu0 0.0
    %5104 = vmatmul.mubr.f32.gmra.mrb[0].mxu0 %v5034
    %v5105 = vpop.f32.mrb[0].mxu0
    %v5106 = vadd.f32 %v5031, %v5105
    %v5107 = vpop.f32.mrb[0].mxu0
    %5108 = vmatprep.mubr.f32.mxu0 0.0
    %5109 = vmatmul.mubr.f32.gmra.mrb[0].mxu0 %v5037
    %v5110 = vpop.f32.mrb[0].mxu0
    %v5111 = vadd.f32 %v5031, %v5110
    %v5112 = vpop.f32.mrb[0].mxu0
    %5113 = vdwg.mxu0
    %v5114 = vadd.f32 %v5106, %v4918
    %v5115 = vadd.f32 %v5111, %v4919
    %s5116 = scalar_lea.vmem %s21, 1
    %v5117 = vld [vmem:[%s5116] sm:$0x1]
    %s5118 = scalar_lea.vmem %s22, 1
    %v5119 = vld [vmem:[%s5118] sm:$0x1]
    %v5120 = vsel %vm293, %v5114, 0.0
    %5121 = vadd.xlane.f32.xlu0 %v5120
    %v5122 = vpop.xlane.xlu0 %5121
    %v5123 = vsel %vm293, %v5115, 0.0
    %5124 = vadd.xlane.f32.xlu0 %v5123
    %v5125 = vpop.xlane.xlu0 %5124
    %v5126 = vmul.f32 %v5122, %v300
    %v5127 = vmul.f32 %v5125, %v300
    %v5128 = vsub.f32 %v5114, %v5126
    %v5129 = vsub.f32 %v5115, %v5127
    %v5130 = vmul.f32 %v5128, %v5128
    %v5131 = vmul.f32 %v5129, %v5129
    %v5132 = vsel %vm293, %v5130, 0.0
    %5133 = vadd.xlane.f32.xlu0 %v5132
    %v5134 = vpop.xlane.xlu0 %5133
    %v5135 = vsel %vm293, %v5131, 0.0
    %5136 = vadd.xlane.f32.xlu0 %v5135
    %v5137 = vpop.xlane.xlu0 %5136
    %v5138 = vmul.f32 %v5134, %v300
    %v5139 = vmul.f32 %v5137, %v300
    %v5140 = vadd.f32 %v5138, 1e-06
    %v5141 = vadd.f32 %v5139, 1e-06
    %v5142 = vrsqrt.pop %v5140
    %v5143 = vrsqrt.pop %v5141
    %v5144 = vmul.f32 %v5128, %v5142
    %v5145 = vmul.f32 %v5129, %v5143
    %v5147 = vlaneseq
    %v5148 = vshrl.u32 %v5147, 7
    %v5149 = vsub.s32 0, %v5148
    %v5150 = vrot.slane %v5117, %v5149
    %v5152 = vmul.f32 %v5144, %v5150
    %v5153 = vmul.f32 %v5145, %v5150
    %v5155 = vlaneseq
    %v5156 = vshrl.u32 %v5155, 7
    %v5157 = vsub.s32 0, %v5156
    %v5158 = vrot.slane %v5119, %v5157
    %v5160 = vadd.f32 %v5152, %v5158
    %v5161 = vadd.f32 %v5153, %v5158
    %5162 = vst.msk [vmem:[#allocation16] sm:$0xff] %vm293, %v5160
    %5163 = vst.msk [vmem:[#allocation16 + $0x8] sm:$0xff] %vm293, %v5161
    // Predicated region
    $region126: #{tpu_custom_call.1} parent=1 // pred_check
      _
    $region127: #{tpu_custom_call.1} parent=1 // pred_check_branch
      %5165 = sbr.rel (0) target = $region129
    $region128: #{tpu_custom_call.1} parent=1 // pred_region
      %s5167 = ssub.s32 256, 256
      %5168 = vsyncadd [#allocation4], %s5167
      %s5169 = sshll.u32 [#allocation16], 4
      %s5170 = int_to_ptr.vmem [resolvable:$true] %s5169
      %5175 = dma.vmem_to_hbm [thread:$0]  %s5170, 256, %s23, [#allocation4], 128, 128, 8
    $region129: #{tpu_custom_call.1} parent=1 // pred_fallthru
      _
    // Predicated region
    $region130: #{tpu_custom_call.1} parent=1 // pred_check
      _
    $region131: #{tpu_custom_call.1} parent=1 // pred_check_branch
      %5177 = sbr.rel (0) target = $region133
    $region132: #{tpu_custom_call.1} parent=1 // pred_region
      %5178 = dma.done [#allocation4], 256
    $region133: #{tpu_custom_call.1} parent=1 // pred_fallthru
      _
    %5179 = vsyncpa [#allocation3], 1
    %5180 = vsyncpa [#allocation6], 1
    %5181 = vsyncpa [#allocation9], 1
    %5182 = vsyncpa [#allocation12], 1
    %5183 = vsyncpa [#allocation15], 1
    %5184 = vsyncpa [#allocation4], 1

</llo_original>
